<compile_context>
chip_gen: v7x
topology: tpu7x:2x2x1
jax: 0.10.0
libtpu: 0.0.40
codegen_flags: <defaults>
</compile_context>

<pallas_src>
import functools
import math

import jax
import jax.numpy as jnp
from jax import lax
from jax.experimental import pallas as pl
from jax.experimental.pallas import tpu as pltpu


def _round_up(x, m):
    return (x + m - 1) // m * m


def _pick_batch_block(b_pad, max_block=256):
    """Largest multiple-of-8 divisor of b_pad that is <= max_block."""
    bb = min(b_pad, max_block)
    while b_pad % bb:
        bb -= 8
    return max(bb, 8)


# ----------------------------------------------------------------------------
# Fused multi-layer LSTM kernel (single invocation per batch tile)
# ----------------------------------------------------------------------------
def _lstm_fused_kernel(layer_num, hidden_dim, seq_len, batch_block, *refs):
    """Fused multi-layer LSTM forward over the full sequence.

    refs layout (in order):
      inputs : x (T, Bt, D), h0 (L, Bt, H), c0 (L, Bt, H),
               then per layer l: wih_t (d_in_l, 4H), whh_t (H, 4H), b (1, 4H)
      outputs: hn (L, Bt, H), cn (L, Bt, H)
      scratch: x2d (T*Bt, D), xg (T*Bt, 4H), y (T*Bt, H),
               h (Bt, H), c (Bt, H)        [all f32 VMEM]
    """
    L, H, T, Bt = layer_num, hidden_dim, seq_len, batch_block
    n_in = 3 + 3 * L
    x_ref, h0_ref, c0_ref = refs[0], refs[1], refs[2]
    w_refs = refs[3:n_in]
    hn_ref, cn_ref = refs[n_in], refs[n_in + 1]
    x2d_scr, xg_scr, y_scr, h_scr, c_scr = refs[n_in + 2:]

    for l in range(L):
        wih_ref = w_refs[3 * l + 0]
        whh_ref = w_refs[3 * l + 1]
        b_ref = w_refs[3 * l + 2]

        # ---- phase 1 (off the serial path): whole-sequence input projection
        # as ONE (T*Bt, d_in) x (d_in, 4H) MXU matmul + bias. -----------------
        if l == 0:
            # Stage (T, Bt, D) -> (T*Bt, D) with static, tile-aligned copies
            # (Bt is a multiple of 8 sublanes, so each copy is a full tile).
            for t in range(T):
                x2d_scr[pl.ds(t * Bt, Bt), :] = x_ref[t]
            x2d = x2d_scr[...]
        else:
            x2d = y_scr[...]                      # previous layer's sequence
        xg_scr[...] = (
            jnp.dot(x2d.astype(wih_ref.dtype), wih_ref[...],
                    preferred_element_type=jnp.float32)
            + b_ref[...])

        # ---- phase 2: serial recurrence; only h @ W_hh + gates per step ----
        h_scr[...] = h0_ref[l]
        c_scr[...] = c0_ref[l]
        whh = whh_ref[...]                        # resident for the whole loop
        write_seq = l < L - 1                     # last layer's seq is unused

        def step(t, carry, whh=whh, write_seq=write_seq):
            off = pl.multiple_of(t * Bt, Bt)
            h = h_scr[...]
            c = c_scr[...]
            # PyTorch gate order [i, f, g, o]; b_ih + b_hh already folded in.
            # NOTE: at H=32 the gate slices are sub-128-lane; for production
            # hidden_dim keep H a multiple of 128 (or split per-gate weights).
            g = xg_scr[pl.ds(off, Bt), :] + jnp.dot(
                h.astype(whh.dtype), whh, preferred_element_type=jnp.float32)
            i_g = jax.nn.sigmoid(g[:, 0 * H:1 * H])
            f_g = jax.nn.sigmoid(g[:, 1 * H:2 * H])
            g_g = jnp.tanh(g[:, 2 * H:3 * H])
            o_g = jax.nn.sigmoid(g[:, 3 * H:4 * H])
            c_new = f_g * c + i_g * g_g
            h_new = o_g * jnp.tanh(c_new)
            h_scr[...] = h_new
            c_scr[...] = c_new
            if write_seq:
                y_scr[pl.ds(off, Bt), :] = h_new  # feeds the next layer (VMEM)
            return carry

        lax.fori_loop(0, T, step, 0, unroll=True)

        hn_ref[l] = h_scr[...]
        cn_ref[l] = c_scr[...]


def lstm_fused_forward(x, h0, c0, params, *, batch_block=None):
    """x: (T, B_pad, D) f32; h0, c0: (L, B_pad, H) f32.
    params: [(wih_t (d_in, 4H), whh_t (H, 4H), b (1, 4H)), ...] per layer.
    Returns (hn, cn): (L, B_pad, H) f32 each."""
    T, Bp, D = x.shape
    L, _, H = h0.shape
    assert Bp % 8 == 0, "batch must be padded to a multiple of 8 sublanes"
    Bt = batch_block if batch_block is not None else _pick_batch_block(Bp)
    n_bt = Bp // Bt

    in_specs = [
        pl.BlockSpec((T, Bt, D), lambda i: (0, i, 0)),
        pl.BlockSpec((L, Bt, H), lambda i: (0, i, 0)),
        pl.BlockSpec((L, Bt, H), lambda i: (0, i, 0)),
    ]
    flat_w = []
    for (wih_t, whh_t, b) in params:
        d_in = wih_t.shape[0]
        # Weight block indices never change -> fetched once, stay resident.
        # TODO(synk): at production hidden_dim on v7x, single-buffer these
        # (pipeline_mode=pl.Buffered(1)) and cap vmem_limit_bytes.
        in_specs += [
            pl.BlockSpec((d_in, 4 * H), lambda i: (0, 0)),
            pl.BlockSpec((H, 4 * H), lambda i: (0, 0)),
            pl.BlockSpec((1, 4 * H), lambda i: (0, 0)),
        ]
        flat_w += [wih_t, whh_t, b]

    out_specs = [
        pl.BlockSpec((L, Bt, H), lambda i: (0, i, 0)),
        pl.BlockSpec((L, Bt, H), lambda i: (0, i, 0)),
    ]
    out_shapes = (
        jax.ShapeDtypeStruct((L, Bp, H), jnp.float32),
        jax.ShapeDtypeStruct((L, Bp, H), jnp.float32),
    )
    scratch_shapes = [
        pltpu.VMEM((T * Bt, D), jnp.float32),       # staged layer-0 input
        pltpu.VMEM((T * Bt, 4 * H), jnp.float32),   # hoisted X @ W_ih + b
        pltpu.VMEM((T * Bt, H), jnp.float32),       # inter-layer sequence
        pltpu.VMEM((Bt, H), jnp.float32),           # h state
        pltpu.VMEM((Bt, H), jnp.float32),           # c state
    ]

    grid_spec = pltpu.PrefetchScalarGridSpec(
        num_scalar_prefetch=0,
        grid=(n_bt,),
        in_specs=in_specs,
        out_specs=out_specs,
        scratch_shapes=scratch_shapes,
    )

    kernel = functools.partial(_lstm_fused_kernel, L, H, T, Bt)

    return pl.pallas_call(
        kernel,
        out_shape=out_shapes,
        grid_spec=grid_spec,
        # Reuse the state buffers across the stateful rollout loop.
        input_output_aliases={1: 0, 2: 1},
        compiler_params=pltpu.CompilerParams(
            # Batch tiles are independent -> v7x megacore can split them;
            # the serial time recurrence lives entirely inside the body.
            dimension_semantics=("parallel",)),
    )(x, h0, c0, *flat_w)


# ----------------------------------------------------------------------------
# Module-like wrapper (mirrors LSTM.forward / reset with stateful h_0, c_0)
# ----------------------------------------------------------------------------
class LSTMPallas:
    def __init__(self, input_size, hidden_dim, hist_num, num_env, layer_num,
                 key, param_dtype=jnp.float32):
        self.input_size = input_size          # == input_dim / hist_num
        self.hidden_dim = hidden_dim
        self.hist_num = hist_num
        self.num_env = num_env
        self.layer_num = layer_num
        self.h_0 = None
        self.c_0 = None

        # nn.LSTM init: uniform(-1/sqrt(H), 1/sqrt(H)); pre-transpose to
        # (d_in, 4H)/(H, 4H), fold b_ih + b_hh; PyTorch gate order i, f, g, o.
        k = 1.0 / math.sqrt(hidden_dim)
        self.params = []
        for layer in range(layer_num):
            d_in = input_size if layer == 0 else hidden_dim
            key, k1, k2, k3, k4 = jax.random.split(key, 5)
            w_ih = jax.random.uniform(k1, (4 * hidden_dim, d_in),
                                      jnp.float32, -k, k)
            w_hh = jax.random.uniform(k2, (4 * hidden_dim, hidden_dim),
                                      jnp.float32, -k, k)
            b_ih = jax.random.uniform(k3, (4 * hidden_dim,), jnp.float32, -k, k)
            b_hh = jax.random.uniform(k4, (4 * hidden_dim,), jnp.float32, -k, k)
            self.params.append((w_ih.T.astype(param_dtype),
                                w_hh.T.astype(param_dtype),
                                (b_ih + b_hh)[None, :].astype(jnp.float32)))

    def reset(self):
        self.h_0 = None
        self.c_0 = None

    def forward(self, obs):
        T, B = self.hist_num, self.num_env
        D, H, L = self.input_size, self.hidden_dim, self.layer_num
        # Same reshape as the torch module: obs -> (hist_num, num_env, D).
        x = jnp.asarray(obs, jnp.float32).reshape(T, B, D)
        Bp = _round_up(B, 8)                  # pad batch to 8 sublanes
        if Bp != B:
            x = jnp.pad(x, ((0, 0), (0, Bp - B), (0, 0)))
        if self.h_0 is None:
            h0 = jnp.zeros((L, Bp, H), jnp.float32)
            c0 = jnp.zeros((L, Bp, H), jnp.float32)
        else:
            h0, c0 = self.h_0, self.c_0
        hn, cn = lstm_fused_forward(x, h0, c0, self.params)
        self.h_0, self.c_0 = hn, cn           # padded state kept internally
        # outputs[-1, :, :] of the top layer == h_n of the top layer.
        return hn[L - 1, :B, :]

    # TODO(synk): forward_update (per-minibatch reset + re-chunk loop) is
    # plain host-side reshaping around the same fused kernel; not ported here.


# ----------------------------------------------------------------------------
# Pure-JAX reference (lax.scan) with carried state for the correctness check
# ----------------------------------------------------------------------------
def _ref_lstm_forward(x, params, hidden_dim, state=None):
    T, B, _ = x.shape
    L = len(params)
    H = hidden_dim
    if state is None:
        hs = [jnp.zeros((B, H), jnp.float32) for _ in range(L)]
        cs = [jnp.zeros((B, H), jnp.float32) for _ in range(L)]
    else:
        hs, cs = state
    new_h, new_c = [], []
    for l, (wih_t, whh_t, b) in enumerate(params):
        wih_t = wih_t.astype(jnp.float32)
        whh_t = whh_t.astype(jnp.float32)

        def step(carry, xt, wih_t=wih_t, whh_t=whh_t, b=b):
            h, c = carry
            gates = xt @ wih_t + h @ whh_t + b[0]
            i = jax.nn.sigmoid(gates[:, 0 * H:1 * H])
            f = jax.nn.sigmoid(gates[:, 1 * H:2 * H])
            g = jnp.tanh(gates[:, 2 * H:3 * H])
            o = jax.nn.sigmoid(gates[:, 3 * H:4 * H])
            c_new = f * c + i * g
            h_new = o * jnp.tanh(c_new)
            return (h_new, c_new), h_new

        (h_f, c_f), ys = lax.scan(step, (hs[l], cs[l]), x)
        new_h.append(h_f)
        new_c.append(c_f)
        x = ys
    return x[-1], (new_h, new_c)


if __name__ == "__main__":
    # Small shapes consistent with the module's forward():
    # obs -> reshape(hist_num, num_env, input_dim / hist_num)
    input_size = 16     # input_dim / hist_num (nn.LSTM input_size)
    hidden_dim = 32
    hist_num = 8        # sequence length T
    num_env = 4         # batch (padded to 8 sublanes inside the wrapper)
    layer_num = 2

    key = jax.random.PRNGKey(0)
    key, o1_key, o2_key, param_key = jax.random.split(key, 4)

    model = LSTMPallas(input_size, hidden_dim, hist_num, num_env, layer_num,
                       param_key)

    obs1 = jax.random.normal(o1_key, (num_env, hist_num * input_size),
                             jnp.float32)
    obs2 = jax.random.normal(o2_key, (num_env, hist_num * input_size),
                             jnp.float32)

    out1 = model.forward(obs1)            # fresh state (h_0 = c_0 = None)
    out2 = model.forward(obs2)            # carried (h_0, c_0) state
    out2 = jax.block_until_ready(out2)
    assert out1.shape == (num_env, hidden_dim)
    assert out2.shape == (num_env, hidden_dim)

    ref1, st = _ref_lstm_forward(obs1.reshape(hist_num, num_env, input_size),
                                 model.params, hidden_dim, None)
    ref2, st = _ref_lstm_forward(obs2.reshape(hist_num, num_env, input_size),
                                 model.params, hidden_dim, st)
    assert jnp.allclose(out1, ref1, atol=1e-4, rtol=1e-4), \
        float(jnp.max(jnp.abs(out1 - ref1)))
    assert jnp.allclose(out2, ref2, atol=1e-4, rtol=1e-4), \
        float(jnp.max(jnp.abs(out2 - ref2)))

    print("KERNEL_OK")
</pallas_src>

<mosaic_0001>
module attributes {stable_mosaic.version = 11 : i64} {
  func.func @_lstm_fused_kernel(%arg0: i32, %arg1: memref<8x8x16xf32, #tpu.memory_space<vmem>>, %arg2: memref<2x8x32xf32, #tpu.memory_space<vmem>>, %arg3: memref<2x8x32xf32, #tpu.memory_space<vmem>>, %arg4: memref<16x128xf32, #tpu.memory_space<vmem>>, %arg5: memref<32x128xf32, #tpu.memory_space<vmem>>, %arg6: memref<1x128xf32, #tpu.memory_space<vmem>>, %arg7: memref<32x128xf32, #tpu.memory_space<vmem>>, %arg8: memref<32x128xf32, #tpu.memory_space<vmem>>, %arg9: memref<1x128xf32, #tpu.memory_space<vmem>>, %arg10: memref<2x8x32xf32, #tpu.memory_space<vmem>>, %arg11: memref<2x8x32xf32, #tpu.memory_space<vmem>>, %arg12: memref<64x16xf32, #tpu.memory_space<vmem>>, %arg13: memref<64x128xf32, #tpu.memory_space<vmem>>, %arg14: memref<64x32xf32, #tpu.memory_space<vmem>>, %arg15: memref<8x32xf32, #tpu.memory_space<vmem>>, %arg16: memref<8x32xf32, #tpu.memory_space<vmem>>) attributes {dimension_semantics = [#tpu.dimension_semantics<parallel>], iteration_bounds = array<i64: 1>, scalar_prefetch = 0 : i64, scratch_operands = 5 : i64, tpu.core_type = #tpu.core_type<tc>, window_params = [{transform_indices = @transform_0, window_bounds = array<i64: 8, 8, 16>}, {transform_indices = @transform_1, window_bounds = array<i64: 2, 8, 32>}, {transform_indices = @transform_2, window_bounds = array<i64: 2, 8, 32>}, {pipeline_mode = #tpu.pipeline_mode<synchronous>, transform_indices = @transform_3, window_bounds = array<i64: 16, 128>}, {pipeline_mode = #tpu.pipeline_mode<synchronous>, transform_indices = @transform_4, window_bounds = array<i64: 32, 128>}, {pipeline_mode = #tpu.pipeline_mode<synchronous>, transform_indices = @transform_5, window_bounds = array<i64: 1, 128>}, {pipeline_mode = #tpu.pipeline_mode<synchronous>, transform_indices = @transform_6, window_bounds = array<i64: 32, 128>}, {pipeline_mode = #tpu.pipeline_mode<synchronous>, transform_indices = @transform_7, window_bounds = array<i64: 32, 128>}, {pipeline_mode = #tpu.pipeline_mode<synchronous>, transform_indices = @transform_8, window_bounds = array<i64: 1, 128>}, {transform_indices = @transform_9, window_bounds = array<i64: 2, 8, 32>}, {transform_indices = @transform_10, window_bounds = array<i64: 2, 8, 32>}]} {
    %c0 = arith.constant 0 : index
    %c0_0 = arith.constant 0 : index
    %c0_1 = arith.constant 0 : index
    %0 = vector.load %arg1[%c0, %c0_0, %c0_1] : memref<8x8x16xf32, #tpu.memory_space<vmem>>, vector<1x8x16xf32>
    %1 = vector.shape_cast %0 : vector<1x8x16xf32> to vector<8x16xf32>
    %c0_2 = arith.constant 0 : index
    %c0_3 = arith.constant 0 : index
    %2 = vector.load %arg12[%c0_2, %c0_3] : memref<64x16xf32, #tpu.memory_space<vmem>>, vector<8x16xf32>
    tpu.vector_store %arg12[%c0_2, %c0_3], %1 {strides = array<i32>} : memref<64x16xf32, #tpu.memory_space<vmem>>, vector<8x16xf32>,
    %c1 = arith.constant 1 : index
    %c0_4 = arith.constant 0 : index
    %c0_5 = arith.constant 0 : index
    %3 = vector.load %arg1[%c1, %c0_4, %c0_5] : memref<8x8x16xf32, #tpu.memory_space<vmem>>, vector<1x8x16xf32>
    %4 = vector.shape_cast %3 : vector<1x8x16xf32> to vector<8x16xf32>
    %c8 = arith.constant 8 : index
    %c0_6 = arith.constant 0 : index
    %5 = vector.load %arg12[%c8, %c0_6] : memref<64x16xf32, #tpu.memory_space<vmem>>, vector<8x16xf32>
    tpu.vector_store %arg12[%c8, %c0_6], %4 {strides = array<i32>} : memref<64x16xf32, #tpu.memory_space<vmem>>, vector<8x16xf32>,
    %c2 = arith.constant 2 : index
    %c0_7 = arith.constant 0 : index
    %c0_8 = arith.constant 0 : index
    %6 = vector.load %arg1[%c2, %c0_7, %c0_8] : memref<8x8x16xf32, #tpu.memory_space<vmem>>, vector<1x8x16xf32>
    %7 = vector.shape_cast %6 : vector<1x8x16xf32> to vector<8x16xf32>
    %c16 = arith.constant 16 : index
    %c0_9 = arith.constant 0 : index
    %8 = vector.load %arg12[%c16, %c0_9] : memref<64x16xf32, #tpu.memory_space<vmem>>, vector<8x16xf32>
    tpu.vector_store %arg12[%c16, %c0_9], %7 {strides = array<i32>} : memref<64x16xf32, #tpu.memory_space<vmem>>, vector<8x16xf32>,
    %c3 = arith.constant 3 : index
    %c0_10 = arith.constant 0 : index
    %c0_11 = arith.constant 0 : index
    %9 = vector.load %arg1[%c3, %c0_10, %c0_11] : memref<8x8x16xf32, #tpu.memory_space<vmem>>, vector<1x8x16xf32>
    %10 = vector.shape_cast %9 : vector<1x8x16xf32> to vector<8x16xf32>
    %c24 = arith.constant 24 : index
    %c0_12 = arith.constant 0 : index
    %11 = vector.load %arg12[%c24, %c0_12] : memref<64x16xf32, #tpu.memory_space<vmem>>, vector<8x16xf32>
    tpu.vector_store %arg12[%c24, %c0_12], %10 {strides = array<i32>} : memref<64x16xf32, #tpu.memory_space<vmem>>, vector<8x16xf32>,
    %c4 = arith.constant 4 : index
    %c0_13 = arith.constant 0 : index
    %c0_14 = arith.constant 0 : index
    %12 = vector.load %arg1[%c4, %c0_13, %c0_14] : memref<8x8x16xf32, #tpu.memory_space<vmem>>, vector<1x8x16xf32>
    %13 = vector.shape_cast %12 : vector<1x8x16xf32> to vector<8x16xf32>
    %c32 = arith.constant 32 : index
    %c0_15 = arith.constant 0 : index
    %14 = vector.load %arg12[%c32, %c0_15] : memref<64x16xf32, #tpu.memory_space<vmem>>, vector<8x16xf32>
    tpu.vector_store %arg12[%c32, %c0_15], %13 {strides = array<i32>} : memref<64x16xf32, #tpu.memory_space<vmem>>, vector<8x16xf32>,
    %c5 = arith.constant 5 : index
    %c0_16 = arith.constant 0 : index
    %c0_17 = arith.constant 0 : index
    %15 = vector.load %arg1[%c5, %c0_16, %c0_17] : memref<8x8x16xf32, #tpu.memory_space<vmem>>, vector<1x8x16xf32>
    %16 = vector.shape_cast %15 : vector<1x8x16xf32> to vector<8x16xf32>
    %c40 = arith.constant 40 : index
    %c0_18 = arith.constant 0 : index
    %17 = vector.load %arg12[%c40, %c0_18] : memref<64x16xf32, #tpu.memory_space<vmem>>, vector<8x16xf32>
    tpu.vector_store %arg12[%c40, %c0_18], %16 {strides = array<i32>} : memref<64x16xf32, #tpu.memory_space<vmem>>, vector<8x16xf32>,
    %c6 = arith.constant 6 : index
    %c0_19 = arith.constant 0 : index
    %c0_20 = arith.constant 0 : index
    %18 = vector.load %arg1[%c6, %c0_19, %c0_20] : memref<8x8x16xf32, #tpu.memory_space<vmem>>, vector<1x8x16xf32>
    %19 = vector.shape_cast %18 : vector<1x8x16xf32> to vector<8x16xf32>
    %c48 = arith.constant 48 : index
    %c0_21 = arith.constant 0 : index
    %20 = vector.load %arg12[%c48, %c0_21] : memref<64x16xf32, #tpu.memory_space<vmem>>, vector<8x16xf32>
    tpu.vector_store %arg12[%c48, %c0_21], %19 {strides = array<i32>} : memref<64x16xf32, #tpu.memory_space<vmem>>, vector<8x16xf32>,
    %c7 = arith.constant 7 : index
    %c0_22 = arith.constant 0 : index
    %c0_23 = arith.constant 0 : index
    %21 = vector.load %arg1[%c7, %c0_22, %c0_23] : memref<8x8x16xf32, #tpu.memory_space<vmem>>, vector<1x8x16xf32>
    %22 = vector.shape_cast %21 : vector<1x8x16xf32> to vector<8x16xf32>
    %c56 = arith.constant 56 : index
    %c0_24 = arith.constant 0 : index
    %23 = vector.load %arg12[%c56, %c0_24] : memref<64x16xf32, #tpu.memory_space<vmem>>, vector<8x16xf32>
    tpu.vector_store %arg12[%c56, %c0_24], %22 {strides = array<i32>} : memref<64x16xf32, #tpu.memory_space<vmem>>, vector<8x16xf32>,
    %c0_25 = arith.constant 0 : index
    %c0_26 = arith.constant 0 : index
    %24 = vector.load %arg12[%c0_25, %c0_26] : memref<64x16xf32, #tpu.memory_space<vmem>>, vector<64x16xf32>
    %c0_27 = arith.constant 0 : index
    %c0_28 = arith.constant 0 : index
    %25 = vector.load %arg4[%c0_27, %c0_28] : memref<16x128xf32, #tpu.memory_space<vmem>>, vector<16x128xf32>
    %cst = arith.constant dense<0.000000e+00> : vector<64x128xf32>
    %26 = tpu.matmul %24, %25, %cst {dimension_numbers = #tpu.dot_dimension_numbers<[1], [0], [0], [1], [0, 0, 1, 1], [], []>} : vector<64x16xf32>, vector<16x128xf32>, vector<64x128xf32> -> vector<64x128xf32>
    %c0_29 = arith.constant 0 : index
    %c0_30 = arith.constant 0 : index
    %27 = vector.load %arg6[%c0_29, %c0_30] : memref<1x128xf32, #tpu.memory_space<vmem>>, vector<1x128xf32>
    %28 = vector.broadcast %27 : vector<1x128xf32> to vector<64x128xf32>
    %29 = arith.addf %26, %28 : vector<64x128xf32>
    %c0_31 = arith.constant 0 : index
    %c0_32 = arith.constant 0 : index
    %30 = vector.load %arg13[%c0_31, %c0_32] : memref<64x128xf32, #tpu.memory_space<vmem>>, vector<64x128xf32>
    tpu.vector_store %arg13[%c0_31, %c0_32], %29 {strides = array<i32>} : memref<64x128xf32, #tpu.memory_space<vmem>>, vector<64x128xf32>,
    %c0_33 = arith.constant 0 : index
    %c0_34 = arith.constant 0 : index
    %c0_35 = arith.constant 0 : index
    %31 = vector.load %arg2[%c0_33, %c0_34, %c0_35] : memref<2x8x32xf32, #tpu.memory_space<vmem>>, vector<1x8x32xf32>
    %32 = vector.shape_cast %31 : vector<1x8x32xf32> to vector<8x32xf32>
    %c0_36 = arith.constant 0 : index
    %c0_37 = arith.constant 0 : index
    %33 = vector.load %arg15[%c0_36, %c0_37] : memref<8x32xf32, #tpu.memory_space<vmem>>, vector<8x32xf32>
    tpu.vector_store %arg15[%c0_36, %c0_37], %32 {strides = array<i32>} : memref<8x32xf32, #tpu.memory_space<vmem>>, vector<8x32xf32>,
    %c0_38 = arith.constant 0 : index
    %c0_39 = arith.constant 0 : index
    %c0_40 = arith.constant 0 : index
    %34 = vector.load %arg3[%c0_38, %c0_39, %c0_40] : memref<2x8x32xf32, #tpu.memory_space<vmem>>, vector<1x8x32xf32>
    %35 = vector.shape_cast %34 : vector<1x8x32xf32> to vector<8x32xf32>
    %c0_41 = arith.constant 0 : index
    %c0_42 = arith.constant 0 : index
    %36 = vector.load %arg16[%c0_41, %c0_42] : memref<8x32xf32, #tpu.memory_space<vmem>>, vector<8x32xf32>
    tpu.vector_store %arg16[%c0_41, %c0_42], %35 {strides = array<i32>} : memref<8x32xf32, #tpu.memory_space<vmem>>, vector<8x32xf32>,
    %c0_43 = arith.constant 0 : index
    %c0_44 = arith.constant 0 : index
    %37 = vector.load %arg5[%c0_43, %c0_44] : memref<32x128xf32, #tpu.memory_space<vmem>>, vector<32x128xf32>
    %c0_i32 = arith.constant 0 : i32
    %c8_i32 = arith.constant 8 : i32
    %38 = arith.muli %c0_i32, %c8_i32 : i32
    %39 = tpu.assume_multiple %38, 8 : i32
    %c0_45 = arith.constant 0 : index
    %c0_46 = arith.constant 0 : index
    %40 = vector.load %arg15[%c0_45, %c0_46] : memref<8x32xf32, #tpu.memory_space<vmem>>, vector<8x32xf32>
    %c0_47 = arith.constant 0 : index
    %c0_48 = arith.constant 0 : index
    %41 = vector.load %arg16[%c0_47, %c0_48] : memref<8x32xf32, #tpu.memory_space<vmem>>, vector<8x32xf32>
    %42 = arith.index_cast %39 : i32 to index
    %c0_49 = arith.constant 0 : index
    %43 = vector.load %arg13[%42, %c0_49] : memref<64x128xf32, #tpu.memory_space<vmem>>, vector<8x128xf32>
    %cst_50 = arith.constant dense<0.000000e+00> : vector<8x128xf32>
    %44 = tpu.matmul %40, %37, %cst_50 {dimension_numbers = #tpu.dot_dimension_numbers<[1], [0], [0], [1], [0, 0, 1, 1], [], []>} : vector<8x32xf32>, vector<32x128xf32>, vector<8x128xf32> -> vector<8x128xf32>
    %45 = arith.addf %43, %44 : vector<8x128xf32>
    %46 = vector.extract_strided_slice %45 {offsets = [0, 0], sizes = [8, 32], strides = [1, 1]} : vector<8x128xf32> to vector<8x32xf32>
    %47 = arith.negf %46 : vector<8x32xf32>
    %48 = math.exp %47 : vector<8x32xf32>
    %cst_51 = arith.constant 1.000000e+00 : f32
    %49 = vector.broadcast %cst_51 : f32 to vector<8x32xf32>
    %50 = arith.addf %49, %48 : vector<8x32xf32>
    %51 = arith.divf %49, %50 : vector<8x32xf32>
    %52 = vector.extract_strided_slice %45 {offsets = [0, 32], sizes = [8, 32], strides = [1, 1]} : vector<8x128xf32> to vector<8x32xf32>
    %53 = arith.negf %52 : vector<8x32xf32>
    %54 = math.exp %53 : vector<8x32xf32>
    %cst_52 = arith.constant 1.000000e+00 : f32
    %55 = vector.broadcast %cst_52 : f32 to vector<8x32xf32>
    %56 = arith.addf %55, %54 : vector<8x32xf32>
    %57 = arith.divf %55, %56 : vector<8x32xf32>
    %58 = vector.extract_strided_slice %45 {offsets = [0, 64], sizes = [8, 32], strides = [1, 1]} : vector<8x128xf32> to vector<8x32xf32>
    %59 = math.tanh %58 : vector<8x32xf32>
    %60 = vector.extract_strided_slice %45 {offsets = [0, 96], sizes = [8, 32], strides = [1, 1]} : vector<8x128xf32> to vector<8x32xf32>
    %61 = arith.negf %60 : vector<8x32xf32>
    %62 = math.exp %61 : vector<8x32xf32>
    %cst_53 = arith.constant 1.000000e+00 : f32
    %63 = vector.broadcast %cst_53 : f32 to vector<8x32xf32>
    %64 = arith.addf %63, %62 : vector<8x32xf32>
    %65 = arith.divf %63, %64 : vector<8x32xf32>
    %66 = arith.mulf %57, %41 : vector<8x32xf32>
    %67 = arith.mulf %51, %59 : vector<8x32xf32>
    %68 = arith.addf %66, %67 : vector<8x32xf32>
    %69 = math.tanh %68 : vector<8x32xf32>
    %70 = arith.mulf %65, %69 : vector<8x32xf32>
    %c0_54 = arith.constant 0 : index
    %c0_55 = arith.constant 0 : index
    %71 = vector.load %arg15[%c0_54, %c0_55] : memref<8x32xf32, #tpu.memory_space<vmem>>, vector<8x32xf32>
    tpu.vector_store %arg15[%c0_54, %c0_55], %70 {strides = array<i32>} : memref<8x32xf32, #tpu.memory_space<vmem>>, vector<8x32xf32>,
    %c0_56 = arith.constant 0 : index
    %c0_57 = arith.constant 0 : index
    %72 = vector.load %arg16[%c0_56, %c0_57] : memref<8x32xf32, #tpu.memory_space<vmem>>, vector<8x32xf32>
    tpu.vector_store %arg16[%c0_56, %c0_57], %68 {strides = array<i32>} : memref<8x32xf32, #tpu.memory_space<vmem>>, vector<8x32xf32>,
    %73 = arith.index_cast %39 : i32 to index
    %c0_58 = arith.constant 0 : index
    %74 = vector.load %arg14[%73, %c0_58] : memref<64x32xf32, #tpu.memory_space<vmem>>, vector<8x32xf32>
    tpu.vector_store %arg14[%73, %c0_58], %70 {strides = array<i32>} : memref<64x32xf32, #tpu.memory_space<vmem>>, vector<8x32xf32>,
    %c1_i32 = arith.constant 1 : i32
    %c8_i32_59 = arith.constant 8 : i32
    %75 = arith.muli %c1_i32, %c8_i32_59 : i32
    %76 = tpu.assume_multiple %75, 8 : i32
    %c0_60 = arith.constant 0 : index
    %c0_61 = arith.constant 0 : index
    %77 = vector.load %arg15[%c0_60, %c0_61] : memref<8x32xf32, #tpu.memory_space<vmem>>, vector<8x32xf32>
    %c0_62 = arith.constant 0 : index
    %c0_63 = arith.constant 0 : index
    %78 = vector.load %arg16[%c0_62, %c0_63] : memref<8x32xf32, #tpu.memory_space<vmem>>, vector<8x32xf32>
    %79 = arith.index_cast %76 : i32 to index
    %c0_64 = arith.constant 0 : index
    %80 = vector.load %arg13[%79, %c0_64] : memref<64x128xf32, #tpu.memory_space<vmem>>, vector<8x128xf32>
    %cst_65 = arith.constant dense<0.000000e+00> : vector<8x128xf32>
    %81 = tpu.matmul %77, %37, %cst_65 {dimension_numbers = #tpu.dot_dimension_numbers<[1], [0], [0], [1], [0, 0, 1, 1], [], []>} : vector<8x32xf32>, vector<32x128xf32>, vector<8x128xf32> -> vector<8x128xf32>
    %82 = arith.addf %80, %81 : vector<8x128xf32>
    %83 = vector.extract_strided_slice %82 {offsets = [0, 0], sizes = [8, 32], strides = [1, 1]} : vector<8x128xf32> to vector<8x32xf32>
    %84 = arith.negf %83 : vector<8x32xf32>
    %85 = math.exp %84 : vector<8x32xf32>
    %cst_66 = arith.constant 1.000000e+00 : f32
    %86 = vector.broadcast %cst_66 : f32 to vector<8x32xf32>
    %87 = arith.addf %86, %85 : vector<8x32xf32>
    %88 = arith.divf %86, %87 : vector<8x32xf32>
    %89 = vector.extract_strided_slice %82 {offsets = [0, 32], sizes = [8, 32], strides = [1, 1]} : vector<8x128xf32> to vector<8x32xf32>
    %90 = arith.negf %89 : vector<8x32xf32>
    %91 = math.exp %90 : vector<8x32xf32>
    %cst_67 = arith.constant 1.000000e+00 : f32
    %92 = vector.broadcast %cst_67 : f32 to vector<8x32xf32>
    %93 = arith.addf %92, %91 : vector<8x32xf32>
    %94 = arith.divf %92, %93 : vector<8x32xf32>
    %95 = vector.extract_strided_slice %82 {offsets = [0, 64], sizes = [8, 32], strides = [1, 1]} : vector<8x128xf32> to vector<8x32xf32>
    %96 = math.tanh %95 : vector<8x32xf32>
    %97 = vector.extract_strided_slice %82 {offsets = [0, 96], sizes = [8, 32], strides = [1, 1]} : vector<8x128xf32> to vector<8x32xf32>
    %98 = arith.negf %97 : vector<8x32xf32>
    %99 = math.exp %98 : vector<8x32xf32>
    %cst_68 = arith.constant 1.000000e+00 : f32
    %100 = vector.broadcast %cst_68 : f32 to vector<8x32xf32>
    %101 = arith.addf %100, %99 : vector<8x32xf32>
    %102 = arith.divf %100, %101 : vector<8x32xf32>
    %103 = arith.mulf %94, %78 : vector<8x32xf32>
    %104 = arith.mulf %88, %96 : vector<8x32xf32>
    %105 = arith.addf %103, %104 : vector<8x32xf32>
    %106 = math.tanh %105 : vector<8x32xf32>
    %107 = arith.mulf %102, %106 : vector<8x32xf32>
    %c0_69 = arith.constant 0 : index
    %c0_70 = arith.constant 0 : index
    %108 = vector.load %arg15[%c0_69, %c0_70] : memref<8x32xf32, #tpu.memory_space<vmem>>, vector<8x32xf32>
    tpu.vector_store %arg15[%c0_69, %c0_70], %107 {strides = array<i32>} : memref<8x32xf32, #tpu.memory_space<vmem>>, vector<8x32xf32>,
    %c0_71 = arith.constant 0 : index
    %c0_72 = arith.constant 0 : index
    %109 = vector.load %arg16[%c0_71, %c0_72] : memref<8x32xf32, #tpu.memory_space<vmem>>, vector<8x32xf32>
    tpu.vector_store %arg16[%c0_71, %c0_72], %105 {strides = array<i32>} : memref<8x32xf32, #tpu.memory_space<vmem>>, vector<8x32xf32>,
    %110 = arith.index_cast %76 : i32 to index
    %c0_73 = arith.constant 0 : index
    %111 = vector.load %arg14[%110, %c0_73] : memref<64x32xf32, #tpu.memory_space<vmem>>, vector<8x32xf32>
    tpu.vector_store %arg14[%110, %c0_73], %107 {strides = array<i32>} : memref<64x32xf32, #tpu.memory_space<vmem>>, vector<8x32xf32>,
    %c2_i32 = arith.constant 2 : i32
    %c8_i32_74 = arith.constant 8 : i32
    %112 = arith.muli %c2_i32, %c8_i32_74 : i32
    %113 = tpu.assume_multiple %112, 8 : i32
    %c0_75 = arith.constant 0 : index
    %c0_76 = arith.constant 0 : index
    %114 = vector.load %arg15[%c0_75, %c0_76] : memref<8x32xf32, #tpu.memory_space<vmem>>, vector<8x32xf32>
    %c0_77 = arith.constant 0 : index
    %c0_78 = arith.constant 0 : index
    %115 = vector.load %arg16[%c0_77, %c0_78] : memref<8x32xf32, #tpu.memory_space<vmem>>, vector<8x32xf32>
    %116 = arith.index_cast %113 : i32 to index
    %c0_79 = arith.constant 0 : index
    %117 = vector.load %arg13[%116, %c0_79] : memref<64x128xf32, #tpu.memory_space<vmem>>, vector<8x128xf32>
    %cst_80 = arith.constant dense<0.000000e+00> : vector<8x128xf32>
    %118 = tpu.matmul %114, %37, %cst_80 {dimension_numbers = #tpu.dot_dimension_numbers<[1], [0], [0], [1], [0, 0, 1, 1], [], []>} : vector<8x32xf32>, vector<32x128xf32>, vector<8x128xf32> -> vector<8x128xf32>
    %119 = arith.addf %117, %118 : vector<8x128xf32>
    %120 = vector.extract_strided_slice %119 {offsets = [0, 0], sizes = [8, 32], strides = [1, 1]} : vector<8x128xf32> to vector<8x32xf32>
    %121 = arith.negf %120 : vector<8x32xf32>
    %122 = math.exp %121 : vector<8x32xf32>
    %cst_81 = arith.constant 1.000000e+00 : f32
    %123 = vector.broadcast %cst_81 : f32 to vector<8x32xf32>
    %124 = arith.addf %123, %122 : vector<8x32xf32>
    %125 = arith.divf %123, %124 : vector<8x32xf32>
    %126 = vector.extract_strided_slice %119 {offsets = [0, 32], sizes = [8, 32], strides = [1, 1]} : vector<8x128xf32> to vector<8x32xf32>
    %127 = arith.negf %126 : vector<8x32xf32>
    %128 = math.exp %127 : vector<8x32xf32>
    %cst_82 = arith.constant 1.000000e+00 : f32
    %129 = vector.broadcast %cst_82 : f32 to vector<8x32xf32>
    %130 = arith.addf %129, %128 : vector<8x32xf32>
    %131 = arith.divf %129, %130 : vector<8x32xf32>
    %132 = vector.extract_strided_slice %119 {offsets = [0, 64], sizes = [8, 32], strides = [1, 1]} : vector<8x128xf32> to vector<8x32xf32>
    %133 = math.tanh %132 : vector<8x32xf32>
    %134 = vector.extract_strided_slice %119 {offsets = [0, 96], sizes = [8, 32], strides = [1, 1]} : vector<8x128xf32> to vector<8x32xf32>
    %135 = arith.negf %134 : vector<8x32xf32>
    %136 = math.exp %135 : vector<8x32xf32>
    %cst_83 = arith.constant 1.000000e+00 : f32
    %137 = vector.broadcast %cst_83 : f32 to vector<8x32xf32>
    %138 = arith.addf %137, %136 : vector<8x32xf32>
    %139 = arith.divf %137, %138 : vector<8x32xf32>
    %140 = arith.mulf %131, %115 : vector<8x32xf32>
    %141 = arith.mulf %125, %133 : vector<8x32xf32>
    %142 = arith.addf %140, %141 : vector<8x32xf32>
    %143 = math.tanh %142 : vector<8x32xf32>
    %144 = arith.mulf %139, %143 : vector<8x32xf32>
    %c0_84 = arith.constant 0 : index
    %c0_85 = arith.constant 0 : index
    %145 = vector.load %arg15[%c0_84, %c0_85] : memref<8x32xf32, #tpu.memory_space<vmem>>, vector<8x32xf32>
    tpu.vector_store %arg15[%c0_84, %c0_85], %144 {strides = array<i32>} : memref<8x32xf32, #tpu.memory_space<vmem>>, vector<8x32xf32>,
    %c0_86 = arith.constant 0 : index
    %c0_87 = arith.constant 0 : index
    %146 = vector.load %arg16[%c0_86, %c0_87] : memref<8x32xf32, #tpu.memory_space<vmem>>, vector<8x32xf32>
    tpu.vector_store %arg16[%c0_86, %c0_87], %142 {strides = array<i32>} : memref<8x32xf32, #tpu.memory_space<vmem>>, vector<8x32xf32>,
    %147 = arith.index_cast %113 : i32 to index
    %c0_88 = arith.constant 0 : index
    %148 = vector.load %arg14[%147, %c0_88] : memref<64x32xf32, #tpu.memory_space<vmem>>, vector<8x32xf32>
    tpu.vector_store %arg14[%147, %c0_88], %144 {strides = array<i32>} : memref<64x32xf32, #tpu.memory_space<vmem>>, vector<8x32xf32>,
    %c3_i32 = arith.constant 3 : i32
    %c8_i32_89 = arith.constant 8 : i32
    %149 = arith.muli %c3_i32, %c8_i32_89 : i32
    %150 = tpu.assume_multiple %149, 8 : i32
    %c0_90 = arith.constant 0 : index
    %c0_91 = arith.constant 0 : index
    %151 = vector.load %arg15[%c0_90, %c0_91] : memref<8x32xf32, #tpu.memory_space<vmem>>, vector<8x32xf32>
    %c0_92 = arith.constant 0 : index
    %c0_93 = arith.constant 0 : index
    %152 = vector.load %arg16[%c0_92, %c0_93] : memref<8x32xf32, #tpu.memory_space<vmem>>, vector<8x32xf32>
    %153 = arith.index_cast %150 : i32 to index
    %c0_94 = arith.constant 0 : index
    %154 = vector.load %arg13[%153, %c0_94] : memref<64x128xf32, #tpu.memory_space<vmem>>, vector<8x128xf32>
    %cst_95 = arith.constant dense<0.000000e+00> : vector<8x128xf32>
    %155 = tpu.matmul %151, %37, %cst_95 {dimension_numbers = #tpu.dot_dimension_numbers<[1], [0], [0], [1], [0, 0, 1, 1], [], []>} : vector<8x32xf32>, vector<32x128xf32>, vector<8x128xf32> -> vector<8x128xf32>
    %156 = arith.addf %154, %155 : vector<8x128xf32>
    %157 = vector.extract_strided_slice %156 {offsets = [0, 0], sizes = [8, 32], strides = [1, 1]} : vector<8x128xf32> to vector<8x32xf32>
    %158 = arith.negf %157 : vector<8x32xf32>
    %159 = math.exp %158 : vector<8x32xf32>
    %cst_96 = arith.constant 1.000000e+00 : f32
    %160 = vector.broadcast %cst_96 : f32 to vector<8x32xf32>
    %161 = arith.addf %160, %159 : vector<8x32xf32>
    %162 = arith.divf %160, %161 : vector<8x32xf32>
    %163 = vector.extract_strided_slice %156 {offsets = [0, 32], sizes = [8, 32], strides = [1, 1]} : vector<8x128xf32> to vector<8x32xf32>
    %164 = arith.negf %163 : vector<8x32xf32>
    %165 = math.exp %164 : vector<8x32xf32>
    %cst_97 = arith.constant 1.000000e+00 : f32
    %166 = vector.broadcast %cst_97 : f32 to vector<8x32xf32>
    %167 = arith.addf %166, %165 : vector<8x32xf32>
    %168 = arith.divf %166, %167 : vector<8x32xf32>
    %169 = vector.extract_strided_slice %156 {offsets = [0, 64], sizes = [8, 32], strides = [1, 1]} : vector<8x128xf32> to vector<8x32xf32>
    %170 = math.tanh %169 : vector<8x32xf32>
    %171 = vector.extract_strided_slice %156 {offsets = [0, 96], sizes = [8, 32], strides = [1, 1]} : vector<8x128xf32> to vector<8x32xf32>
    %172 = arith.negf %171 : vector<8x32xf32>
    %173 = math.exp %172 : vector<8x32xf32>
    %cst_98 = arith.constant 1.000000e+00 : f32
    %174 = vector.broadcast %cst_98 : f32 to vector<8x32xf32>
    %175 = arith.addf %174, %173 : vector<8x32xf32>
    %176 = arith.divf %174, %175 : vector<8x32xf32>
    %177 = arith.mulf %168, %152 : vector<8x32xf32>
    %178 = arith.mulf %162, %170 : vector<8x32xf32>
    %179 = arith.addf %177, %178 : vector<8x32xf32>
    %180 = math.tanh %179 : vector<8x32xf32>
    %181 = arith.mulf %176, %180 : vector<8x32xf32>
    %c0_99 = arith.constant 0 : index
    %c0_100 = arith.constant 0 : index
    %182 = vector.load %arg15[%c0_99, %c0_100] : memref<8x32xf32, #tpu.memory_space<vmem>>, vector<8x32xf32>
    tpu.vector_store %arg15[%c0_99, %c0_100], %181 {strides = array<i32>} : memref<8x32xf32, #tpu.memory_space<vmem>>, vector<8x32xf32>,
    %c0_101 = arith.constant 0 : index
    %c0_102 = arith.constant 0 : index
    %183 = vector.load %arg16[%c0_101, %c0_102] : memref<8x32xf32, #tpu.memory_space<vmem>>, vector<8x32xf32>
    tpu.vector_store %arg16[%c0_101, %c0_102], %179 {strides = array<i32>} : memref<8x32xf32, #tpu.memory_space<vmem>>, vector<8x32xf32>,
    %184 = arith.index_cast %150 : i32 to index
    %c0_103 = arith.constant 0 : index
    %185 = vector.load %arg14[%184, %c0_103] : memref<64x32xf32, #tpu.memory_space<vmem>>, vector<8x32xf32>
    tpu.vector_store %arg14[%184, %c0_103], %181 {strides = array<i32>} : memref<64x32xf32, #tpu.memory_space<vmem>>, vector<8x32xf32>,
    %c4_i32 = arith.constant 4 : i32
    %c8_i32_104 = arith.constant 8 : i32
    %186 = arith.muli %c4_i32, %c8_i32_104 : i32
    %187 = tpu.assume_multiple %186, 8 : i32
    %c0_105 = arith.constant 0 : index
    %c0_106 = arith.constant 0 : index
    %188 = vector.load %arg15[%c0_105, %c0_106] : memref<8x32xf32, #tpu.memory_space<vmem>>, vector<8x32xf32>
    %c0_107 = arith.constant 0 : index
    %c0_108 = arith.constant 0 : index
    %189 = vector.load %arg16[%c0_107, %c0_108] : memref<8x32xf32, #tpu.memory_space<vmem>>, vector<8x32xf32>
    %190 = arith.index_cast %187 : i32 to index
    %c0_109 = arith.constant 0 : index
    %191 = vector.load %arg13[%190, %c0_109] : memref<64x128xf32, #tpu.memory_space<vmem>>, vector<8x128xf32>
    %cst_110 = arith.constant dense<0.000000e+00> : vector<8x128xf32>
    %192 = tpu.matmul %188, %37, %cst_110 {dimension_numbers = #tpu.dot_dimension_numbers<[1], [0], [0], [1], [0, 0, 1, 1], [], []>} : vector<8x32xf32>, vector<32x128xf32>, vector<8x128xf32> -> vector<8x128xf32>
    %193 = arith.addf %191, %192 : vector<8x128xf32>
    %194 = vector.extract_strided_slice %193 {offsets = [0, 0], sizes = [8, 32], strides = [1, 1]} : vector<8x128xf32> to vector<8x32xf32>
    %195 = arith.negf %194 : vector<8x32xf32>
    %196 = math.exp %195 : vector<8x32xf32>
    %cst_111 = arith.constant 1.000000e+00 : f32
    %197 = vector.broadcast %cst_111 : f32 to vector<8x32xf32>
    %198 = arith.addf %197, %196 : vector<8x32xf32>
    %199 = arith.divf %197, %198 : vector<8x32xf32>
    %200 = vector.extract_strided_slice %193 {offsets = [0, 32], sizes = [8, 32], strides = [1, 1]} : vector<8x128xf32> to vector<8x32xf32>
    %201 = arith.negf %200 : vector<8x32xf32>
    %202 = math.exp %201 : vector<8x32xf32>
    %cst_112 = arith.constant 1.000000e+00 : f32
    %203 = vector.broadcast %cst_112 : f32 to vector<8x32xf32>
    %204 = arith.addf %203, %202 : vector<8x32xf32>
    %205 = arith.divf %203, %204 : vector<8x32xf32>
    %206 = vector.extract_strided_slice %193 {offsets = [0, 64], sizes = [8, 32], strides = [1, 1]} : vector<8x128xf32> to vector<8x32xf32>
    %207 = math.tanh %206 : vector<8x32xf32>
    %208 = vector.extract_strided_slice %193 {offsets = [0, 96], sizes = [8, 32], strides = [1, 1]} : vector<8x128xf32> to vector<8x32xf32>
    %209 = arith.negf %208 : vector<8x32xf32>
    %210 = math.exp %209 : vector<8x32xf32>
    %cst_113 = arith.constant 1.000000e+00 : f32
    %211 = vector.broadcast %cst_113 : f32 to vector<8x32xf32>
    %212 = arith.addf %211, %210 : vector<8x32xf32>
    %213 = arith.divf %211, %212 : vector<8x32xf32>
    %214 = arith.mulf %205, %189 : vector<8x32xf32>
    %215 = arith.mulf %199, %207 : vector<8x32xf32>
    %216 = arith.addf %214, %215 : vector<8x32xf32>
    %217 = math.tanh %216 : vector<8x32xf32>
    %218 = arith.mulf %213, %217 : vector<8x32xf32>
    %c0_114 = arith.constant 0 : index
    %c0_115 = arith.constant 0 : index
    %219 = vector.load %arg15[%c0_114, %c0_115] : memref<8x32xf32, #tpu.memory_space<vmem>>, vector<8x32xf32>
    tpu.vector_store %arg15[%c0_114, %c0_115], %218 {strides = array<i32>} : memref<8x32xf32, #tpu.memory_space<vmem>>, vector<8x32xf32>,
    %c0_116 = arith.constant 0 : index
    %c0_117 = arith.constant 0 : index
    %220 = vector.load %arg16[%c0_116, %c0_117] : memref<8x32xf32, #tpu.memory_space<vmem>>, vector<8x32xf32>
    tpu.vector_store %arg16[%c0_116, %c0_117], %216 {strides = array<i32>} : memref<8x32xf32, #tpu.memory_space<vmem>>, vector<8x32xf32>,
    %221 = arith.index_cast %187 : i32 to index
    %c0_118 = arith.constant 0 : index
    %222 = vector.load %arg14[%221, %c0_118] : memref<64x32xf32, #tpu.memory_space<vmem>>, vector<8x32xf32>
    tpu.vector_store %arg14[%221, %c0_118], %218 {strides = array<i32>} : memref<64x32xf32, #tpu.memory_space<vmem>>, vector<8x32xf32>,
    %c5_i32 = arith.constant 5 : i32
    %c8_i32_119 = arith.constant 8 : i32
    %223 = arith.muli %c5_i32, %c8_i32_119 : i32
    %224 = tpu.assume_multiple %223, 8 : i32
    %c0_120 = arith.constant 0 : index
    %c0_121 = arith.constant 0 : index
    %225 = vector.load %arg15[%c0_120, %c0_121] : memref<8x32xf32, #tpu.memory_space<vmem>>, vector<8x32xf32>
    %c0_122 = arith.constant 0 : index
    %c0_123 = arith.constant 0 : index
    %226 = vector.load %arg16[%c0_122, %c0_123] : memref<8x32xf32, #tpu.memory_space<vmem>>, vector<8x32xf32>
    %227 = arith.index_cast %224 : i32 to index
    %c0_124 = arith.constant 0 : index
    %228 = vector.load %arg13[%227, %c0_124] : memref<64x128xf32, #tpu.memory_space<vmem>>, vector<8x128xf32>
    %cst_125 = arith.constant dense<0.000000e+00> : vector<8x128xf32>
    %229 = tpu.matmul %225, %37, %cst_125 {dimension_numbers = #tpu.dot_dimension_numbers<[1], [0], [0], [1], [0, 0, 1, 1], [], []>} : vector<8x32xf32>, vector<32x128xf32>, vector<8x128xf32> -> vector<8x128xf32>
    %230 = arith.addf %228, %229 : vector<8x128xf32>
    %231 = vector.extract_strided_slice %230 {offsets = [0, 0], sizes = [8, 32], strides = [1, 1]} : vector<8x128xf32> to vector<8x32xf32>
    %232 = arith.negf %231 : vector<8x32xf32>
    %233 = math.exp %232 : vector<8x32xf32>
    %cst_126 = arith.constant 1.000000e+00 : f32
    %234 = vector.broadcast %cst_126 : f32 to vector<8x32xf32>
    %235 = arith.addf %234, %233 : vector<8x32xf32>
    %236 = arith.divf %234, %235 : vector<8x32xf32>
    %237 = vector.extract_strided_slice %230 {offsets = [0, 32], sizes = [8, 32], strides = [1, 1]} : vector<8x128xf32> to vector<8x32xf32>
    %238 = arith.negf %237 : vector<8x32xf32>
    %239 = math.exp %238 : vector<8x32xf32>
    %cst_127 = arith.constant 1.000000e+00 : f32
    %240 = vector.broadcast %cst_127 : f32 to vector<8x32xf32>
    %241 = arith.addf %240, %239 : vector<8x32xf32>
    %242 = arith.divf %240, %241 : vector<8x32xf32>
    %243 = vector.extract_strided_slice %230 {offsets = [0, 64], sizes = [8, 32], strides = [1, 1]} : vector<8x128xf32> to vector<8x32xf32>
    %244 = math.tanh %243 : vector<8x32xf32>
    %245 = vector.extract_strided_slice %230 {offsets = [0, 96], sizes = [8, 32], strides = [1, 1]} : vector<8x128xf32> to vector<8x32xf32>
    %246 = arith.negf %245 : vector<8x32xf32>
    %247 = math.exp %246 : vector<8x32xf32>
    %cst_128 = arith.constant 1.000000e+00 : f32
    %248 = vector.broadcast %cst_128 : f32 to vector<8x32xf32>
    %249 = arith.addf %248, %247 : vector<8x32xf32>
    %250 = arith.divf %248, %249 : vector<8x32xf32>
    %251 = arith.mulf %242, %226 : vector<8x32xf32>
    %252 = arith.mulf %236, %244 : vector<8x32xf32>
    %253 = arith.addf %251, %252 : vector<8x32xf32>
    %254 = math.tanh %253 : vector<8x32xf32>
    %255 = arith.mulf %250, %254 : vector<8x32xf32>
    %c0_129 = arith.constant 0 : index
    %c0_130 = arith.constant 0 : index
    %256 = vector.load %arg15[%c0_129, %c0_130] : memref<8x32xf32, #tpu.memory_space<vmem>>, vector<8x32xf32>
    tpu.vector_store %arg15[%c0_129, %c0_130], %255 {strides = array<i32>} : memref<8x32xf32, #tpu.memory_space<vmem>>, vector<8x32xf32>,
    %c0_131 = arith.constant 0 : index
    %c0_132 = arith.constant 0 : index
    %257 = vector.load %arg16[%c0_131, %c0_132] : memref<8x32xf32, #tpu.memory_space<vmem>>, vector<8x32xf32>
    tpu.vector_store %arg16[%c0_131, %c0_132], %253 {strides = array<i32>} : memref<8x32xf32, #tpu.memory_space<vmem>>, vector<8x32xf32>,
    %258 = arith.index_cast %224 : i32 to index
    %c0_133 = arith.constant 0 : index
    %259 = vector.load %arg14[%258, %c0_133] : memref<64x32xf32, #tpu.memory_space<vmem>>, vector<8x32xf32>
    tpu.vector_store %arg14[%258, %c0_133], %255 {strides = array<i32>} : memref<64x32xf32, #tpu.memory_space<vmem>>, vector<8x32xf32>,
    %c6_i32 = arith.constant 6 : i32
    %c8_i32_134 = arith.constant 8 : i32
    %260 = arith.muli %c6_i32, %c8_i32_134 : i32
    %261 = tpu.assume_multiple %260, 8 : i32
    %c0_135 = arith.constant 0 : index
    %c0_136 = arith.constant 0 : index
    %262 = vector.load %arg15[%c0_135, %c0_136] : memref<8x32xf32, #tpu.memory_space<vmem>>, vector<8x32xf32>
    %c0_137 = arith.constant 0 : index
    %c0_138 = arith.constant 0 : index
    %263 = vector.load %arg16[%c0_137, %c0_138] : memref<8x32xf32, #tpu.memory_space<vmem>>, vector<8x32xf32>
    %264 = arith.index_cast %261 : i32 to index
    %c0_139 = arith.constant 0 : index
    %265 = vector.load %arg13[%264, %c0_139] : memref<64x128xf32, #tpu.memory_space<vmem>>, vector<8x128xf32>
    %cst_140 = arith.constant dense<0.000000e+00> : vector<8x128xf32>
    %266 = tpu.matmul %262, %37, %cst_140 {dimension_numbers = #tpu.dot_dimension_numbers<[1], [0], [0], [1], [0, 0, 1, 1], [], []>} : vector<8x32xf32>, vector<32x128xf32>, vector<8x128xf32> -> vector<8x128xf32>
    %267 = arith.addf %265, %266 : vector<8x128xf32>
    %268 = vector.extract_strided_slice %267 {offsets = [0, 0], sizes = [8, 32], strides = [1, 1]} : vector<8x128xf32> to vector<8x32xf32>
    %269 = arith.negf %268 : vector<8x32xf32>
    %270 = math.exp %269 : vector<8x32xf32>
    %cst_141 = arith.constant 1.000000e+00 : f32
    %271 = vector.broadcast %cst_141 : f32 to vector<8x32xf32>
    %272 = arith.addf %271, %270 : vector<8x32xf32>
    %273 = arith.divf %271, %272 : vector<8x32xf32>
    %274 = vector.extract_strided_slice %267 {offsets = [0, 32], sizes = [8, 32], strides = [1, 1]} : vector<8x128xf32> to vector<8x32xf32>
    %275 = arith.negf %274 : vector<8x32xf32>
    %276 = math.exp %275 : vector<8x32xf32>
    %cst_142 = arith.constant 1.000000e+00 : f32
    %277 = vector.broadcast %cst_142 : f32 to vector<8x32xf32>
    %278 = arith.addf %277, %276 : vector<8x32xf32>
    %279 = arith.divf %277, %278 : vector<8x32xf32>
    %280 = vector.extract_strided_slice %267 {offsets = [0, 64], sizes = [8, 32], strides = [1, 1]} : vector<8x128xf32> to vector<8x32xf32>
    %281 = math.tanh %280 : vector<8x32xf32>
    %282 = vector.extract_strided_slice %267 {offsets = [0, 96], sizes = [8, 32], strides = [1, 1]} : vector<8x128xf32> to vector<8x32xf32>
    %283 = arith.negf %282 : vector<8x32xf32>
    %284 = math.exp %283 : vector<8x32xf32>
    %cst_143 = arith.constant 1.000000e+00 : f32
    %285 = vector.broadcast %cst_143 : f32 to vector<8x32xf32>
    %286 = arith.addf %285, %284 : vector<8x32xf32>
    %287 = arith.divf %285, %286 : vector<8x32xf32>
    %288 = arith.mulf %279, %263 : vector<8x32xf32>
    %289 = arith.mulf %273, %281 : vector<8x32xf32>
    %290 = arith.addf %288, %289 : vector<8x32xf32>
    %291 = math.tanh %290 : vector<8x32xf32>
    %292 = arith.mulf %287, %291 : vector<8x32xf32>
    %c0_144 = arith.constant 0 : index
    %c0_145 = arith.constant 0 : index
    %293 = vector.load %arg15[%c0_144, %c0_145] : memref<8x32xf32, #tpu.memory_space<vmem>>, vector<8x32xf32>
    tpu.vector_store %arg15[%c0_144, %c0_145], %292 {strides = array<i32>} : memref<8x32xf32, #tpu.memory_space<vmem>>, vector<8x32xf32>,
    %c0_146 = arith.constant 0 : index
    %c0_147 = arith.constant 0 : index
    %294 = vector.load %arg16[%c0_146, %c0_147] : memref<8x32xf32, #tpu.memory_space<vmem>>, vector<8x32xf32>
    tpu.vector_store %arg16[%c0_146, %c0_147], %290 {strides = array<i32>} : memref<8x32xf32, #tpu.memory_space<vmem>>, vector<8x32xf32>,
    %295 = arith.index_cast %261 : i32 to index
    %c0_148 = arith.constant 0 : index
    %296 = vector.load %arg14[%295, %c0_148] : memref<64x32xf32, #tpu.memory_space<vmem>>, vector<8x32xf32>
    tpu.vector_store %arg14[%295, %c0_148], %292 {strides = array<i32>} : memref<64x32xf32, #tpu.memory_space<vmem>>, vector<8x32xf32>,
    %c7_i32 = arith.constant 7 : i32
    %c8_i32_149 = arith.constant 8 : i32
    %297 = arith.muli %c7_i32, %c8_i32_149 : i32
    %298 = tpu.assume_multiple %297, 8 : i32
    %c0_150 = arith.constant 0 : index
    %c0_151 = arith.constant 0 : index
    %299 = vector.load %arg15[%c0_150, %c0_151] : memref<8x32xf32, #tpu.memory_space<vmem>>, vector<8x32xf32>
    %c0_152 = arith.constant 0 : index
    %c0_153 = arith.constant 0 : index
    %300 = vector.load %arg16[%c0_152, %c0_153] : memref<8x32xf32, #tpu.memory_space<vmem>>, vector<8x32xf32>
    %301 = arith.index_cast %298 : i32 to index
    %c0_154 = arith.constant 0 : index
    %302 = vector.load %arg13[%301, %c0_154] : memref<64x128xf32, #tpu.memory_space<vmem>>, vector<8x128xf32>
    %cst_155 = arith.constant dense<0.000000e+00> : vector<8x128xf32>
    %303 = tpu.matmul %299, %37, %cst_155 {dimension_numbers = #tpu.dot_dimension_numbers<[1], [0], [0], [1], [0, 0, 1, 1], [], []>} : vector<8x32xf32>, vector<32x128xf32>, vector<8x128xf32> -> vector<8x128xf32>
    %304 = arith.addf %302, %303 : vector<8x128xf32>
    %305 = vector.extract_strided_slice %304 {offsets = [0, 0], sizes = [8, 32], strides = [1, 1]} : vector<8x128xf32> to vector<8x32xf32>
    %306 = arith.negf %305 : vector<8x32xf32>
    %307 = math.exp %306 : vector<8x32xf32>
    %cst_156 = arith.constant 1.000000e+00 : f32
    %308 = vector.broadcast %cst_156 : f32 to vector<8x32xf32>
    %309 = arith.addf %308, %307 : vector<8x32xf32>
    %310 = arith.divf %308, %309 : vector<8x32xf32>
    %311 = vector.extract_strided_slice %304 {offsets = [0, 32], sizes = [8, 32], strides = [1, 1]} : vector<8x128xf32> to vector<8x32xf32>
    %312 = arith.negf %311 : vector<8x32xf32>
    %313 = math.exp %312 : vector<8x32xf32>
    %cst_157 = arith.constant 1.000000e+00 : f32
    %314 = vector.broadcast %cst_157 : f32 to vector<8x32xf32>
    %315 = arith.addf %314, %313 : vector<8x32xf32>
    %316 = arith.divf %314, %315 : vector<8x32xf32>
    %317 = vector.extract_strided_slice %304 {offsets = [0, 64], sizes = [8, 32], strides = [1, 1]} : vector<8x128xf32> to vector<8x32xf32>
    %318 = math.tanh %317 : vector<8x32xf32>
    %319 = vector.extract_strided_slice %304 {offsets = [0, 96], sizes = [8, 32], strides = [1, 1]} : vector<8x128xf32> to vector<8x32xf32>
    %320 = arith.negf %319 : vector<8x32xf32>
    %321 = math.exp %320 : vector<8x32xf32>
    %cst_158 = arith.constant 1.000000e+00 : f32
    %322 = vector.broadcast %cst_158 : f32 to vector<8x32xf32>
    %323 = arith.addf %322, %321 : vector<8x32xf32>
    %324 = arith.divf %322, %323 : vector<8x32xf32>
    %325 = arith.mulf %316, %300 : vector<8x32xf32>
    %326 = arith.mulf %310, %318 : vector<8x32xf32>
    %327 = arith.addf %325, %326 : vector<8x32xf32>
    %328 = math.tanh %327 : vector<8x32xf32>
    %329 = arith.mulf %324, %328 : vector<8x32xf32>
    %c0_159 = arith.constant 0 : index
    %c0_160 = arith.constant 0 : index
    %330 = vector.load %arg15[%c0_159, %c0_160] : memref<8x32xf32, #tpu.memory_space<vmem>>, vector<8x32xf32>
    tpu.vector_store %arg15[%c0_159, %c0_160], %329 {strides = array<i32>} : memref<8x32xf32, #tpu.memory_space<vmem>>, vector<8x32xf32>,
    %c0_161 = arith.constant 0 : index
    %c0_162 = arith.constant 0 : index
    %331 = vector.load %arg16[%c0_161, %c0_162] : memref<8x32xf32, #tpu.memory_space<vmem>>, vector<8x32xf32>
    tpu.vector_store %arg16[%c0_161, %c0_162], %327 {strides = array<i32>} : memref<8x32xf32, #tpu.memory_space<vmem>>, vector<8x32xf32>,
    %332 = arith.index_cast %298 : i32 to index
    %c0_163 = arith.constant 0 : index
    %333 = vector.load %arg14[%332, %c0_163] : memref<64x32xf32, #tpu.memory_space<vmem>>, vector<8x32xf32>
    tpu.vector_store %arg14[%332, %c0_163], %329 {strides = array<i32>} : memref<64x32xf32, #tpu.memory_space<vmem>>, vector<8x32xf32>,
    %c8_i32_164 = arith.constant 8 : i32
    %c0_165 = arith.constant 0 : index
    %c0_166 = arith.constant 0 : index
    %334 = vector.load %arg15[%c0_165, %c0_166] : memref<8x32xf32, #tpu.memory_space<vmem>>, vector<8x32xf32>
    %c0_167 = arith.constant 0 : index
    %c0_168 = arith.constant 0 : index
    %c0_169 = arith.constant 0 : index
    %335 = vector.load %arg10[%c0_167, %c0_168, %c0_169] : memref<2x8x32xf32, #tpu.memory_space<vmem>>, vector<1x8x32xf32>
    %336 = vector.shape_cast %335 : vector<1x8x32xf32> to vector<8x32xf32>
    %337 = vector.shape_cast %334 : vector<8x32xf32> to vector<1x8x32xf32>
    tpu.vector_store %arg10[%c0_167, %c0_168, %c0_169], %337 {strides = array<i32>} : memref<2x8x32xf32, #tpu.memory_space<vmem>>, vector<1x8x32xf32>,
    %c0_170 = arith.constant 0 : index
    %c0_171 = arith.constant 0 : index
    %338 = vector.load %arg16[%c0_170, %c0_171] : memref<8x32xf32, #tpu.memory_space<vmem>>, vector<8x32xf32>
    %c0_172 = arith.constant 0 : index
    %c0_173 = arith.constant 0 : index
    %c0_174 = arith.constant 0 : index
    %339 = vector.load %arg11[%c0_172, %c0_173, %c0_174] : memref<2x8x32xf32, #tpu.memory_space<vmem>>, vector<1x8x32xf32>
    %340 = vector.shape_cast %339 : vector<1x8x32xf32> to vector<8x32xf32>
    %341 = vector.shape_cast %338 : vector<8x32xf32> to vector<1x8x32xf32>
    tpu.vector_store %arg11[%c0_172, %c0_173, %c0_174], %341 {strides = array<i32>} : memref<2x8x32xf32, #tpu.memory_space<vmem>>, vector<1x8x32xf32>,
    %c0_175 = arith.constant 0 : index
    %c0_176 = arith.constant 0 : index
    %342 = vector.load %arg14[%c0_175, %c0_176] : memref<64x32xf32, #tpu.memory_space<vmem>>, vector<64x32xf32>
    %c0_177 = arith.constant 0 : index
    %c0_178 = arith.constant 0 : index
    %343 = vector.load %arg7[%c0_177, %c0_178] : memref<32x128xf32, #tpu.memory_space<vmem>>, vector<32x128xf32>
    %cst_179 = arith.constant dense<0.000000e+00> : vector<64x128xf32>
    %344 = tpu.matmul %342, %343, %cst_179 {dimension_numbers = #tpu.dot_dimension_numbers<[1], [0], [0], [1], [0, 0, 1, 1], [], []>} : vector<64x32xf32>, vector<32x128xf32>, vector<64x128xf32> -> vector<64x128xf32>
    %c0_180 = arith.constant 0 : index
    %c0_181 = arith.constant 0 : index
    %345 = vector.load %arg9[%c0_180, %c0_181] : memref<1x128xf32, #tpu.memory_space<vmem>>, vector<1x128xf32>
    %346 = vector.broadcast %345 : vector<1x128xf32> to vector<64x128xf32>
    %347 = arith.addf %344, %346 : vector<64x128xf32>
    %c0_182 = arith.constant 0 : index
    %c0_183 = arith.constant 0 : index
    %348 = vector.load %arg13[%c0_182, %c0_183] : memref<64x128xf32, #tpu.memory_space<vmem>>, vector<64x128xf32>
    tpu.vector_store %arg13[%c0_182, %c0_183], %347 {strides = array<i32>} : memref<64x128xf32, #tpu.memory_space<vmem>>, vector<64x128xf32>,
    %c1_184 = arith.constant 1 : index
    %c0_185 = arith.constant 0 : index
    %c0_186 = arith.constant 0 : index
    %349 = vector.load %arg2[%c1_184, %c0_185, %c0_186] : memref<2x8x32xf32, #tpu.memory_space<vmem>>, vector<1x8x32xf32>
    %350 = vector.shape_cast %349 : vector<1x8x32xf32> to vector<8x32xf32>
    %c0_187 = arith.constant 0 : index
    %c0_188 = arith.constant 0 : index
    %351 = vector.load %arg15[%c0_187, %c0_188] : memref<8x32xf32, #tpu.memory_space<vmem>>, vector<8x32xf32>
    tpu.vector_store %arg15[%c0_187, %c0_188], %350 {strides = array<i32>} : memref<8x32xf32, #tpu.memory_space<vmem>>, vector<8x32xf32>,
    %c1_189 = arith.constant 1 : index
    %c0_190 = arith.constant 0 : index
    %c0_191 = arith.constant 0 : index
    %352 = vector.load %arg3[%c1_189, %c0_190, %c0_191] : memref<2x8x32xf32, #tpu.memory_space<vmem>>, vector<1x8x32xf32>
    %353 = vector.shape_cast %352 : vector<1x8x32xf32> to vector<8x32xf32>
    %c0_192 = arith.constant 0 : index
    %c0_193 = arith.constant 0 : index
    %354 = vector.load %arg16[%c0_192, %c0_193] : memref<8x32xf32, #tpu.memory_space<vmem>>, vector<8x32xf32>
    tpu.vector_store %arg16[%c0_192, %c0_193], %353 {strides = array<i32>} : memref<8x32xf32, #tpu.memory_space<vmem>>, vector<8x32xf32>,
    %c0_194 = arith.constant 0 : index
    %c0_195 = arith.constant 0 : index
    %355 = vector.load %arg8[%c0_194, %c0_195] : memref<32x128xf32, #tpu.memory_space<vmem>>, vector<32x128xf32>
    %c0_i32_196 = arith.constant 0 : i32
    %c8_i32_197 = arith.constant 8 : i32
    %356 = arith.muli %c0_i32_196, %c8_i32_197 : i32
    %357 = tpu.assume_multiple %356, 8 : i32
    %c0_198 = arith.constant 0 : index
    %c0_199 = arith.constant 0 : index
    %358 = vector.load %arg15[%c0_198, %c0_199] : memref<8x32xf32, #tpu.memory_space<vmem>>, vector<8x32xf32>
    %c0_200 = arith.constant 0 : index
    %c0_201 = arith.constant 0 : index
    %359 = vector.load %arg16[%c0_200, %c0_201] : memref<8x32xf32, #tpu.memory_space<vmem>>, vector<8x32xf32>
    %360 = arith.index_cast %357 : i32 to index
    %c0_202 = arith.constant 0 : index
    %361 = vector.load %arg13[%360, %c0_202] : memref<64x128xf32, #tpu.memory_space<vmem>>, vector<8x128xf32>
    %cst_203 = arith.constant dense<0.000000e+00> : vector<8x128xf32>
    %362 = tpu.matmul %358, %355, %cst_203 {dimension_numbers = #tpu.dot_dimension_numbers<[1], [0], [0], [1], [0, 0, 1, 1], [], []>} : vector<8x32xf32>, vector<32x128xf32>, vector<8x128xf32> -> vector<8x128xf32>
    %363 = arith.addf %361, %362 : vector<8x128xf32>
    %364 = vector.extract_strided_slice %363 {offsets = [0, 0], sizes = [8, 32], strides = [1, 1]} : vector<8x128xf32> to vector<8x32xf32>
    %365 = arith.negf %364 : vector<8x32xf32>
    %366 = math.exp %365 : vector<8x32xf32>
    %cst_204 = arith.constant 1.000000e+00 : f32
    %367 = vector.broadcast %cst_204 : f32 to vector<8x32xf32>
    %368 = arith.addf %367, %366 : vector<8x32xf32>
    %369 = arith.divf %367, %368 : vector<8x32xf32>
    %370 = vector.extract_strided_slice %363 {offsets = [0, 32], sizes = [8, 32], strides = [1, 1]} : vector<8x128xf32> to vector<8x32xf32>
    %371 = arith.negf %370 : vector<8x32xf32>
    %372 = math.exp %371 : vector<8x32xf32>
    %cst_205 = arith.constant 1.000000e+00 : f32
    %373 = vector.broadcast %cst_205 : f32 to vector<8x32xf32>
    %374 = arith.addf %373, %372 : vector<8x32xf32>
    %375 = arith.divf %373, %374 : vector<8x32xf32>
    %376 = vector.extract_strided_slice %363 {offsets = [0, 64], sizes = [8, 32], strides = [1, 1]} : vector<8x128xf32> to vector<8x32xf32>
    %377 = math.tanh %376 : vector<8x32xf32>
    %378 = vector.extract_strided_slice %363 {offsets = [0, 96], sizes = [8, 32], strides = [1, 1]} : vector<8x128xf32> to vector<8x32xf32>
    %379 = arith.negf %378 : vector<8x32xf32>
    %380 = math.exp %379 : vector<8x32xf32>
    %cst_206 = arith.constant 1.000000e+00 : f32
    %381 = vector.broadcast %cst_206 : f32 to vector<8x32xf32>
    %382 = arith.addf %381, %380 : vector<8x32xf32>
    %383 = arith.divf %381, %382 : vector<8x32xf32>
    %384 = arith.mulf %375, %359 : vector<8x32xf32>
    %385 = arith.mulf %369, %377 : vector<8x32xf32>
    %386 = arith.addf %384, %385 : vector<8x32xf32>
    %387 = math.tanh %386 : vector<8x32xf32>
    %388 = arith.mulf %383, %387 : vector<8x32xf32>
    %c0_207 = arith.constant 0 : index
    %c0_208 = arith.constant 0 : index
    %389 = vector.load %arg15[%c0_207, %c0_208] : memref<8x32xf32, #tpu.memory_space<vmem>>, vector<8x32xf32>
    tpu.vector_store %arg15[%c0_207, %c0_208], %388 {strides = array<i32>} : memref<8x32xf32, #tpu.memory_space<vmem>>, vector<8x32xf32>,
    %c0_209 = arith.constant 0 : index
    %c0_210 = arith.constant 0 : index
    %390 = vector.load %arg16[%c0_209, %c0_210] : memref<8x32xf32, #tpu.memory_space<vmem>>, vector<8x32xf32>
    tpu.vector_store %arg16[%c0_209, %c0_210], %386 {strides = array<i32>} : memref<8x32xf32, #tpu.memory_space<vmem>>, vector<8x32xf32>,
    %c1_i32_211 = arith.constant 1 : i32
    %c8_i32_212 = arith.constant 8 : i32
    %391 = arith.muli %c1_i32_211, %c8_i32_212 : i32
    %392 = tpu.assume_multiple %391, 8 : i32
    %c0_213 = arith.constant 0 : index
    %c0_214 = arith.constant 0 : index
    %393 = vector.load %arg15[%c0_213, %c0_214] : memref<8x32xf32, #tpu.memory_space<vmem>>, vector<8x32xf32>
    %c0_215 = arith.constant 0 : index
    %c0_216 = arith.constant 0 : index
    %394 = vector.load %arg16[%c0_215, %c0_216] : memref<8x32xf32, #tpu.memory_space<vmem>>, vector<8x32xf32>
    %395 = arith.index_cast %392 : i32 to index
    %c0_217 = arith.constant 0 : index
    %396 = vector.load %arg13[%395, %c0_217] : memref<64x128xf32, #tpu.memory_space<vmem>>, vector<8x128xf32>
    %cst_218 = arith.constant dense<0.000000e+00> : vector<8x128xf32>
    %397 = tpu.matmul %393, %355, %cst_218 {dimension_numbers = #tpu.dot_dimension_numbers<[1], [0], [0], [1], [0, 0, 1, 1], [], []>} : vector<8x32xf32>, vector<32x128xf32>, vector<8x128xf32> -> vector<8x128xf32>
    %398 = arith.addf %396, %397 : vector<8x128xf32>
    %399 = vector.extract_strided_slice %398 {offsets = [0, 0], sizes = [8, 32], strides = [1, 1]} : vector<8x128xf32> to vector<8x32xf32>
    %400 = arith.negf %399 : vector<8x32xf32>
    %401 = math.exp %400 : vector<8x32xf32>
    %cst_219 = arith.constant 1.000000e+00 : f32
    %402 = vector.broadcast %cst_219 : f32 to vector<8x32xf32>
    %403 = arith.addf %402, %401 : vector<8x32xf32>
    %404 = arith.divf %402, %403 : vector<8x32xf32>
    %405 = vector.extract_strided_slice %398 {offsets = [0, 32], sizes = [8, 32], strides = [1, 1]} : vector<8x128xf32> to vector<8x32xf32>
    %406 = arith.negf %405 : vector<8x32xf32>
    %407 = math.exp %406 : vector<8x32xf32>
    %cst_220 = arith.constant 1.000000e+00 : f32
    %408 = vector.broadcast %cst_220 : f32 to vector<8x32xf32>
    %409 = arith.addf %408, %407 : vector<8x32xf32>
    %410 = arith.divf %408, %409 : vector<8x32xf32>
    %411 = vector.extract_strided_slice %398 {offsets = [0, 64], sizes = [8, 32], strides = [1, 1]} : vector<8x128xf32> to vector<8x32xf32>
    %412 = math.tanh %411 : vector<8x32xf32>
    %413 = vector.extract_strided_slice %398 {offsets = [0, 96], sizes = [8, 32], strides = [1, 1]} : vector<8x128xf32> to vector<8x32xf32>
    %414 = arith.negf %413 : vector<8x32xf32>
    %415 = math.exp %414 : vector<8x32xf32>
    %cst_221 = arith.constant 1.000000e+00 : f32
    %416 = vector.broadcast %cst_221 : f32 to vector<8x32xf32>
    %417 = arith.addf %416, %415 : vector<8x32xf32>
    %418 = arith.divf %416, %417 : vector<8x32xf32>
    %419 = arith.mulf %410, %394 : vector<8x32xf32>
    %420 = arith.mulf %404, %412 : vector<8x32xf32>
    %421 = arith.addf %419, %420 : vector<8x32xf32>
    %422 = math.tanh %421 : vector<8x32xf32>
    %423 = arith.mulf %418, %422 : vector<8x32xf32>
    %c0_222 = arith.constant 0 : index
    %c0_223 = arith.constant 0 : index
    %424 = vector.load %arg15[%c0_222, %c0_223] : memref<8x32xf32, #tpu.memory_space<vmem>>, vector<8x32xf32>
    tpu.vector_store %arg15[%c0_222, %c0_223], %423 {strides = array<i32>} : memref<8x32xf32, #tpu.memory_space<vmem>>, vector<8x32xf32>,
    %c0_224 = arith.constant 0 : index
    %c0_225 = arith.constant 0 : index
    %425 = vector.load %arg16[%c0_224, %c0_225] : memref<8x32xf32, #tpu.memory_space<vmem>>, vector<8x32xf32>
    tpu.vector_store %arg16[%c0_224, %c0_225], %421 {strides = array<i32>} : memref<8x32xf32, #tpu.memory_space<vmem>>, vector<8x32xf32>,
    %c2_i32_226 = arith.constant 2 : i32
    %c8_i32_227 = arith.constant 8 : i32
    %426 = arith.muli %c2_i32_226, %c8_i32_227 : i32
    %427 = tpu.assume_multiple %426, 8 : i32
    %c0_228 = arith.constant 0 : index
    %c0_229 = arith.constant 0 : index
    %428 = vector.load %arg15[%c0_228, %c0_229] : memref<8x32xf32, #tpu.memory_space<vmem>>, vector<8x32xf32>
    %c0_230 = arith.constant 0 : index
    %c0_231 = arith.constant 0 : index
    %429 = vector.load %arg16[%c0_230, %c0_231] : memref<8x32xf32, #tpu.memory_space<vmem>>, vector<8x32xf32>
    %430 = arith.index_cast %427 : i32 to index
    %c0_232 = arith.constant 0 : index
    %431 = vector.load %arg13[%430, %c0_232] : memref<64x128xf32, #tpu.memory_space<vmem>>, vector<8x128xf32>
    %cst_233 = arith.constant dense<0.000000e+00> : vector<8x128xf32>
    %432 = tpu.matmul %428, %355, %cst_233 {dimension_numbers = #tpu.dot_dimension_numbers<[1], [0], [0], [1], [0, 0, 1, 1], [], []>} : vector<8x32xf32>, vector<32x128xf32>, vector<8x128xf32> -> vector<8x128xf32>
    %433 = arith.addf %431, %432 : vector<8x128xf32>
    %434 = vector.extract_strided_slice %433 {offsets = [0, 0], sizes = [8, 32], strides = [1, 1]} : vector<8x128xf32> to vector<8x32xf32>
    %435 = arith.negf %434 : vector<8x32xf32>
    %436 = math.exp %435 : vector<8x32xf32>
    %cst_234 = arith.constant 1.000000e+00 : f32
    %437 = vector.broadcast %cst_234 : f32 to vector<8x32xf32>
    %438 = arith.addf %437, %436 : vector<8x32xf32>
    %439 = arith.divf %437, %438 : vector<8x32xf32>
    %440 = vector.extract_strided_slice %433 {offsets = [0, 32], sizes = [8, 32], strides = [1, 1]} : vector<8x128xf32> to vector<8x32xf32>
    %441 = arith.negf %440 : vector<8x32xf32>
    %442 = math.exp %441 : vector<8x32xf32>
    %cst_235 = arith.constant 1.000000e+00 : f32
    %443 = vector.broadcast %cst_235 : f32 to vector<8x32xf32>
    %444 = arith.addf %443, %442 : vector<8x32xf32>
    %445 = arith.divf %443, %444 : vector<8x32xf32>
    %446 = vector.extract_strided_slice %433 {offsets = [0, 64], sizes = [8, 32], strides = [1, 1]} : vector<8x128xf32> to vector<8x32xf32>
    %447 = math.tanh %446 : vector<8x32xf32>
    %448 = vector.extract_strided_slice %433 {offsets = [0, 96], sizes = [8, 32], strides = [1, 1]} : vector<8x128xf32> to vector<8x32xf32>
    %449 = arith.negf %448 : vector<8x32xf32>
    %450 = math.exp %449 : vector<8x32xf32>
    %cst_236 = arith.constant 1.000000e+00 : f32
    %451 = vector.broadcast %cst_236 : f32 to vector<8x32xf32>
    %452 = arith.addf %451, %450 : vector<8x32xf32>
    %453 = arith.divf %451, %452 : vector<8x32xf32>
    %454 = arith.mulf %445, %429 : vector<8x32xf32>
    %455 = arith.mulf %439, %447 : vector<8x32xf32>
    %456 = arith.addf %454, %455 : vector<8x32xf32>
    %457 = math.tanh %456 : vector<8x32xf32>
    %458 = arith.mulf %453, %457 : vector<8x32xf32>
    %c0_237 = arith.constant 0 : index
    %c0_238 = arith.constant 0 : index
    %459 = vector.load %arg15[%c0_237, %c0_238] : memref<8x32xf32, #tpu.memory_space<vmem>>, vector<8x32xf32>
    tpu.vector_store %arg15[%c0_237, %c0_238], %458 {strides = array<i32>} : memref<8x32xf32, #tpu.memory_space<vmem>>, vector<8x32xf32>,
    %c0_239 = arith.constant 0 : index
    %c0_240 = arith.constant 0 : index
    %460 = vector.load %arg16[%c0_239, %c0_240] : memref<8x32xf32, #tpu.memory_space<vmem>>, vector<8x32xf32>
    tpu.vector_store %arg16[%c0_239, %c0_240], %456 {strides = array<i32>} : memref<8x32xf32, #tpu.memory_space<vmem>>, vector<8x32xf32>,
    %c3_i32_241 = arith.constant 3 : i32
    %c8_i32_242 = arith.constant 8 : i32
    %461 = arith.muli %c3_i32_241, %c8_i32_242 : i32
    %462 = tpu.assume_multiple %461, 8 : i32
    %c0_243 = arith.constant 0 : index
    %c0_244 = arith.constant 0 : index
    %463 = vector.load %arg15[%c0_243, %c0_244] : memref<8x32xf32, #tpu.memory_space<vmem>>, vector<8x32xf32>
    %c0_245 = arith.constant 0 : index
    %c0_246 = arith.constant 0 : index
    %464 = vector.load %arg16[%c0_245, %c0_246] : memref<8x32xf32, #tpu.memory_space<vmem>>, vector<8x32xf32>
    %465 = arith.index_cast %462 : i32 to index
    %c0_247 = arith.constant 0 : index
    %466 = vector.load %arg13[%465, %c0_247] : memref<64x128xf32, #tpu.memory_space<vmem>>, vector<8x128xf32>
    %cst_248 = arith.constant dense<0.000000e+00> : vector<8x128xf32>
    %467 = tpu.matmul %463, %355, %cst_248 {dimension_numbers = #tpu.dot_dimension_numbers<[1], [0], [0], [1], [0, 0, 1, 1], [], []>} : vector<8x32xf32>, vector<32x128xf32>, vector<8x128xf32> -> vector<8x128xf32>
    %468 = arith.addf %466, %467 : vector<8x128xf32>
    %469 = vector.extract_strided_slice %468 {offsets = [0, 0], sizes = [8, 32], strides = [1, 1]} : vector<8x128xf32> to vector<8x32xf32>
    %470 = arith.negf %469 : vector<8x32xf32>
    %471 = math.exp %470 : vector<8x32xf32>
    %cst_249 = arith.constant 1.000000e+00 : f32
    %472 = vector.broadcast %cst_249 : f32 to vector<8x32xf32>
    %473 = arith.addf %472, %471 : vector<8x32xf32>
    %474 = arith.divf %472, %473 : vector<8x32xf32>
    %475 = vector.extract_strided_slice %468 {offsets = [0, 32], sizes = [8, 32], strides = [1, 1]} : vector<8x128xf32> to vector<8x32xf32>
    %476 = arith.negf %475 : vector<8x32xf32>
    %477 = math.exp %476 : vector<8x32xf32>
    %cst_250 = arith.constant 1.000000e+00 : f32
    %478 = vector.broadcast %cst_250 : f32 to vector<8x32xf32>
    %479 = arith.addf %478, %477 : vector<8x32xf32>
    %480 = arith.divf %478, %479 : vector<8x32xf32>
    %481 = vector.extract_strided_slice %468 {offsets = [0, 64], sizes = [8, 32], strides = [1, 1]} : vector<8x128xf32> to vector<8x32xf32>
    %482 = math.tanh %481 : vector<8x32xf32>
    %483 = vector.extract_strided_slice %468 {offsets = [0, 96], sizes = [8, 32], strides = [1, 1]} : vector<8x128xf32> to vector<8x32xf32>
    %484 = arith.negf %483 : vector<8x32xf32>
    %485 = math.exp %484 : vector<8x32xf32>
    %cst_251 = arith.constant 1.000000e+00 : f32
    %486 = vector.broadcast %cst_251 : f32 to vector<8x32xf32>
    %487 = arith.addf %486, %485 : vector<8x32xf32>
    %488 = arith.divf %486, %487 : vector<8x32xf32>
    %489 = arith.mulf %480, %464 : vector<8x32xf32>
    %490 = arith.mulf %474, %482 : vector<8x32xf32>
    %491 = arith.addf %489, %490 : vector<8x32xf32>
    %492 = math.tanh %491 : vector<8x32xf32>
    %493 = arith.mulf %488, %492 : vector<8x32xf32>
    %c0_252 = arith.constant 0 : index
    %c0_253 = arith.constant 0 : index
    %494 = vector.load %arg15[%c0_252, %c0_253] : memref<8x32xf32, #tpu.memory_space<vmem>>, vector<8x32xf32>
    tpu.vector_store %arg15[%c0_252, %c0_253], %493 {strides = array<i32>} : memref<8x32xf32, #tpu.memory_space<vmem>>, vector<8x32xf32>,
    %c0_254 = arith.constant 0 : index
    %c0_255 = arith.constant 0 : index
    %495 = vector.load %arg16[%c0_254, %c0_255] : memref<8x32xf32, #tpu.memory_space<vmem>>, vector<8x32xf32>
    tpu.vector_store %arg16[%c0_254, %c0_255], %491 {strides = array<i32>} : memref<8x32xf32, #tpu.memory_space<vmem>>, vector<8x32xf32>,
    %c4_i32_256 = arith.constant 4 : i32
    %c8_i32_257 = arith.constant 8 : i32
    %496 = arith.muli %c4_i32_256, %c8_i32_257 : i32
    %497 = tpu.assume_multiple %496, 8 : i32
    %c0_258 = arith.constant 0 : index
    %c0_259 = arith.constant 0 : index
    %498 = vector.load %arg15[%c0_258, %c0_259] : memref<8x32xf32, #tpu.memory_space<vmem>>, vector<8x32xf32>
    %c0_260 = arith.constant 0 : index
    %c0_261 = arith.constant 0 : index
    %499 = vector.load %arg16[%c0_260, %c0_261] : memref<8x32xf32, #tpu.memory_space<vmem>>, vector<8x32xf32>
    %500 = arith.index_cast %497 : i32 to index
    %c0_262 = arith.constant 0 : index
    %501 = vector.load %arg13[%500, %c0_262] : memref<64x128xf32, #tpu.memory_space<vmem>>, vector<8x128xf32>
    %cst_263 = arith.constant dense<0.000000e+00> : vector<8x128xf32>
    %502 = tpu.matmul %498, %355, %cst_263 {dimension_numbers = #tpu.dot_dimension_numbers<[1], [0], [0], [1], [0, 0, 1, 1], [], []>} : vector<8x32xf32>, vector<32x128xf32>, vector<8x128xf32> -> vector<8x128xf32>
    %503 = arith.addf %501, %502 : vector<8x128xf32>
    %504 = vector.extract_strided_slice %503 {offsets = [0, 0], sizes = [8, 32], strides = [1, 1]} : vector<8x128xf32> to vector<8x32xf32>
    %505 = arith.negf %504 : vector<8x32xf32>
    %506 = math.exp %505 : vector<8x32xf32>
    %cst_264 = arith.constant 1.000000e+00 : f32
    %507 = vector.broadcast %cst_264 : f32 to vector<8x32xf32>
    %508 = arith.addf %507, %506 : vector<8x32xf32>
    %509 = arith.divf %507, %508 : vector<8x32xf32>
    %510 = vector.extract_strided_slice %503 {offsets = [0, 32], sizes = [8, 32], strides = [1, 1]} : vector<8x128xf32> to vector<8x32xf32>
    %511 = arith.negf %510 : vector<8x32xf32>
    %512 = math.exp %511 : vector<8x32xf32>
    %cst_265 = arith.constant 1.000000e+00 : f32
    %513 = vector.broadcast %cst_265 : f32 to vector<8x32xf32>
    %514 = arith.addf %513, %512 : vector<8x32xf32>
    %515 = arith.divf %513, %514 : vector<8x32xf32>
    %516 = vector.extract_strided_slice %503 {offsets = [0, 64], sizes = [8, 32], strides = [1, 1]} : vector<8x128xf32> to vector<8x32xf32>
    %517 = math.tanh %516 : vector<8x32xf32>
    %518 = vector.extract_strided_slice %503 {offsets = [0, 96], sizes = [8, 32], strides = [1, 1]} : vector<8x128xf32> to vector<8x32xf32>
    %519 = arith.negf %518 : vector<8x32xf32>
    %520 = math.exp %519 : vector<8x32xf32>
    %cst_266 = arith.constant 1.000000e+00 : f32
    %521 = vector.broadcast %cst_266 : f32 to vector<8x32xf32>
    %522 = arith.addf %521, %520 : vector<8x32xf32>
    %523 = arith.divf %521, %522 : vector<8x32xf32>
    %524 = arith.mulf %515, %499 : vector<8x32xf32>
    %525 = arith.mulf %509, %517 : vector<8x32xf32>
    %526 = arith.addf %524, %525 : vector<8x32xf32>
    %527 = math.tanh %526 : vector<8x32xf32>
    %528 = arith.mulf %523, %527 : vector<8x32xf32>
    %c0_267 = arith.constant 0 : index
    %c0_268 = arith.constant 0 : index
    %529 = vector.load %arg15[%c0_267, %c0_268] : memref<8x32xf32, #tpu.memory_space<vmem>>, vector<8x32xf32>
    tpu.vector_store %arg15[%c0_267, %c0_268], %528 {strides = array<i32>} : memref<8x32xf32, #tpu.memory_space<vmem>>, vector<8x32xf32>,
    %c0_269 = arith.constant 0 : index
    %c0_270 = arith.constant 0 : index
    %530 = vector.load %arg16[%c0_269, %c0_270] : memref<8x32xf32, #tpu.memory_space<vmem>>, vector<8x32xf32>
    tpu.vector_store %arg16[%c0_269, %c0_270], %526 {strides = array<i32>} : memref<8x32xf32, #tpu.memory_space<vmem>>, vector<8x32xf32>,
    %c5_i32_271 = arith.constant 5 : i32
    %c8_i32_272 = arith.constant 8 : i32
    %531 = arith.muli %c5_i32_271, %c8_i32_272 : i32
    %532 = tpu.assume_multiple %531, 8 : i32
    %c0_273 = arith.constant 0 : index
    %c0_274 = arith.constant 0 : index
    %533 = vector.load %arg15[%c0_273, %c0_274] : memref<8x32xf32, #tpu.memory_space<vmem>>, vector<8x32xf32>
    %c0_275 = arith.constant 0 : index
    %c0_276 = arith.constant 0 : index
    %534 = vector.load %arg16[%c0_275, %c0_276] : memref<8x32xf32, #tpu.memory_space<vmem>>, vector<8x32xf32>
    %535 = arith.index_cast %532 : i32 to index
    %c0_277 = arith.constant 0 : index
    %536 = vector.load %arg13[%535, %c0_277] : memref<64x128xf32, #tpu.memory_space<vmem>>, vector<8x128xf32>
    %cst_278 = arith.constant dense<0.000000e+00> : vector<8x128xf32>
    %537 = tpu.matmul %533, %355, %cst_278 {dimension_numbers = #tpu.dot_dimension_numbers<[1], [0], [0], [1], [0, 0, 1, 1], [], []>} : vector<8x32xf32>, vector<32x128xf32>, vector<8x128xf32> -> vector<8x128xf32>
    %538 = arith.addf %536, %537 : vector<8x128xf32>
    %539 = vector.extract_strided_slice %538 {offsets = [0, 0], sizes = [8, 32], strides = [1, 1]} : vector<8x128xf32> to vector<8x32xf32>
    %540 = arith.negf %539 : vector<8x32xf32>
    %541 = math.exp %540 : vector<8x32xf32>
    %cst_279 = arith.constant 1.000000e+00 : f32
    %542 = vector.broadcast %cst_279 : f32 to vector<8x32xf32>
    %543 = arith.addf %542, %541 : vector<8x32xf32>
    %544 = arith.divf %542, %543 : vector<8x32xf32>
    %545 = vector.extract_strided_slice %538 {offsets = [0, 32], sizes = [8, 32], strides = [1, 1]} : vector<8x128xf32> to vector<8x32xf32>
    %546 = arith.negf %545 : vector<8x32xf32>
    %547 = math.exp %546 : vector<8x32xf32>
    %cst_280 = arith.constant 1.000000e+00 : f32
    %548 = vector.broadcast %cst_280 : f32 to vector<8x32xf32>
    %549 = arith.addf %548, %547 : vector<8x32xf32>
    %550 = arith.divf %548, %549 : vector<8x32xf32>
    %551 = vector.extract_strided_slice %538 {offsets = [0, 64], sizes = [8, 32], strides = [1, 1]} : vector<8x128xf32> to vector<8x32xf32>
    %552 = math.tanh %551 : vector<8x32xf32>
    %553 = vector.extract_strided_slice %538 {offsets = [0, 96], sizes = [8, 32], strides = [1, 1]} : vector<8x128xf32> to vector<8x32xf32>
    %554 = arith.negf %553 : vector<8x32xf32>
    %555 = math.exp %554 : vector<8x32xf32>
    %cst_281 = arith.constant 1.000000e+00 : f32
    %556 = vector.broadcast %cst_281 : f32 to vector<8x32xf32>
    %557 = arith.addf %556, %555 : vector<8x32xf32>
    %558 = arith.divf %556, %557 : vector<8x32xf32>
    %559 = arith.mulf %550, %534 : vector<8x32xf32>
    %560 = arith.mulf %544, %552 : vector<8x32xf32>
    %561 = arith.addf %559, %560 : vector<8x32xf32>
    %562 = math.tanh %561 : vector<8x32xf32>
    %563 = arith.mulf %558, %562 : vector<8x32xf32>
    %c0_282 = arith.constant 0 : index
    %c0_283 = arith.constant 0 : index
    %564 = vector.load %arg15[%c0_282, %c0_283] : memref<8x32xf32, #tpu.memory_space<vmem>>, vector<8x32xf32>
    tpu.vector_store %arg15[%c0_282, %c0_283], %563 {strides = array<i32>} : memref<8x32xf32, #tpu.memory_space<vmem>>, vector<8x32xf32>,
    %c0_284 = arith.constant 0 : index
    %c0_285 = arith.constant 0 : index
    %565 = vector.load %arg16[%c0_284, %c0_285] : memref<8x32xf32, #tpu.memory_space<vmem>>, vector<8x32xf32>
    tpu.vector_store %arg16[%c0_284, %c0_285], %561 {strides = array<i32>} : memref<8x32xf32, #tpu.memory_space<vmem>>, vector<8x32xf32>,
    %c6_i32_286 = arith.constant 6 : i32
    %c8_i32_287 = arith.constant 8 : i32
    %566 = arith.muli %c6_i32_286, %c8_i32_287 : i32
    %567 = tpu.assume_multiple %566, 8 : i32
    %c0_288 = arith.constant 0 : index
    %c0_289 = arith.constant 0 : index
    %568 = vector.load %arg15[%c0_288, %c0_289] : memref<8x32xf32, #tpu.memory_space<vmem>>, vector<8x32xf32>
    %c0_290 = arith.constant 0 : index
    %c0_291 = arith.constant 0 : index
    %569 = vector.load %arg16[%c0_290, %c0_291] : memref<8x32xf32, #tpu.memory_space<vmem>>, vector<8x32xf32>
    %570 = arith.index_cast %567 : i32 to index
    %c0_292 = arith.constant 0 : index
    %571 = vector.load %arg13[%570, %c0_292] : memref<64x128xf32, #tpu.memory_space<vmem>>, vector<8x128xf32>
    %cst_293 = arith.constant dense<0.000000e+00> : vector<8x128xf32>
    %572 = tpu.matmul %568, %355, %cst_293 {dimension_numbers = #tpu.dot_dimension_numbers<[1], [0], [0], [1], [0, 0, 1, 1], [], []>} : vector<8x32xf32>, vector<32x128xf32>, vector<8x128xf32> -> vector<8x128xf32>
    %573 = arith.addf %571, %572 : vector<8x128xf32>
    %574 = vector.extract_strided_slice %573 {offsets = [0, 0], sizes = [8, 32], strides = [1, 1]} : vector<8x128xf32> to vector<8x32xf32>
    %575 = arith.negf %574 : vector<8x32xf32>
    %576 = math.exp %575 : vector<8x32xf32>
    %cst_294 = arith.constant 1.000000e+00 : f32
    %577 = vector.broadcast %cst_294 : f32 to vector<8x32xf32>
    %578 = arith.addf %577, %576 : vector<8x32xf32>
    %579 = arith.divf %577, %578 : vector<8x32xf32>
    %580 = vector.extract_strided_slice %573 {offsets = [0, 32], sizes = [8, 32], strides = [1, 1]} : vector<8x128xf32> to vector<8x32xf32>
    %581 = arith.negf %580 : vector<8x32xf32>
    %582 = math.exp %581 : vector<8x32xf32>
    %cst_295 = arith.constant 1.000000e+00 : f32
    %583 = vector.broadcast %cst_295 : f32 to vector<8x32xf32>
    %584 = arith.addf %583, %582 : vector<8x32xf32>
    %585 = arith.divf %583, %584 : vector<8x32xf32>
    %586 = vector.extract_strided_slice %573 {offsets = [0, 64], sizes = [8, 32], strides = [1, 1]} : vector<8x128xf32> to vector<8x32xf32>
    %587 = math.tanh %586 : vector<8x32xf32>
    %588 = vector.extract_strided_slice %573 {offsets = [0, 96], sizes = [8, 32], strides = [1, 1]} : vector<8x128xf32> to vector<8x32xf32>
    %589 = arith.negf %588 : vector<8x32xf32>
    %590 = math.exp %589 : vector<8x32xf32>
    %cst_296 = arith.constant 1.000000e+00 : f32
    %591 = vector.broadcast %cst_296 : f32 to vector<8x32xf32>
    %592 = arith.addf %591, %590 : vector<8x32xf32>
    %593 = arith.divf %591, %592 : vector<8x32xf32>
    %594 = arith.mulf %585, %569 : vector<8x32xf32>
    %595 = arith.mulf %579, %587 : vector<8x32xf32>
    %596 = arith.addf %594, %595 : vector<8x32xf32>
    %597 = math.tanh %596 : vector<8x32xf32>
    %598 = arith.mulf %593, %597 : vector<8x32xf32>
    %c0_297 = arith.constant 0 : index
    %c0_298 = arith.constant 0 : index
    %599 = vector.load %arg15[%c0_297, %c0_298] : memref<8x32xf32, #tpu.memory_space<vmem>>, vector<8x32xf32>
    tpu.vector_store %arg15[%c0_297, %c0_298], %598 {strides = array<i32>} : memref<8x32xf32, #tpu.memory_space<vmem>>, vector<8x32xf32>,
    %c0_299 = arith.constant 0 : index
    %c0_300 = arith.constant 0 : index
    %600 = vector.load %arg16[%c0_299, %c0_300] : memref<8x32xf32, #tpu.memory_space<vmem>>, vector<8x32xf32>
    tpu.vector_store %arg16[%c0_299, %c0_300], %596 {strides = array<i32>} : memref<8x32xf32, #tpu.memory_space<vmem>>, vector<8x32xf32>,
    %c7_i32_301 = arith.constant 7 : i32
    %c8_i32_302 = arith.constant 8 : i32
    %601 = arith.muli %c7_i32_301, %c8_i32_302 : i32
    %602 = tpu.assume_multiple %601, 8 : i32
    %c0_303 = arith.constant 0 : index
    %c0_304 = arith.constant 0 : index
    %603 = vector.load %arg15[%c0_303, %c0_304] : memref<8x32xf32, #tpu.memory_space<vmem>>, vector<8x32xf32>
    %c0_305 = arith.constant 0 : index
    %c0_306 = arith.constant 0 : index
    %604 = vector.load %arg16[%c0_305, %c0_306] : memref<8x32xf32, #tpu.memory_space<vmem>>, vector<8x32xf32>
    %605 = arith.index_cast %602 : i32 to index
    %c0_307 = arith.constant 0 : index
    %606 = vector.load %arg13[%605, %c0_307] : memref<64x128xf32, #tpu.memory_space<vmem>>, vector<8x128xf32>
    %cst_308 = arith.constant dense<0.000000e+00> : vector<8x128xf32>
    %607 = tpu.matmul %603, %355, %cst_308 {dimension_numbers = #tpu.dot_dimension_numbers<[1], [0], [0], [1], [0, 0, 1, 1], [], []>} : vector<8x32xf32>, vector<32x128xf32>, vector<8x128xf32> -> vector<8x128xf32>
    %608 = arith.addf %606, %607 : vector<8x128xf32>
    %609 = vector.extract_strided_slice %608 {offsets = [0, 0], sizes = [8, 32], strides = [1, 1]} : vector<8x128xf32> to vector<8x32xf32>
    %610 = arith.negf %609 : vector<8x32xf32>
    %611 = math.exp %610 : vector<8x32xf32>
    %cst_309 = arith.constant 1.000000e+00 : f32
    %612 = vector.broadcast %cst_309 : f32 to vector<8x32xf32>
    %613 = arith.addf %612, %611 : vector<8x32xf32>
    %614 = arith.divf %612, %613 : vector<8x32xf32>
    %615 = vector.extract_strided_slice %608 {offsets = [0, 32], sizes = [8, 32], strides = [1, 1]} : vector<8x128xf32> to vector<8x32xf32>
    %616 = arith.negf %615 : vector<8x32xf32>
    %617 = math.exp %616 : vector<8x32xf32>
    %cst_310 = arith.constant 1.000000e+00 : f32
    %618 = vector.broadcast %cst_310 : f32 to vector<8x32xf32>
    %619 = arith.addf %618, %617 : vector<8x32xf32>
    %620 = arith.divf %618, %619 : vector<8x32xf32>
    %621 = vector.extract_strided_slice %608 {offsets = [0, 64], sizes = [8, 32], strides = [1, 1]} : vector<8x128xf32> to vector<8x32xf32>
    %622 = math.tanh %621 : vector<8x32xf32>
    %623 = vector.extract_strided_slice %608 {offsets = [0, 96], sizes = [8, 32], strides = [1, 1]} : vector<8x128xf32> to vector<8x32xf32>
    %624 = arith.negf %623 : vector<8x32xf32>
    %625 = math.exp %624 : vector<8x32xf32>
    %cst_311 = arith.constant 1.000000e+00 : f32
    %626 = vector.broadcast %cst_311 : f32 to vector<8x32xf32>
    %627 = arith.addf %626, %625 : vector<8x32xf32>
    %628 = arith.divf %626, %627 : vector<8x32xf32>
    %629 = arith.mulf %620, %604 : vector<8x32xf32>
    %630 = arith.mulf %614, %622 : vector<8x32xf32>
    %631 = arith.addf %629, %630 : vector<8x32xf32>
    %632 = math.tanh %631 : vector<8x32xf32>
    %633 = arith.mulf %628, %632 : vector<8x32xf32>
    %c0_312 = arith.constant 0 : index
    %c0_313 = arith.constant 0 : index
    %634 = vector.load %arg15[%c0_312, %c0_313] : memref<8x32xf32, #tpu.memory_space<vmem>>, vector<8x32xf32>
    tpu.vector_store %arg15[%c0_312, %c0_313], %633 {strides = array<i32>} : memref<8x32xf32, #tpu.memory_space<vmem>>, vector<8x32xf32>,
    %c0_314 = arith.constant 0 : index
    %c0_315 = arith.constant 0 : index
    %635 = vector.load %arg16[%c0_314, %c0_315] : memref<8x32xf32, #tpu.memory_space<vmem>>, vector<8x32xf32>
    tpu.vector_store %arg16[%c0_314, %c0_315], %631 {strides = array<i32>} : memref<8x32xf32, #tpu.memory_space<vmem>>, vector<8x32xf32>,
    %c8_i32_316 = arith.constant 8 : i32
    %c0_317 = arith.constant 0 : index
    %c0_318 = arith.constant 0 : index
    %636 = vector.load %arg15[%c0_317, %c0_318] : memref<8x32xf32, #tpu.memory_space<vmem>>, vector<8x32xf32>
    %c1_319 = arith.constant 1 : index
    %c0_320 = arith.constant 0 : index
    %c0_321 = arith.constant 0 : index
    %637 = vector.load %arg10[%c1_319, %c0_320, %c0_321] : memref<2x8x32xf32, #tpu.memory_space<vmem>>, vector<1x8x32xf32>
    %638 = vector.shape_cast %637 : vector<1x8x32xf32> to vector<8x32xf32>
    %639 = vector.shape_cast %636 : vector<8x32xf32> to vector<1x8x32xf32>
    tpu.vector_store %arg10[%c1_319, %c0_320, %c0_321], %639 {strides = array<i32>} : memref<2x8x32xf32, #tpu.memory_space<vmem>>, vector<1x8x32xf32>,
    %c0_322 = arith.constant 0 : index
    %c0_323 = arith.constant 0 : index
    %640 = vector.load %arg16[%c0_322, %c0_323] : memref<8x32xf32, #tpu.memory_space<vmem>>, vector<8x32xf32>
    %c1_324 = arith.constant 1 : index
    %c0_325 = arith.constant 0 : index
    %c0_326 = arith.constant 0 : index
    %641 = vector.load %arg11[%c1_324, %c0_325, %c0_326] : memref<2x8x32xf32, #tpu.memory_space<vmem>>, vector<1x8x32xf32>
    %642 = vector.shape_cast %641 : vector<1x8x32xf32> to vector<8x32xf32>
    %643 = vector.shape_cast %640 : vector<8x32xf32> to vector<1x8x32xf32>
    tpu.vector_store %arg11[%c1_324, %c0_325, %c0_326], %643 {strides = array<i32>} : memref<2x8x32xf32, #tpu.memory_space<vmem>>, vector<1x8x32xf32>,
    return
  }
  func.func @transform_0(%arg0: i32) -> (i32, i32, i32) {
    %c0_i32 = arith.constant 0 : i32
    %c0_i32_0 = arith.constant 0 : i32
    %c0_i32_1 = arith.constant 0 : i32
    return %c0_i32, %arg0, %c0_i32_0 : i32, i32, i32
  }
  func.func @transform_1(%arg0: i32) -> (i32, i32, i32) {
    %c0_i32 = arith.constant 0 : i32
    %c0_i32_0 = arith.constant 0 : i32
    %c0_i32_1 = arith.constant 0 : i32
    return %c0_i32, %arg0, %c0_i32_0 : i32, i32, i32
  }
  func.func @transform_2(%arg0: i32) -> (i32, i32, i32) {
    %c0_i32 = arith.constant 0 : i32
    %c0_i32_0 = arith.constant 0 : i32
    %c0_i32_1 = arith.constant 0 : i32
    return %c0_i32, %arg0, %c0_i32_0 : i32, i32, i32
  }
  func.func @transform_3(%arg0: i32) -> (i32, i32) {
    %c0_i32 = arith.constant 0 : i32
    %c0_i32_0 = arith.constant 0 : i32
    %c0_i32_1 = arith.constant 0 : i32
    return %c0_i32, %c0_i32_0 : i32, i32
  }
  func.func @transform_4(%arg0: i32) -> (i32, i32) {
    %c0_i32 = arith.constant 0 : i32
    %c0_i32_0 = arith.constant 0 : i32
    %c0_i32_1 = arith.constant 0 : i32
    return %c0_i32, %c0_i32_0 : i32, i32
  }
  func.func @transform_5(%arg0: i32) -> (i32, i32) {
    %c0_i32 = arith.constant 0 : i32
    %c0_i32_0 = arith.constant 0 : i32
    %c0_i32_1 = arith.constant 0 : i32
    return %c0_i32, %c0_i32_0 : i32, i32
  }
  func.func @transform_6(%arg0: i32) -> (i32, i32) {
    %c0_i32 = arith.constant 0 : i32
    %c0_i32_0 = arith.constant 0 : i32
    %c0_i32_1 = arith.constant 0 : i32
    return %c0_i32, %c0_i32_0 : i32, i32
  }
  func.func @transform_7(%arg0: i32) -> (i32, i32) {
    %c0_i32 = arith.constant 0 : i32
    %c0_i32_0 = arith.constant 0 : i32
    %c0_i32_1 = arith.constant 0 : i32
    return %c0_i32, %c0_i32_0 : i32, i32
  }
  func.func @transform_8(%arg0: i32) -> (i32, i32) {
    %c0_i32 = arith.constant 0 : i32
    %c0_i32_0 = arith.constant 0 : i32
    %c0_i32_1 = arith.constant 0 : i32
    return %c0_i32, %c0_i32_0 : i32, i32
  }
  func.func @transform_9(%arg0: i32) -> (i32, i32, i32) {
    %c0_i32 = arith.constant 0 : i32
    %c0_i32_0 = arith.constant 0 : i32
    %c0_i32_1 = arith.constant 0 : i32
    return %c0_i32, %arg0, %c0_i32_0 : i32, i32, i32
  }
  func.func @transform_10(%arg0: i32) -> (i32, i32, i32) {
    %c0_i32 = arith.constant 0 : i32
    %c0_i32_0 = arith.constant 0 : i32
    %c0_i32_1 = arith.constant 0 : i32
    return %c0_i32, %arg0, %c0_i32_0 : i32, i32, i32
  }
}

</mosaic_0001>

<llo_original>
// kernel: tpu_custom_call.1
$region0: #{tpu_custom_call.1}
  #allocation0 [shape = 'u32[]', space=smem, size = 0x4, offset = 0x4, fixed_abs, tag = 'smem constant byte address 0x4 - core index']
  #allocation1 [shape = 'u32[144,128]{1,0:T(1,128)}', space=vmem, size = 0x12000, scoped, tag = 'internal scratch']
  #allocation2 [shape = 'f32[64,16]{1,0:T(8,128)}', space=vmem, size = 0x8000, scoped, tag = 'scratch operand']
  #allocation3 [shape = 'f32[64,128]{1,0:T(8,128)}', space=vmem, size = 0x8000, scoped, tag = 'scratch operand']
  #allocation4 [shape = 'f32[64,32]{1,0:T(8,128)}', space=vmem, size = 0x8000, scoped, tag = 'scratch operand']
  #allocation5 [shape = 'f32[8,32]{1,0:T(8,128)}', space=vmem, size = 0x1000, scoped, tag = 'scratch operand']
  #allocation6 [shape = 'f32[8,32]{1,0:T(8,128)}', space=vmem, size = 0x1000, scoped, tag = 'scratch operand']
  %s0 = inlined_call_operand.vmem [shape: f32[8,8,16], index: 0, kind: input, shape index: {}]
  %s1 = inlined_call_operand.hbm [shape: f32[2,8,32], index: 1, kind: input, shape index: {}, may-alias: {1,9}]
  %s2 = inlined_call_operand.hbm [shape: f32[2,8,32], index: 2, kind: input, shape index: {}, may-alias: {2,10}]
  %s3 = inlined_call_operand.vmem [shape: f32[16,128], index: 3, kind: input, shape index: {}]
  %s4 = inlined_call_operand.hbm [shape: f32[32,128], index: 4, kind: input, shape index: {}]
  %s5 = inlined_call_operand.vmem [shape: f32[1,128], index: 5, kind: input, shape index: {}]
  %s6 = inlined_call_operand.hbm [shape: f32[32,128], index: 6, kind: input, shape index: {}]
  %s7 = inlined_call_operand.hbm [shape: f32[32,128], index: 7, kind: input, shape index: {}]
  %s8 = inlined_call_operand.vmem [shape: f32[1,128], index: 8, kind: input, shape index: {}]
  %s9 = inlined_call_operand.hbm [shape: f32[2,8,32], index: 9, kind: output, shape index: {0}, may-alias: {1,9}]
  %s10 = inlined_call_operand.hbm [shape: f32[2,8,32], index: 10, kind: output, shape index: {1}, may-alias: {2,10}]
  %11 = xla_tuple %s9, %s10
  %s12 = sld [smem:[#allocation0]]
  $region74: #{tpu_custom_call.1} parent=0
    _
  %s14 = ssub.s32 1, %s12
  %s15 = scalar_select 0, %s14, %s12
  $region1: #{tpu_custom_call.1} parent=0
    #allocation7 [shape = 'u8[8192]{0}', space=vmem, size = 0x2000, scoped, tag = 'input window, operand 1, single buffered']
    #allocation8 [shape = 's32[1]{0}', space=sflag, size = 0x4, scoped, tag = 'scoped memory for tpu_custom_call.1']
    #allocation9 [shape = 's32[1]{0}', space=sflag, size = 0x4, scoped, tag = 'scoped memory for tpu_custom_call.1']
    #allocation10 [shape = 'u8[8192]{0}', space=vmem, size = 0x2000, scoped, tag = 'input window, operand 2, single buffered']
    #allocation11 [shape = 's32[1]{0}', space=sflag, size = 0x4, scoped, tag = 'scoped memory for tpu_custom_call.1']
    #allocation12 [shape = 'u8[16384]{0}', space=vmem, size = 0x4000, scoped, tag = 'input window, operand 4, single buffered']
    #allocation13 [shape = 'u8[16384]{0}', space=vmem, size = 0x4000, scoped, tag = 'input window, operand 6, single buffered']
    #allocation14 [shape = 's32[1]{0}', space=sflag, size = 0x4, scoped, tag = 'scoped memory for tpu_custom_call.1']
    #allocation15 [shape = 'u8[16384]{0}', space=vmem, size = 0x4000, scoped, tag = 'input window, operand 7, single buffered']
    #allocation16 [shape = 'u8[8192]{0}', space=vmem, size = 0x2000, scoped, tag = 'output window, operand 0, single buffered']
    #allocation17 [shape = 'u8[8192]{0}', space=vmem, size = 0x2000, scoped, tag = 'output window, operand 1, single buffered']
    #allocation18 [shape = 's32[1]{0}', space=sflag, size = 0x4, scoped, tag = 'scoped memory for tpu_custom_call.1']
    %16 = vsyncpa [#allocation8], 0
    %17 = vsyncpa [#allocation11], 0
    %18 = vsyncpa [#allocation14], 0
    %19 = vsyncpa [#allocation9], 0
    %20 = vsyncpa [#allocation18], 0
    // Predicated region
    $region2: #{tpu_custom_call.1} parent=1 // pred_check
      _
    $region3: #{tpu_custom_call.1} parent=1 // pred_check_branch
      %22 = sbr.rel (0) target = $region5
    $region4: #{tpu_custom_call.1} parent=1 // pred_region
      _
    $region5: #{tpu_custom_call.1} parent=1 // pred_fallthru
      _
    // Predicated region
    $region6: #{tpu_custom_call.1} parent=1 // pred_check
      _
    $region7: #{tpu_custom_call.1} parent=1 // pred_check_branch
      %24 = sbr.rel (0) target = $region9
    $region8: #{tpu_custom_call.1} parent=1 // pred_region
      %s26 = ssub.s32 256, 256
      %27 = vsyncadd [#allocation8], %s26
      %s28 = sshll.u32 [#allocation7], 4
      %s29 = int_to_ptr.vmem [resolvable:$true] %s28
      %34 = dma.hbm_to_vmem [thread:$0]  %s1, 256, %s29, [#allocation8], 128, 128, 8
    $region9: #{tpu_custom_call.1} parent=1 // pred_fallthru
      _
    // Predicated region
    $region10: #{tpu_custom_call.1} parent=1 // pred_check
      _
    $region11: #{tpu_custom_call.1} parent=1 // pred_check_branch
      %36 = sbr.rel (0) target = $region13
    $region12: #{tpu_custom_call.1} parent=1 // pred_region
      %s38 = ssub.s32 256, 256
      %39 = vsyncadd [#allocation11], %s38
      %s40 = sshll.u32 [#allocation10], 4
      %s41 = int_to_ptr.vmem [resolvable:$true] %s40
      %46 = dma.hbm_to_vmem [thread:$0]  %s2, 256, %s41, [#allocation11], 128, 128, 8
    $region13: #{tpu_custom_call.1} parent=1 // pred_fallthru
      _
    // Predicated region
    $region14: #{tpu_custom_call.1} parent=1 // pred_check
      _
    $region15: #{tpu_custom_call.1} parent=1 // pred_check_branch
      %48 = sbr.rel (0) target = $region17
    $region16: #{tpu_custom_call.1} parent=1 // pred_region
      _
    $region17: #{tpu_custom_call.1} parent=1 // pred_fallthru
      _
    // Predicated region
    $region18: #{tpu_custom_call.1} parent=1 // pred_check
      _
    $region19: #{tpu_custom_call.1} parent=1 // pred_check_branch
      %50 = sbr.rel (0) target = $region21
    $region20: #{tpu_custom_call.1} parent=1 // pred_region
      %s52 = ssub.s32 512, 512
      %53 = vsyncadd [#allocation11], %s52
      %s54 = sshll.u32 [#allocation12], 4
      %s55 = int_to_ptr.vmem [resolvable:$true] %s54
      %60 = dma.hbm_to_vmem [thread:$0]  %s4, 512, %s55, [#allocation11], 128, 128, 8
    $region21: #{tpu_custom_call.1} parent=1 // pred_fallthru
      _
    // Predicated region
    $region22: #{tpu_custom_call.1} parent=1 // pred_check
      _
    $region23: #{tpu_custom_call.1} parent=1 // pred_check_branch
      %62 = sbr.rel (0) target = $region25
    $region24: #{tpu_custom_call.1} parent=1 // pred_region
      _
    $region25: #{tpu_custom_call.1} parent=1 // pred_fallthru
      _
    // Predicated region
    $region26: #{tpu_custom_call.1} parent=1 // pred_check
      _
    $region27: #{tpu_custom_call.1} parent=1 // pred_check_branch
      %64 = sbr.rel (0) target = $region29
    $region28: #{tpu_custom_call.1} parent=1 // pred_region
      %s66 = ssub.s32 512, 512
      %67 = vsyncadd [#allocation14], %s66
      %s68 = sshll.u32 [#allocation13], 4
      %s69 = int_to_ptr.vmem [resolvable:$true] %s68
      %74 = dma.hbm_to_vmem [thread:$0]  %s6, 512, %s69, [#allocation14], 128, 128, 8
    $region29: #{tpu_custom_call.1} parent=1 // pred_fallthru
      _
    // Predicated region
    $region30: #{tpu_custom_call.1} parent=1 // pred_check
      _
    $region31: #{tpu_custom_call.1} parent=1 // pred_check_branch
      %76 = sbr.rel (0) target = $region33
    $region32: #{tpu_custom_call.1} parent=1 // pred_region
      %s78 = ssub.s32 512, 512
      %79 = vsyncadd [#allocation14], %s78
      %s80 = sshll.u32 [#allocation15], 4
      %s81 = int_to_ptr.vmem [resolvable:$true] %s80
      %86 = dma.hbm_to_vmem [thread:$0]  %s7, 512, %s81, [#allocation14], 128, 128, 8
    $region33: #{tpu_custom_call.1} parent=1 // pred_fallthru
      _
    // Predicated region
    $region34: #{tpu_custom_call.1} parent=1 // pred_check
      _
    $region35: #{tpu_custom_call.1} parent=1 // pred_check_branch
      %88 = sbr.rel (0) target = $region37
    $region36: #{tpu_custom_call.1} parent=1 // pred_region
      _
    $region37: #{tpu_custom_call.1} parent=1 // pred_fallthru
      _
    // Predicated region
    $region38: #{tpu_custom_call.1} parent=1 // pred_check
      _
    $region39: #{tpu_custom_call.1} parent=1 // pred_check_branch
      %90 = sbr.rel (0) target = $region41
    $region40: #{tpu_custom_call.1} parent=1 // pred_region
      %91 = dma.done [#allocation8], 256
    $region41: #{tpu_custom_call.1} parent=1 // pred_fallthru
      _
    // Predicated region
    $region42: #{tpu_custom_call.1} parent=1 // pred_check
      _
    $region43: #{tpu_custom_call.1} parent=1 // pred_check_branch
      %93 = sbr.rel (0) target = $region45
    $region44: #{tpu_custom_call.1} parent=1 // pred_region
      %94 = dma.done [#allocation11], 256
    $region45: #{tpu_custom_call.1} parent=1 // pred_fallthru
      _
    // Predicated region
    $region46: #{tpu_custom_call.1} parent=1 // pred_check
      _
    $region47: #{tpu_custom_call.1} parent=1 // pred_check_branch
      %96 = sbr.rel (0) target = $region49
    $region48: #{tpu_custom_call.1} parent=1 // pred_region
      %97 = dma.done [#allocation11], 512
    $region49: #{tpu_custom_call.1} parent=1 // pred_fallthru
      _
    // Predicated region
    $region50: #{tpu_custom_call.1} parent=1 // pred_check
      _
    $region51: #{tpu_custom_call.1} parent=1 // pred_check_branch
      %99 = sbr.rel (0) target = $region53
    $region52: #{tpu_custom_call.1} parent=1 // pred_region
      %100 = dma.done [#allocation14], 512
    $region53: #{tpu_custom_call.1} parent=1 // pred_fallthru
      _
    // Predicated region
    $region54: #{tpu_custom_call.1} parent=1 // pred_check
      _
    $region55: #{tpu_custom_call.1} parent=1 // pred_check_branch
      %102 = sbr.rel (0) target = $region57
    $region56: #{tpu_custom_call.1} parent=1 // pred_region
      %103 = dma.done [#allocation14], 512
    $region57: #{tpu_custom_call.1} parent=1 // pred_fallthru
      _
    %v104 = vld [vmem:[%s0] sm:$0xff]
    %vm105 = vcmask 130048
    %106 = vst.msk [vmem:[#allocation2] sm:$0xff] %vm105, %v104
    %s107 = scalar_lea.vmem %s0, 8
    %v108 = vld [vmem:[%s107] sm:$0xff]
    %109 = vst.msk [vmem:[#allocation2 + $0x8] sm:$0xff] %vm105, %v108
    %s110 = scalar_lea.vmem %s0, 16
    %v111 = vld [vmem:[%s110] sm:$0xff]
    %112 = vst.msk [vmem:[#allocation2 + $0x10] sm:$0xff] %vm105, %v111
    %s113 = scalar_lea.vmem %s0, 24
    %v114 = vld [vmem:[%s113] sm:$0xff]
    %115 = vst.msk [vmem:[#allocation2 + $0x18] sm:$0xff] %vm105, %v114
    %s116 = scalar_lea.vmem %s0, 32
    %v117 = vld [vmem:[%s116] sm:$0xff]
    %118 = vst.msk [vmem:[#allocation2 + $0x20] sm:$0xff] %vm105, %v117
    %s119 = scalar_lea.vmem %s0, 40
    %v120 = vld [vmem:[%s119] sm:$0xff]
    %121 = vst.msk [vmem:[#allocation2 + $0x28] sm:$0xff] %vm105, %v120
    %s122 = scalar_lea.vmem %s0, 48
    %v123 = vld [vmem:[%s122] sm:$0xff]
    %124 = vst.msk [vmem:[#allocation2 + $0x30] sm:$0xff] %vm105, %v123
    %s125 = scalar_lea.vmem %s0, 56
    %v126 = vld [vmem:[%s125] sm:$0xff]
    %127 = vst.msk [vmem:[#allocation2 + $0x38] sm:$0xff] %vm105, %v126
    %v128 = vld [vmem:[#allocation2] sm:$0xff]
    %v129 = vld [vmem:[#allocation2 + $0x8] sm:$0xff]
    %v130 = vld [vmem:[#allocation2 + $0x10] sm:$0xff]
    %v131 = vld [vmem:[#allocation2 + $0x18] sm:$0xff]
    %v132 = vld [vmem:[#allocation2 + $0x20] sm:$0xff]
    %v133 = vld [vmem:[#allocation2 + $0x28] sm:$0xff]
    %v134 = vld [vmem:[#allocation2 + $0x30] sm:$0xff]
    %v135 = vld [vmem:[#allocation2 + $0x38] sm:$0xff]
    %v136 = vld [vmem:[%s3] sm:$0xff]
    %v137 = vld [vmem:[%s3 + $0x8] sm:$0xff]
    %v138 = vld [vmem:[%s5] sm:$0x1]
    %v140 = vlaneseq
    %v141 = vshrl.u32 %v140, 7
    %v142 = vsub.s32 0, %v141
    %v143 = vrot.slane %v138, %v142
    %v146 = vsel %vm105, %v128, 0
    %v149 = vsel %vm105, %v129, 0
    %v152 = vsel %vm105, %v130, 0
    %v155 = vsel %vm105, %v131, 0
    %v158 = vsel %vm105, %v132, 0
    %v161 = vsel %vm105, %v133, 0
    %v164 = vsel %vm105, %v134, 0
    %v167 = vsel %vm105, %v135, 0
    %169 = vmatprep.subr.mxu0 0.0
    %170 = vmatpush1.msra.mxu0 %v136
    %171 = vmatprep.subr.mxu0 0.0
    %172 = vmatpush1.msra.mxu0 %v137
    %173 = vmatprep.subr.mxu0 0.0
    %174 = vmatpush1.msra.mxu0 0.0
    %175 = vmatprep.subr.mxu0 0.0
    %176 = vmatpush1.msra.mxu0 0.0
    %177 = vmatprep.subr.mxu0 0.0
    %178 = vmatpush1.msra.mxu0 0.0
    %179 = vmatprep.subr.mxu0 0.0
    %180 = vmatpush1.msra.mxu0 0.0
    %181 = vmatprep.subr.mxu0 0.0
    %182 = vmatpush1.msra.mxu0 0.0
    %183 = vmatprep.subr.mxu0 0.0
    %184 = vmatpush1.msra.mxu0 0.0
    %185 = vmatprep.subr.mxu0 0.0
    %186 = vmatpush1.msra.mxu0 0.0
    %187 = vmatprep.subr.mxu0 0.0
    %188 = vmatpush1.msra.mxu0 0.0
    %189 = vmatprep.subr.mxu0 0.0
    %190 = vmatpush1.msra.mxu0 0.0
    %191 = vmatprep.subr.mxu0 0.0
    %192 = vmatpush1.msra.mxu0 0.0
    %193 = vmatprep.subr.mxu0 0.0
    %194 = vmatpush1.msra.mxu0 0.0
    %195 = vmatprep.subr.mxu0 0.0
    %196 = vmatpush1.msra.mxu0 0.0
    %197 = vmatprep.subr.mxu0 0.0
    %198 = vmatpush1.msra.mxu0 0.0
    %199 = vmatprep.subr.mxu0 0.0
    %200 = vmatpush1.msra.mxu0 0.0
    %201 = vmatprep.subr.mxu0 0.0
    %202 = vmatpush1.msra.mxu0 0.0
    %203 = vmatprep.subr.mxu0 0.0
    %204 = vmatpush1.msra.mxu0 0.0
    %205 = vmatprep.subr.mxu0 0.0
    %206 = vmatpush1.msra.mxu0 0.0
    %207 = vmatprep.subr.mxu0 0.0
    %208 = vmatpush1.msra.mxu0 0.0
    %209 = vmatprep.subr.mxu0 0.0
    %210 = vmatpush1.msra.mxu0 0.0
    %211 = vmatprep.subr.mxu0 0.0
    %212 = vmatpush1.msra.mxu0 0.0
    %213 = vmatprep.subr.mxu0 0.0
    %214 = vmatpush1.msra.mxu0 0.0
    %215 = vmatprep.subr.mxu0 0.0
    %216 = vmatpush1.msra.mxu0 0.0
    %217 = vmatprep.subr.mxu0 0.0
    %218 = vmatpush1.msra.mxu0 0.0
    %219 = vmatprep.subr.mxu0 0.0
    %220 = vmatpush1.msra.mxu0 0.0
    %221 = vmatprep.subr.mxu0 0.0
    %222 = vmatpush1.msra.mxu0 0.0
    %223 = vmatprep.subr.mxu0 0.0
    %224 = vmatpush1.msra.mxu0 0.0
    %225 = vmatprep.subr.mxu0 0.0
    %226 = vmatpush1.msra.mxu0 0.0
    %227 = vmatprep.subr.mxu0 0.0
    %228 = vmatpush1.msra.mxu0 0.0
    %229 = vmatprep.subr.mxu0 0.0
    %230 = vmatpush1.msra.mxu0 0.0
    %231 = vmatprep.subr.mxu0 0.0
    %232 = vmatpush1.msra.mxu0 0.0
    %233 = vmatprep.mubr.f32.mxu0 0.0
    %234 = vmatmul.mubr.f32.gmra.mrb[0].mxu0 %v146
    %v235 = vpop.f32.mrb[0].mxu0
    %v236 = vadd.f32 %v143, %v235
    %v237 = vpop.f32.mrb[0].mxu0
    %238 = vmatprep.mubr.f32.mxu0 0.0
    %239 = vmatmul.mubr.f32.gmra.mrb[0].mxu0 %v149
    %v240 = vpop.f32.mrb[0].mxu0
    %v241 = vadd.f32 %v143, %v240
    %v242 = vpop.f32.mrb[0].mxu0
    %243 = vmatprep.mubr.f32.mxu0 0.0
    %244 = vmatmul.mubr.f32.gmra.mrb[0].mxu0 %v152
    %v245 = vpop.f32.mrb[0].mxu0
    %v246 = vadd.f32 %v143, %v245
    %v247 = vpop.f32.mrb[0].mxu0
    %248 = vmatprep.mubr.f32.mxu0 0.0
    %249 = vmatmul.mubr.f32.gmra.mrb[0].mxu0 %v155
    %v250 = vpop.f32.mrb[0].mxu0
    %v251 = vadd.f32 %v143, %v250
    %v252 = vpop.f32.mrb[0].mxu0
    %253 = vmatprep.mubr.f32.mxu0 0.0
    %254 = vmatmul.mubr.f32.gmra.mrb[0].mxu0 %v158
    %v255 = vpop.f32.mrb[0].mxu0
    %v256 = vadd.f32 %v143, %v255
    %v257 = vpop.f32.mrb[0].mxu0
    %258 = vmatprep.mubr.f32.mxu0 0.0
    %259 = vmatmul.mubr.f32.gmra.mrb[0].mxu0 %v161
    %v260 = vpop.f32.mrb[0].mxu0
    %v261 = vadd.f32 %v143, %v260
    %v262 = vpop.f32.mrb[0].mxu0
    %263 = vmatprep.mubr.f32.mxu0 0.0
    %264 = vmatmul.mubr.f32.gmra.mrb[0].mxu0 %v164
    %v265 = vpop.f32.mrb[0].mxu0
    %v266 = vadd.f32 %v143, %v265
    %v267 = vpop.f32.mrb[0].mxu0
    %268 = vmatprep.mubr.f32.mxu0 0.0
    %269 = vmatmul.mubr.f32.gmra.mrb[0].mxu0 %v167
    %v270 = vpop.f32.mrb[0].mxu0
    %v271 = vadd.f32 %v143, %v270
    %v272 = vpop.f32.mrb[0].mxu0
    %273 = vdwg.mxu0
    %274 = vst [vmem:[#allocation3] sm:$0xff] %v236
    %275 = vst [vmem:[#allocation3 + $0x8] sm:$0xff] %v241
    %276 = vst [vmem:[#allocation3 + $0x10] sm:$0xff] %v246
    %277 = vst [vmem:[#allocation3 + $0x18] sm:$0xff] %v251
    %278 = vst [vmem:[#allocation3 + $0x20] sm:$0xff] %v256
    %279 = vst [vmem:[#allocation3 + $0x28] sm:$0xff] %v261
    %280 = vst [vmem:[#allocation3 + $0x30] sm:$0xff] %v266
    %281 = vst [vmem:[#allocation3 + $0x38] sm:$0xff] %v271
    %v282 = vld [vmem:[#allocation7] sm:$0xff]
    %vm283 = vcmask 261120
    %284 = vst.msk [vmem:[#allocation5] sm:$0xff] %vm283, %v282
    %v285 = vld [vmem:[#allocation10] sm:$0xff]
    %286 = vst.msk [vmem:[#allocation6] sm:$0xff] %vm283, %v285
    %v287 = vld [vmem:[#allocation12] sm:$0xff]
    %v288 = vld [vmem:[#allocation12 + $0x8] sm:$0xff]
    %v289 = vld [vmem:[#allocation12 + $0x10] sm:$0xff]
    %v290 = vld [vmem:[#allocation12 + $0x18] sm:$0xff]
    %v291 = vld [vmem:[#allocation5] sm:$0xff]
    %v292 = vld [vmem:[#allocation6] sm:$0xff]
    %v293 = vld [vmem:[#allocation3] sm:$0xff]
    %v295 = vsel %vm283, %v291, 0
    %297 = vmatprep.subr.mxu0 0.0
    %298 = vmatpush1.msra.mxu0 %v287
    %299 = vmatprep.subr.mxu0 0.0
    %300 = vmatpush1.msra.mxu0 %v288
    %301 = vmatprep.subr.mxu0 0.0
    %302 = vmatpush1.msra.mxu0 %v289
    %303 = vmatprep.subr.mxu0 0.0
    %304 = vmatpush1.msra.mxu0 %v290
    %305 = vmatprep.subr.mxu0 0.0
    %306 = vmatpush1.msra.mxu0 0.0
    %307 = vmatprep.subr.mxu0 0.0
    %308 = vmatpush1.msra.mxu0 0.0
    %309 = vmatprep.subr.mxu0 0.0
    %310 = vmatpush1.msra.mxu0 0.0
    %311 = vmatprep.subr.mxu0 0.0
    %312 = vmatpush1.msra.mxu0 0.0
    %313 = vmatprep.subr.mxu0 0.0
    %314 = vmatpush1.msra.mxu0 0.0
    %315 = vmatprep.subr.mxu0 0.0
    %316 = vmatpush1.msra.mxu0 0.0
    %317 = vmatprep.subr.mxu0 0.0
    %318 = vmatpush1.msra.mxu0 0.0
    %319 = vmatprep.subr.mxu0 0.0
    %320 = vmatpush1.msra.mxu0 0.0
    %321 = vmatprep.subr.mxu0 0.0
    %322 = vmatpush1.msra.mxu0 0.0
    %323 = vmatprep.subr.mxu0 0.0
    %324 = vmatpush1.msra.mxu0 0.0
    %325 = vmatprep.subr.mxu0 0.0
    %326 = vmatpush1.msra.mxu0 0.0
    %327 = vmatprep.subr.mxu0 0.0
    %328 = vmatpush1.msra.mxu0 0.0
    %329 = vmatprep.subr.mxu0 0.0
    %330 = vmatpush1.msra.mxu0 0.0
    %331 = vmatprep.subr.mxu0 0.0
    %332 = vmatpush1.msra.mxu0 0.0
    %333 = vmatprep.subr.mxu0 0.0
    %334 = vmatpush1.msra.mxu0 0.0
    %335 = vmatprep.subr.mxu0 0.0
    %336 = vmatpush1.msra.mxu0 0.0
    %337 = vmatprep.subr.mxu0 0.0
    %338 = vmatpush1.msra.mxu0 0.0
    %339 = vmatprep.subr.mxu0 0.0
    %340 = vmatpush1.msra.mxu0 0.0
    %341 = vmatprep.subr.mxu0 0.0
    %342 = vmatpush1.msra.mxu0 0.0
    %343 = vmatprep.subr.mxu0 0.0
    %344 = vmatpush1.msra.mxu0 0.0
    %345 = vmatprep.subr.mxu0 0.0
    %346 = vmatpush1.msra.mxu0 0.0
    %347 = vmatprep.subr.mxu0 0.0
    %348 = vmatpush1.msra.mxu0 0.0
    %349 = vmatprep.subr.mxu0 0.0
    %350 = vmatpush1.msra.mxu0 0.0
    %351 = vmatprep.subr.mxu0 0.0
    %352 = vmatpush1.msra.mxu0 0.0
    %353 = vmatprep.subr.mxu0 0.0
    %354 = vmatpush1.msra.mxu0 0.0
    %355 = vmatprep.subr.mxu0 0.0
    %356 = vmatpush1.msra.mxu0 0.0
    %357 = vmatprep.subr.mxu0 0.0
    %358 = vmatpush1.msra.mxu0 0.0
    %359 = vmatprep.subr.mxu0 0.0
    %360 = vmatpush1.msra.mxu0 0.0
    %361 = vmatprep.mubr.f32.mxu0 0.0
    %362 = vmatmul.mubr.f32.gmra.mrb[0].mxu0 %v295
    %v363 = vpop.f32.mrb[0].mxu0
    %v364 = vadd.f32 0.0, %v363
    %v365 = vpop.f32.mrb[0].mxu0
    %366 = vdwg.mxu0
    %v367 = vadd.f32 %v293, %v364
    %v368 = vxor.u32 %v367, 2147483648
    %v369 = vmul.f32 %v368, 1.442695
    %v370 = vpow.pop %v369
    %v371 = vadd.f32 %v370, 1.0
    %v372 = vrcp.pop %v371
    %v373 = vmul.f32 1.0, %v372
    %v374 = vtanh.pop %v367
    %376 = vrot.lane.b32.xlu0 %v292, 32
    %v377 = vpop.permute.xlu0 %376
    %v379 = vmul.f32 %v373, %v377
    %381 = vrot.lane.b32.xlu0 %v374, 64
    %v382 = vpop.permute.xlu0 %381
    %v384 = vmul.f32 %v373, %v382
    %386 = vrot.lane.b32.xlu0 %v384, 32
    %v387 = vpop.permute.xlu0 %386
    %v389 = vadd.f32 %v379, %v387
    %v390 = vtanh.pop %v389
    %392 = vrot.lane.b32.xlu0 %v390, 64
    %v393 = vpop.permute.xlu0 %392
    %v395 = vmul.f32 %v373, %v393
    %397 = vrot.lane.b32.xlu0 %v395, 32
    %v398 = vpop.permute.xlu0 %397
    %400 = vst.msk [vmem:[#allocation5] sm:$0xff] %vm283, %v398
    %402 = vrot.lane.b32.xlu0 %v389, 96
    %v403 = vpop.permute.xlu0 %402
    %405 = vst.msk [vmem:[#allocation6] sm:$0xff] %vm283, %v403
    %406 = vst.msk [vmem:[#allocation4] sm:$0xff] %vm283, %v398
    %v407 = vld [vmem:[#allocation5] sm:$0xff]
    %v408 = vld [vmem:[#allocation6] sm:$0xff]
    %s409 = scalar_lea.vmem [#allocation3], 8
    %v410 = vld [vmem:[%s409] sm:$0xff]
    %v412 = vsel %vm283, %v407, 0
    %414 = vmatprep.subr.mxu0 0.0
    %415 = vmatpush1.msra.mxu0 %v287
    %416 = vmatprep.subr.mxu0 0.0
    %417 = vmatpush1.msra.mxu0 %v288
    %418 = vmatprep.subr.mxu0 0.0
    %419 = vmatpush1.msra.mxu0 %v289
    %420 = vmatprep.subr.mxu0 0.0
    %421 = vmatpush1.msra.mxu0 %v290
    %422 = vmatprep.subr.mxu0 0.0
    %423 = vmatpush1.msra.mxu0 0.0
    %424 = vmatprep.subr.mxu0 0.0
    %425 = vmatpush1.msra.mxu0 0.0
    %426 = vmatprep.subr.mxu0 0.0
    %427 = vmatpush1.msra.mxu0 0.0
    %428 = vmatprep.subr.mxu0 0.0
    %429 = vmatpush1.msra.mxu0 0.0
    %430 = vmatprep.subr.mxu0 0.0
    %431 = vmatpush1.msra.mxu0 0.0
    %432 = vmatprep.subr.mxu0 0.0
    %433 = vmatpush1.msra.mxu0 0.0
    %434 = vmatprep.subr.mxu0 0.0
    %435 = vmatpush1.msra.mxu0 0.0
    %436 = vmatprep.subr.mxu0 0.0
    %437 = vmatpush1.msra.mxu0 0.0
    %438 = vmatprep.subr.mxu0 0.0
    %439 = vmatpush1.msra.mxu0 0.0
    %440 = vmatprep.subr.mxu0 0.0
    %441 = vmatpush1.msra.mxu0 0.0
    %442 = vmatprep.subr.mxu0 0.0
    %443 = vmatpush1.msra.mxu0 0.0
    %444 = vmatprep.subr.mxu0 0.0
    %445 = vmatpush1.msra.mxu0 0.0
    %446 = vmatprep.subr.mxu0 0.0
    %447 = vmatpush1.msra.mxu0 0.0
    %448 = vmatprep.subr.mxu0 0.0
    %449 = vmatpush1.msra.mxu0 0.0
    %450 = vmatprep.subr.mxu0 0.0
    %451 = vmatpush1.msra.mxu0 0.0
    %452 = vmatprep.subr.mxu0 0.0
    %453 = vmatpush1.msra.mxu0 0.0
    %454 = vmatprep.subr.mxu0 0.0
    %455 = vmatpush1.msra.mxu0 0.0
    %456 = vmatprep.subr.mxu0 0.0
    %457 = vmatpush1.msra.mxu0 0.0
    %458 = vmatprep.subr.mxu0 0.0
    %459 = vmatpush1.msra.mxu0 0.0
    %460 = vmatprep.subr.mxu0 0.0
    %461 = vmatpush1.msra.mxu0 0.0
    %462 = vmatprep.subr.mxu0 0.0
    %463 = vmatpush1.msra.mxu0 0.0
    %464 = vmatprep.subr.mxu0 0.0
    %465 = vmatpush1.msra.mxu0 0.0
    %466 = vmatprep.subr.mxu0 0.0
    %467 = vmatpush1.msra.mxu0 0.0
    %468 = vmatprep.subr.mxu0 0.0
    %469 = vmatpush1.msra.mxu0 0.0
    %470 = vmatprep.subr.mxu0 0.0
    %471 = vmatpush1.msra.mxu0 0.0
    %472 = vmatprep.subr.mxu0 0.0
    %473 = vmatpush1.msra.mxu0 0.0
    %474 = vmatprep.subr.mxu0 0.0
    %475 = vmatpush1.msra.mxu0 0.0
    %476 = vmatprep.subr.mxu0 0.0
    %477 = vmatpush1.msra.mxu0 0.0
    %478 = vmatprep.mubr.f32.mxu0 0.0
    %479 = vmatmul.mubr.f32.gmra.mrb[0].mxu0 %v412
    %v480 = vpop.f32.mrb[0].mxu0
    %v481 = vadd.f32 0.0, %v480
    %v482 = vpop.f32.mrb[0].mxu0
    %483 = vdwg.mxu0
    %v484 = vadd.f32 %v410, %v481
    %v485 = vxor.u32 %v484, 2147483648
    %v486 = vmul.f32 %v485, 1.442695
    %v487 = vpow.pop %v486
    %v488 = vadd.f32 %v487, 1.0
    %v489 = vrcp.pop %v488
    %v490 = vmul.f32 1.0, %v489
    %v491 = vtanh.pop %v484
    %493 = vrot.lane.b32.xlu0 %v408, 32
    %v494 = vpop.permute.xlu0 %493
    %v496 = vmul.f32 %v490, %v494
    %498 = vrot.lane.b32.xlu0 %v491, 64
    %v499 = vpop.permute.xlu0 %498
    %v501 = vmul.f32 %v490, %v499
    %503 = vrot.lane.b32.xlu0 %v501, 32
    %v504 = vpop.permute.xlu0 %503
    %v506 = vadd.f32 %v496, %v504
    %v507 = vtanh.pop %v506
    %509 = vrot.lane.b32.xlu0 %v507, 64
    %v510 = vpop.permute.xlu0 %509
    %v512 = vmul.f32 %v490, %v510
    %514 = vrot.lane.b32.xlu0 %v512, 32
    %v515 = vpop.permute.xlu0 %514
    %517 = vst.msk [vmem:[#allocation5] sm:$0xff] %vm283, %v515
    %519 = vrot.lane.b32.xlu0 %v506, 96
    %v520 = vpop.permute.xlu0 %519
    %522 = vst.msk [vmem:[#allocation6] sm:$0xff] %vm283, %v520
    %s523 = scalar_lea.vmem [#allocation4], 8
    %524 = vst.msk [vmem:[%s523] sm:$0xff] %vm283, %v515
    %v525 = vld [vmem:[#allocation5] sm:$0xff]
    %v526 = vld [vmem:[#allocation6] sm:$0xff]
    %s527 = scalar_lea.vmem [#allocation3], 16
    %v528 = vld [vmem:[%s527] sm:$0xff]
    %v530 = vsel %vm283, %v525, 0
    %532 = vmatprep.subr.mxu0 0.0
    %533 = vmatpush1.msra.mxu0 %v287
    %534 = vmatprep.subr.mxu0 0.0
    %535 = vmatpush1.msra.mxu0 %v288
    %536 = vmatprep.subr.mxu0 0.0
    %537 = vmatpush1.msra.mxu0 %v289
    %538 = vmatprep.subr.mxu0 0.0
    %539 = vmatpush1.msra.mxu0 %v290
    %540 = vmatprep.subr.mxu0 0.0
    %541 = vmatpush1.msra.mxu0 0.0
    %542 = vmatprep.subr.mxu0 0.0
    %543 = vmatpush1.msra.mxu0 0.0
    %544 = vmatprep.subr.mxu0 0.0
    %545 = vmatpush1.msra.mxu0 0.0
    %546 = vmatprep.subr.mxu0 0.0
    %547 = vmatpush1.msra.mxu0 0.0
    %548 = vmatprep.subr.mxu0 0.0
    %549 = vmatpush1.msra.mxu0 0.0
    %550 = vmatprep.subr.mxu0 0.0
    %551 = vmatpush1.msra.mxu0 0.0
    %552 = vmatprep.subr.mxu0 0.0
    %553 = vmatpush1.msra.mxu0 0.0
    %554 = vmatprep.subr.mxu0 0.0
    %555 = vmatpush1.msra.mxu0 0.0
    %556 = vmatprep.subr.mxu0 0.0
    %557 = vmatpush1.msra.mxu0 0.0
    %558 = vmatprep.subr.mxu0 0.0
    %559 = vmatpush1.msra.mxu0 0.0
    %560 = vmatprep.subr.mxu0 0.0
    %561 = vmatpush1.msra.mxu0 0.0
    %562 = vmatprep.subr.mxu0 0.0
    %563 = vmatpush1.msra.mxu0 0.0
    %564 = vmatprep.subr.mxu0 0.0
    %565 = vmatpush1.msra.mxu0 0.0
    %566 = vmatprep.subr.mxu0 0.0
    %567 = vmatpush1.msra.mxu0 0.0
    %568 = vmatprep.subr.mxu0 0.0
    %569 = vmatpush1.msra.mxu0 0.0
    %570 = vmatprep.subr.mxu0 0.0
    %571 = vmatpush1.msra.mxu0 0.0
    %572 = vmatprep.subr.mxu0 0.0
    %573 = vmatpush1.msra.mxu0 0.0
    %574 = vmatprep.subr.mxu0 0.0
    %575 = vmatpush1.msra.mxu0 0.0
    %576 = vmatprep.subr.mxu0 0.0
    %577 = vmatpush1.msra.mxu0 0.0
    %578 = vmatprep.subr.mxu0 0.0
    %579 = vmatpush1.msra.mxu0 0.0
    %580 = vmatprep.subr.mxu0 0.0
    %581 = vmatpush1.msra.mxu0 0.0
    %582 = vmatprep.subr.mxu0 0.0
    %583 = vmatpush1.msra.mxu0 0.0
    %584 = vmatprep.subr.mxu0 0.0
    %585 = vmatpush1.msra.mxu0 0.0
    %586 = vmatprep.subr.mxu0 0.0
    %587 = vmatpush1.msra.mxu0 0.0
    %588 = vmatprep.subr.mxu0 0.0
    %589 = vmatpush1.msra.mxu0 0.0
    %590 = vmatprep.subr.mxu0 0.0
    %591 = vmatpush1.msra.mxu0 0.0
    %592 = vmatprep.subr.mxu0 0.0
    %593 = vmatpush1.msra.mxu0 0.0
    %594 = vmatprep.subr.mxu0 0.0
    %595 = vmatpush1.msra.mxu0 0.0
    %596 = vmatprep.mubr.f32.mxu0 0.0
    %597 = vmatmul.mubr.f32.gmra.mrb[0].mxu0 %v530
    %v598 = vpop.f32.mrb[0].mxu0
    %v599 = vadd.f32 0.0, %v598
    %v600 = vpop.f32.mrb[0].mxu0
    %601 = vdwg.mxu0
    %v602 = vadd.f32 %v528, %v599
    %v603 = vxor.u32 %v602, 2147483648
    %v604 = vmul.f32 %v603, 1.442695
    %v605 = vpow.pop %v604
    %v606 = vadd.f32 %v605, 1.0
    %v607 = vrcp.pop %v606
    %v608 = vmul.f32 1.0, %v607
    %v609 = vtanh.pop %v602
    %611 = vrot.lane.b32.xlu0 %v526, 32
    %v612 = vpop.permute.xlu0 %611
    %v614 = vmul.f32 %v608, %v612
    %616 = vrot.lane.b32.xlu0 %v609, 64
    %v617 = vpop.permute.xlu0 %616
    %v619 = vmul.f32 %v608, %v617
    %621 = vrot.lane.b32.xlu0 %v619, 32
    %v622 = vpop.permute.xlu0 %621
    %v624 = vadd.f32 %v614, %v622
    %v625 = vtanh.pop %v624
    %627 = vrot.lane.b32.xlu0 %v625, 64
    %v628 = vpop.permute.xlu0 %627
    %v630 = vmul.f32 %v608, %v628
    %632 = vrot.lane.b32.xlu0 %v630, 32
    %v633 = vpop.permute.xlu0 %632
    %635 = vst.msk [vmem:[#allocation5] sm:$0xff] %vm283, %v633
    %637 = vrot.lane.b32.xlu0 %v624, 96
    %v638 = vpop.permute.xlu0 %637
    %640 = vst.msk [vmem:[#allocation6] sm:$0xff] %vm283, %v638
    %s641 = scalar_lea.vmem [#allocation4], 16
    %642 = vst.msk [vmem:[%s641] sm:$0xff] %vm283, %v633
    %v643 = vld [vmem:[#allocation5] sm:$0xff]
    %v644 = vld [vmem:[#allocation6] sm:$0xff]
    %s645 = scalar_lea.vmem [#allocation3], 24
    %v646 = vld [vmem:[%s645] sm:$0xff]
    %v648 = vsel %vm283, %v643, 0
    %650 = vmatprep.subr.mxu0 0.0
    %651 = vmatpush1.msra.mxu0 %v287
    %652 = vmatprep.subr.mxu0 0.0
    %653 = vmatpush1.msra.mxu0 %v288
    %654 = vmatprep.subr.mxu0 0.0
    %655 = vmatpush1.msra.mxu0 %v289
    %656 = vmatprep.subr.mxu0 0.0
    %657 = vmatpush1.msra.mxu0 %v290
    %658 = vmatprep.subr.mxu0 0.0
    %659 = vmatpush1.msra.mxu0 0.0
    %660 = vmatprep.subr.mxu0 0.0
    %661 = vmatpush1.msra.mxu0 0.0
    %662 = vmatprep.subr.mxu0 0.0
    %663 = vmatpush1.msra.mxu0 0.0
    %664 = vmatprep.subr.mxu0 0.0
    %665 = vmatpush1.msra.mxu0 0.0
    %666 = vmatprep.subr.mxu0 0.0
    %667 = vmatpush1.msra.mxu0 0.0
    %668 = vmatprep.subr.mxu0 0.0
    %669 = vmatpush1.msra.mxu0 0.0
    %670 = vmatprep.subr.mxu0 0.0
    %671 = vmatpush1.msra.mxu0 0.0
    %672 = vmatprep.subr.mxu0 0.0
    %673 = vmatpush1.msra.mxu0 0.0
    %674 = vmatprep.subr.mxu0 0.0
    %675 = vmatpush1.msra.mxu0 0.0
    %676 = vmatprep.subr.mxu0 0.0
    %677 = vmatpush1.msra.mxu0 0.0
    %678 = vmatprep.subr.mxu0 0.0
    %679 = vmatpush1.msra.mxu0 0.0
    %680 = vmatprep.subr.mxu0 0.0
    %681 = vmatpush1.msra.mxu0 0.0
    %682 = vmatprep.subr.mxu0 0.0
    %683 = vmatpush1.msra.mxu0 0.0
    %684 = vmatprep.subr.mxu0 0.0
    %685 = vmatpush1.msra.mxu0 0.0
    %686 = vmatprep.subr.mxu0 0.0
    %687 = vmatpush1.msra.mxu0 0.0
    %688 = vmatprep.subr.mxu0 0.0
    %689 = vmatpush1.msra.mxu0 0.0
    %690 = vmatprep.subr.mxu0 0.0
    %691 = vmatpush1.msra.mxu0 0.0
    %692 = vmatprep.subr.mxu0 0.0
    %693 = vmatpush1.msra.mxu0 0.0
    %694 = vmatprep.subr.mxu0 0.0
    %695 = vmatpush1.msra.mxu0 0.0
    %696 = vmatprep.subr.mxu0 0.0
    %697 = vmatpush1.msra.mxu0 0.0
    %698 = vmatprep.subr.mxu0 0.0
    %699 = vmatpush1.msra.mxu0 0.0
    %700 = vmatprep.subr.mxu0 0.0
    %701 = vmatpush1.msra.mxu0 0.0
    %702 = vmatprep.subr.mxu0 0.0
    %703 = vmatpush1.msra.mxu0 0.0
    %704 = vmatprep.subr.mxu0 0.0
    %705 = vmatpush1.msra.mxu0 0.0
    %706 = vmatprep.subr.mxu0 0.0
    %707 = vmatpush1.msra.mxu0 0.0
    %708 = vmatprep.subr.mxu0 0.0
    %709 = vmatpush1.msra.mxu0 0.0
    %710 = vmatprep.subr.mxu0 0.0
    %711 = vmatpush1.msra.mxu0 0.0
    %712 = vmatprep.subr.mxu0 0.0
    %713 = vmatpush1.msra.mxu0 0.0
    %714 = vmatprep.mubr.f32.mxu0 0.0
    %715 = vmatmul.mubr.f32.gmra.mrb[0].mxu0 %v648
    %v716 = vpop.f32.mrb[0].mxu0
    %v717 = vadd.f32 0.0, %v716
    %v718 = vpop.f32.mrb[0].mxu0
    %719 = vdwg.mxu0
    %v720 = vadd.f32 %v646, %v717
    %v721 = vxor.u32 %v720, 2147483648
    %v722 = vmul.f32 %v721, 1.442695
    %v723 = vpow.pop %v722
    %v724 = vadd.f32 %v723, 1.0
    %v725 = vrcp.pop %v724
    %v726 = vmul.f32 1.0, %v725
    %v727 = vtanh.pop %v720
    %729 = vrot.lane.b32.xlu0 %v644, 32
    %v730 = vpop.permute.xlu0 %729
    %v732 = vmul.f32 %v726, %v730
    %734 = vrot.lane.b32.xlu0 %v727, 64
    %v735 = vpop.permute.xlu0 %734
    %v737 = vmul.f32 %v726, %v735
    %739 = vrot.lane.b32.xlu0 %v737, 32
    %v740 = vpop.permute.xlu0 %739
    %v742 = vadd.f32 %v732, %v740
    %v743 = vtanh.pop %v742
    %745 = vrot.lane.b32.xlu0 %v743, 64
    %v746 = vpop.permute.xlu0 %745
    %v748 = vmul.f32 %v726, %v746
    %750 = vrot.lane.b32.xlu0 %v748, 32
    %v751 = vpop.permute.xlu0 %750
    %753 = vst.msk [vmem:[#allocation5] sm:$0xff] %vm283, %v751
    %755 = vrot.lane.b32.xlu0 %v742, 96
    %v756 = vpop.permute.xlu0 %755
    %758 = vst.msk [vmem:[#allocation6] sm:$0xff] %vm283, %v756
    %s759 = scalar_lea.vmem [#allocation4], 24
    %760 = vst.msk [vmem:[%s759] sm:$0xff] %vm283, %v751
    %v761 = vld [vmem:[#allocation5] sm:$0xff]
    %v762 = vld [vmem:[#allocation6] sm:$0xff]
    %s763 = scalar_lea.vmem [#allocation3], 32
    %v764 = vld [vmem:[%s763] sm:$0xff]
    %v766 = vsel %vm283, %v761, 0
    %768 = vmatprep.subr.mxu0 0.0
    %769 = vmatpush1.msra.mxu0 %v287
    %770 = vmatprep.subr.mxu0 0.0
    %771 = vmatpush1.msra.mxu0 %v288
    %772 = vmatprep.subr.mxu0 0.0
    %773 = vmatpush1.msra.mxu0 %v289
    %774 = vmatprep.subr.mxu0 0.0
    %775 = vmatpush1.msra.mxu0 %v290
    %776 = vmatprep.subr.mxu0 0.0
    %777 = vmatpush1.msra.mxu0 0.0
    %778 = vmatprep.subr.mxu0 0.0
    %779 = vmatpush1.msra.mxu0 0.0
    %780 = vmatprep.subr.mxu0 0.0
    %781 = vmatpush1.msra.mxu0 0.0
    %782 = vmatprep.subr.mxu0 0.0
    %783 = vmatpush1.msra.mxu0 0.0
    %784 = vmatprep.subr.mxu0 0.0
    %785 = vmatpush1.msra.mxu0 0.0
    %786 = vmatprep.subr.mxu0 0.0
    %787 = vmatpush1.msra.mxu0 0.0
    %788 = vmatprep.subr.mxu0 0.0
    %789 = vmatpush1.msra.mxu0 0.0
    %790 = vmatprep.subr.mxu0 0.0
    %791 = vmatpush1.msra.mxu0 0.0
    %792 = vmatprep.subr.mxu0 0.0
    %793 = vmatpush1.msra.mxu0 0.0
    %794 = vmatprep.subr.mxu0 0.0
    %795 = vmatpush1.msra.mxu0 0.0
    %796 = vmatprep.subr.mxu0 0.0
    %797 = vmatpush1.msra.mxu0 0.0
    %798 = vmatprep.subr.mxu0 0.0
    %799 = vmatpush1.msra.mxu0 0.0
    %800 = vmatprep.subr.mxu0 0.0
    %801 = vmatpush1.msra.mxu0 0.0
    %802 = vmatprep.subr.mxu0 0.0
    %803 = vmatpush1.msra.mxu0 0.0
    %804 = vmatprep.subr.mxu0 0.0
    %805 = vmatpush1.msra.mxu0 0.0
    %806 = vmatprep.subr.mxu0 0.0
    %807 = vmatpush1.msra.mxu0 0.0
    %808 = vmatprep.subr.mxu0 0.0
    %809 = vmatpush1.msra.mxu0 0.0
    %810 = vmatprep.subr.mxu0 0.0
    %811 = vmatpush1.msra.mxu0 0.0
    %812 = vmatprep.subr.mxu0 0.0
    %813 = vmatpush1.msra.mxu0 0.0
    %814 = vmatprep.subr.mxu0 0.0
    %815 = vmatpush1.msra.mxu0 0.0
    %816 = vmatprep.subr.mxu0 0.0
    %817 = vmatpush1.msra.mxu0 0.0
    %818 = vmatprep.subr.mxu0 0.0
    %819 = vmatpush1.msra.mxu0 0.0
    %820 = vmatprep.subr.mxu0 0.0
    %821 = vmatpush1.msra.mxu0 0.0
    %822 = vmatprep.subr.mxu0 0.0
    %823 = vmatpush1.msra.mxu0 0.0
    %824 = vmatprep.subr.mxu0 0.0
    %825 = vmatpush1.msra.mxu0 0.0
    %826 = vmatprep.subr.mxu0 0.0
    %827 = vmatpush1.msra.mxu0 0.0
    %828 = vmatprep.subr.mxu0 0.0
    %829 = vmatpush1.msra.mxu0 0.0
    %830 = vmatprep.subr.mxu0 0.0
    %831 = vmatpush1.msra.mxu0 0.0
    %832 = vmatprep.mubr.f32.mxu0 0.0
    %833 = vmatmul.mubr.f32.gmra.mrb[0].mxu0 %v766
    %v834 = vpop.f32.mrb[0].mxu0
    %v835 = vadd.f32 0.0, %v834
    %v836 = vpop.f32.mrb[0].mxu0
    %837 = vdwg.mxu0
    %v838 = vadd.f32 %v764, %v835
    %v839 = vxor.u32 %v838, 2147483648
    %v840 = vmul.f32 %v839, 1.442695
    %v841 = vpow.pop %v840
    %v842 = vadd.f32 %v841, 1.0
    %v843 = vrcp.pop %v842
    %v844 = vmul.f32 1.0, %v843
    %v845 = vtanh.pop %v838
    %847 = vrot.lane.b32.xlu0 %v762, 32
    %v848 = vpop.permute.xlu0 %847
    %v850 = vmul.f32 %v844, %v848
    %852 = vrot.lane.b32.xlu0 %v845, 64
    %v853 = vpop.permute.xlu0 %852
    %v855 = vmul.f32 %v844, %v853
    %857 = vrot.lane.b32.xlu0 %v855, 32
    %v858 = vpop.permute.xlu0 %857
    %v860 = vadd.f32 %v850, %v858
    %v861 = vtanh.pop %v860
    %863 = vrot.lane.b32.xlu0 %v861, 64
    %v864 = vpop.permute.xlu0 %863
    %v866 = vmul.f32 %v844, %v864
    %868 = vrot.lane.b32.xlu0 %v866, 32
    %v869 = vpop.permute.xlu0 %868
    %871 = vst.msk [vmem:[#allocation5] sm:$0xff] %vm283, %v869
    %873 = vrot.lane.b32.xlu0 %v860, 96
    %v874 = vpop.permute.xlu0 %873
    %876 = vst.msk [vmem:[#allocation6] sm:$0xff] %vm283, %v874
    %s877 = scalar_lea.vmem [#allocation4], 32
    %878 = vst.msk [vmem:[%s877] sm:$0xff] %vm283, %v869
    %v879 = vld [vmem:[#allocation5] sm:$0xff]
    %v880 = vld [vmem:[#allocation6] sm:$0xff]
    %s881 = scalar_lea.vmem [#allocation3], 40
    %v882 = vld [vmem:[%s881] sm:$0xff]
    %v884 = vsel %vm283, %v879, 0
    %886 = vmatprep.subr.mxu0 0.0
    %887 = vmatpush1.msra.mxu0 %v287
    %888 = vmatprep.subr.mxu0 0.0
    %889 = vmatpush1.msra.mxu0 %v288
    %890 = vmatprep.subr.mxu0 0.0
    %891 = vmatpush1.msra.mxu0 %v289
    %892 = vmatprep.subr.mxu0 0.0
    %893 = vmatpush1.msra.mxu0 %v290
    %894 = vmatprep.subr.mxu0 0.0
    %895 = vmatpush1.msra.mxu0 0.0
    %896 = vmatprep.subr.mxu0 0.0
    %897 = vmatpush1.msra.mxu0 0.0
    %898 = vmatprep.subr.mxu0 0.0
    %899 = vmatpush1.msra.mxu0 0.0
    %900 = vmatprep.subr.mxu0 0.0
    %901 = vmatpush1.msra.mxu0 0.0
    %902 = vmatprep.subr.mxu0 0.0
    %903 = vmatpush1.msra.mxu0 0.0
    %904 = vmatprep.subr.mxu0 0.0
    %905 = vmatpush1.msra.mxu0 0.0
    %906 = vmatprep.subr.mxu0 0.0
    %907 = vmatpush1.msra.mxu0 0.0
    %908 = vmatprep.subr.mxu0 0.0
    %909 = vmatpush1.msra.mxu0 0.0
    %910 = vmatprep.subr.mxu0 0.0
    %911 = vmatpush1.msra.mxu0 0.0
    %912 = vmatprep.subr.mxu0 0.0
    %913 = vmatpush1.msra.mxu0 0.0
    %914 = vmatprep.subr.mxu0 0.0
    %915 = vmatpush1.msra.mxu0 0.0
    %916 = vmatprep.subr.mxu0 0.0
    %917 = vmatpush1.msra.mxu0 0.0
    %918 = vmatprep.subr.mxu0 0.0
    %919 = vmatpush1.msra.mxu0 0.0
    %920 = vmatprep.subr.mxu0 0.0
    %921 = vmatpush1.msra.mxu0 0.0
    %922 = vmatprep.subr.mxu0 0.0
    %923 = vmatpush1.msra.mxu0 0.0
    %924 = vmatprep.subr.mxu0 0.0
    %925 = vmatpush1.msra.mxu0 0.0
    %926 = vmatprep.subr.mxu0 0.0
    %927 = vmatpush1.msra.mxu0 0.0
    %928 = vmatprep.subr.mxu0 0.0
    %929 = vmatpush1.msra.mxu0 0.0
    %930 = vmatprep.subr.mxu0 0.0
    %931 = vmatpush1.msra.mxu0 0.0
    %932 = vmatprep.subr.mxu0 0.0
    %933 = vmatpush1.msra.mxu0 0.0
    %934 = vmatprep.subr.mxu0 0.0
    %935 = vmatpush1.msra.mxu0 0.0
    %936 = vmatprep.subr.mxu0 0.0
    %937 = vmatpush1.msra.mxu0 0.0
    %938 = vmatprep.subr.mxu0 0.0
    %939 = vmatpush1.msra.mxu0 0.0
    %940 = vmatprep.subr.mxu0 0.0
    %941 = vmatpush1.msra.mxu0 0.0
    %942 = vmatprep.subr.mxu0 0.0
    %943 = vmatpush1.msra.mxu0 0.0
    %944 = vmatprep.subr.mxu0 0.0
    %945 = vmatpush1.msra.mxu0 0.0
    %946 = vmatprep.subr.mxu0 0.0
    %947 = vmatpush1.msra.mxu0 0.0
    %948 = vmatprep.subr.mxu0 0.0
    %949 = vmatpush1.msra.mxu0 0.0
    %950 = vmatprep.mubr.f32.mxu0 0.0
    %951 = vmatmul.mubr.f32.gmra.mrb[0].mxu0 %v884
    %v952 = vpop.f32.mrb[0].mxu0
    %v953 = vadd.f32 0.0, %v952
    %v954 = vpop.f32.mrb[0].mxu0
    %955 = vdwg.mxu0
    %v956 = vadd.f32 %v882, %v953
    %v957 = vxor.u32 %v956, 2147483648
    %v958 = vmul.f32 %v957, 1.442695
    %v959 = vpow.pop %v958
    %v960 = vadd.f32 %v959, 1.0
    %v961 = vrcp.pop %v960
    %v962 = vmul.f32 1.0, %v961
    %v963 = vtanh.pop %v956
    %965 = vrot.lane.b32.xlu0 %v880, 32
    %v966 = vpop.permute.xlu0 %965
    %v968 = vmul.f32 %v962, %v966
    %970 = vrot.lane.b32.xlu0 %v963, 64
    %v971 = vpop.permute.xlu0 %970
    %v973 = vmul.f32 %v962, %v971
    %975 = vrot.lane.b32.xlu0 %v973, 32
    %v976 = vpop.permute.xlu0 %975
    %v978 = vadd.f32 %v968, %v976
    %v979 = vtanh.pop %v978
    %981 = vrot.lane.b32.xlu0 %v979, 64
    %v982 = vpop.permute.xlu0 %981
    %v984 = vmul.f32 %v962, %v982
    %986 = vrot.lane.b32.xlu0 %v984, 32
    %v987 = vpop.permute.xlu0 %986
    %989 = vst.msk [vmem:[#allocation5] sm:$0xff] %vm283, %v987
    %991 = vrot.lane.b32.xlu0 %v978, 96
    %v992 = vpop.permute.xlu0 %991
    %994 = vst.msk [vmem:[#allocation6] sm:$0xff] %vm283, %v992
    %s995 = scalar_lea.vmem [#allocation4], 40
    %996 = vst.msk [vmem:[%s995] sm:$0xff] %vm283, %v987
    %v997 = vld [vmem:[#allocation5] sm:$0xff]
    %v998 = vld [vmem:[#allocation6] sm:$0xff]
    %s999 = scalar_lea.vmem [#allocation3], 48
    %v1000 = vld [vmem:[%s999] sm:$0xff]
    %v1002 = vsel %vm283, %v997, 0
    %1004 = vmatprep.subr.mxu0 0.0
    %1005 = vmatpush1.msra.mxu0 %v287
    %1006 = vmatprep.subr.mxu0 0.0
    %1007 = vmatpush1.msra.mxu0 %v288
    %1008 = vmatprep.subr.mxu0 0.0
    %1009 = vmatpush1.msra.mxu0 %v289
    %1010 = vmatprep.subr.mxu0 0.0
    %1011 = vmatpush1.msra.mxu0 %v290
    %1012 = vmatprep.subr.mxu0 0.0
    %1013 = vmatpush1.msra.mxu0 0.0
    %1014 = vmatprep.subr.mxu0 0.0
    %1015 = vmatpush1.msra.mxu0 0.0
    %1016 = vmatprep.subr.mxu0 0.0
    %1017 = vmatpush1.msra.mxu0 0.0
    %1018 = vmatprep.subr.mxu0 0.0
    %1019 = vmatpush1.msra.mxu0 0.0
    %1020 = vmatprep.subr.mxu0 0.0
    %1021 = vmatpush1.msra.mxu0 0.0
    %1022 = vmatprep.subr.mxu0 0.0
    %1023 = vmatpush1.msra.mxu0 0.0
    %1024 = vmatprep.subr.mxu0 0.0
    %1025 = vmatpush1.msra.mxu0 0.0
    %1026 = vmatprep.subr.mxu0 0.0
    %1027 = vmatpush1.msra.mxu0 0.0
    %1028 = vmatprep.subr.mxu0 0.0
    %1029 = vmatpush1.msra.mxu0 0.0
    %1030 = vmatprep.subr.mxu0 0.0
    %1031 = vmatpush1.msra.mxu0 0.0
    %1032 = vmatprep.subr.mxu0 0.0
    %1033 = vmatpush1.msra.mxu0 0.0
    %1034 = vmatprep.subr.mxu0 0.0
    %1035 = vmatpush1.msra.mxu0 0.0
    %1036 = vmatprep.subr.mxu0 0.0
    %1037 = vmatpush1.msra.mxu0 0.0
    %1038 = vmatprep.subr.mxu0 0.0
    %1039 = vmatpush1.msra.mxu0 0.0
    %1040 = vmatprep.subr.mxu0 0.0
    %1041 = vmatpush1.msra.mxu0 0.0
    %1042 = vmatprep.subr.mxu0 0.0
    %1043 = vmatpush1.msra.mxu0 0.0
    %1044 = vmatprep.subr.mxu0 0.0
    %1045 = vmatpush1.msra.mxu0 0.0
    %1046 = vmatprep.subr.mxu0 0.0
    %1047 = vmatpush1.msra.mxu0 0.0
    %1048 = vmatprep.subr.mxu0 0.0
    %1049 = vmatpush1.msra.mxu0 0.0
    %1050 = vmatprep.subr.mxu0 0.0
    %1051 = vmatpush1.msra.mxu0 0.0
    %1052 = vmatprep.subr.mxu0 0.0
    %1053 = vmatpush1.msra.mxu0 0.0
    %1054 = vmatprep.subr.mxu0 0.0
    %1055 = vmatpush1.msra.mxu0 0.0
    %1056 = vmatprep.subr.mxu0 0.0
    %1057 = vmatpush1.msra.mxu0 0.0
    %1058 = vmatprep.subr.mxu0 0.0
    %1059 = vmatpush1.msra.mxu0 0.0
    %1060 = vmatprep.subr.mxu0 0.0
    %1061 = vmatpush1.msra.mxu0 0.0
    %1062 = vmatprep.subr.mxu0 0.0
    %1063 = vmatpush1.msra.mxu0 0.0
    %1064 = vmatprep.subr.mxu0 0.0
    %1065 = vmatpush1.msra.mxu0 0.0
    %1066 = vmatprep.subr.mxu0 0.0
    %1067 = vmatpush1.msra.mxu0 0.0
    %1068 = vmatprep.mubr.f32.mxu0 0.0
    %1069 = vmatmul.mubr.f32.gmra.mrb[0].mxu0 %v1002
    %v1070 = vpop.f32.mrb[0].mxu0
    %v1071 = vadd.f32 0.0, %v1070
    %v1072 = vpop.f32.mrb[0].mxu0
    %1073 = vdwg.mxu0
    %v1074 = vadd.f32 %v1000, %v1071
    %v1075 = vxor.u32 %v1074, 2147483648
    %v1076 = vmul.f32 %v1075, 1.442695
    %v1077 = vpow.pop %v1076
    %v1078 = vadd.f32 %v1077, 1.0
    %v1079 = vrcp.pop %v1078
    %v1080 = vmul.f32 1.0, %v1079
    %v1081 = vtanh.pop %v1074
    %1083 = vrot.lane.b32.xlu0 %v998, 32
    %v1084 = vpop.permute.xlu0 %1083
    %v1086 = vmul.f32 %v1080, %v1084
    %1088 = vrot.lane.b32.xlu0 %v1081, 64
    %v1089 = vpop.permute.xlu0 %1088
    %v1091 = vmul.f32 %v1080, %v1089
    %1093 = vrot.lane.b32.xlu0 %v1091, 32
    %v1094 = vpop.permute.xlu0 %1093
    %v1096 = vadd.f32 %v1086, %v1094
    %v1097 = vtanh.pop %v1096
    %1099 = vrot.lane.b32.xlu0 %v1097, 64
    %v1100 = vpop.permute.xlu0 %1099
    %v1102 = vmul.f32 %v1080, %v1100
    %1104 = vrot.lane.b32.xlu0 %v1102, 32
    %v1105 = vpop.permute.xlu0 %1104
    %1107 = vst.msk [vmem:[#allocation5] sm:$0xff] %vm283, %v1105
    %1109 = vrot.lane.b32.xlu0 %v1096, 96
    %v1110 = vpop.permute.xlu0 %1109
    %1112 = vst.msk [vmem:[#allocation6] sm:$0xff] %vm283, %v1110
    %s1113 = scalar_lea.vmem [#allocation4], 48
    %1114 = vst.msk [vmem:[%s1113] sm:$0xff] %vm283, %v1105
    %v1115 = vld [vmem:[#allocation5] sm:$0xff]
    %v1116 = vld [vmem:[#allocation6] sm:$0xff]
    %s1117 = scalar_lea.vmem [#allocation3], 56
    %v1118 = vld [vmem:[%s1117] sm:$0xff]
    %v1120 = vsel %vm283, %v1115, 0
    %1122 = vmatprep.subr.mxu0 0.0
    %1123 = vmatpush1.msra.mxu0 %v287
    %1124 = vmatprep.subr.mxu0 0.0
    %1125 = vmatpush1.msra.mxu0 %v288
    %1126 = vmatprep.subr.mxu0 0.0
    %1127 = vmatpush1.msra.mxu0 %v289
    %1128 = vmatprep.subr.mxu0 0.0
    %1129 = vmatpush1.msra.mxu0 %v290
    %1130 = vmatprep.subr.mxu0 0.0
    %1131 = vmatpush1.msra.mxu0 0.0
    %1132 = vmatprep.subr.mxu0 0.0
    %1133 = vmatpush1.msra.mxu0 0.0
    %1134 = vmatprep.subr.mxu0 0.0
    %1135 = vmatpush1.msra.mxu0 0.0
    %1136 = vmatprep.subr.mxu0 0.0
    %1137 = vmatpush1.msra.mxu0 0.0
    %1138 = vmatprep.subr.mxu0 0.0
    %1139 = vmatpush1.msra.mxu0 0.0
    %1140 = vmatprep.subr.mxu0 0.0
    %1141 = vmatpush1.msra.mxu0 0.0
    %1142 = vmatprep.subr.mxu0 0.0
    %1143 = vmatpush1.msra.mxu0 0.0
    %1144 = vmatprep.subr.mxu0 0.0
    %1145 = vmatpush1.msra.mxu0 0.0
    %1146 = vmatprep.subr.mxu0 0.0
    %1147 = vmatpush1.msra.mxu0 0.0
    %1148 = vmatprep.subr.mxu0 0.0
    %1149 = vmatpush1.msra.mxu0 0.0
    %1150 = vmatprep.subr.mxu0 0.0
    %1151 = vmatpush1.msra.mxu0 0.0
    %1152 = vmatprep.subr.mxu0 0.0
    %1153 = vmatpush1.msra.mxu0 0.0
    %1154 = vmatprep.subr.mxu0 0.0
    %1155 = vmatpush1.msra.mxu0 0.0
    %1156 = vmatprep.subr.mxu0 0.0
    %1157 = vmatpush1.msra.mxu0 0.0
    %1158 = vmatprep.subr.mxu0 0.0
    %1159 = vmatpush1.msra.mxu0 0.0
    %1160 = vmatprep.subr.mxu0 0.0
    %1161 = vmatpush1.msra.mxu0 0.0
    %1162 = vmatprep.subr.mxu0 0.0
    %1163 = vmatpush1.msra.mxu0 0.0
    %1164 = vmatprep.subr.mxu0 0.0
    %1165 = vmatpush1.msra.mxu0 0.0
    %1166 = vmatprep.subr.mxu0 0.0
    %1167 = vmatpush1.msra.mxu0 0.0
    %1168 = vmatprep.subr.mxu0 0.0
    %1169 = vmatpush1.msra.mxu0 0.0
    %1170 = vmatprep.subr.mxu0 0.0
    %1171 = vmatpush1.msra.mxu0 0.0
    %1172 = vmatprep.subr.mxu0 0.0
    %1173 = vmatpush1.msra.mxu0 0.0
    %1174 = vmatprep.subr.mxu0 0.0
    %1175 = vmatpush1.msra.mxu0 0.0
    %1176 = vmatprep.subr.mxu0 0.0
    %1177 = vmatpush1.msra.mxu0 0.0
    %1178 = vmatprep.subr.mxu0 0.0
    %1179 = vmatpush1.msra.mxu0 0.0
    %1180 = vmatprep.subr.mxu0 0.0
    %1181 = vmatpush1.msra.mxu0 0.0
    %1182 = vmatprep.subr.mxu0 0.0
    %1183 = vmatpush1.msra.mxu0 0.0
    %1184 = vmatprep.subr.mxu0 0.0
    %1185 = vmatpush1.msra.mxu0 0.0
    %1186 = vmatprep.mubr.f32.mxu0 0.0
    %1187 = vmatmul.mubr.f32.gmra.mrb[0].mxu0 %v1120
    %v1188 = vpop.f32.mrb[0].mxu0
    %v1189 = vadd.f32 0.0, %v1188
    %v1190 = vpop.f32.mrb[0].mxu0
    %1191 = vdwg.mxu0
    %v1192 = vadd.f32 %v1118, %v1189
    %v1193 = vxor.u32 %v1192, 2147483648
    %v1194 = vmul.f32 %v1193, 1.442695
    %v1195 = vpow.pop %v1194
    %v1196 = vadd.f32 %v1195, 1.0
    %v1197 = vrcp.pop %v1196
    %v1198 = vmul.f32 1.0, %v1197
    %v1199 = vtanh.pop %v1192
    %1201 = vrot.lane.b32.xlu0 %v1116, 32
    %v1202 = vpop.permute.xlu0 %1201
    %v1204 = vmul.f32 %v1198, %v1202
    %1206 = vrot.lane.b32.xlu0 %v1199, 64
    %v1207 = vpop.permute.xlu0 %1206
    %v1209 = vmul.f32 %v1198, %v1207
    %1211 = vrot.lane.b32.xlu0 %v1209, 32
    %v1212 = vpop.permute.xlu0 %1211
    %v1214 = vadd.f32 %v1204, %v1212
    %v1215 = vtanh.pop %v1214
    %1217 = vrot.lane.b32.xlu0 %v1215, 64
    %v1218 = vpop.permute.xlu0 %1217
    %v1220 = vmul.f32 %v1198, %v1218
    %1222 = vrot.lane.b32.xlu0 %v1220, 32
    %v1223 = vpop.permute.xlu0 %1222
    %1225 = vst.msk [vmem:[#allocation5] sm:$0xff] %vm283, %v1223
    %1227 = vrot.lane.b32.xlu0 %v1214, 96
    %v1228 = vpop.permute.xlu0 %1227
    %1230 = vst.msk [vmem:[#allocation6] sm:$0xff] %vm283, %v1228
    %s1231 = scalar_lea.vmem [#allocation4], 56
    %1232 = vst.msk [vmem:[%s1231] sm:$0xff] %vm283, %v1223
    %v1233 = vld [vmem:[#allocation5] sm:$0xff]
    %1234 = vst.msk [vmem:[#allocation16] sm:$0xff] %vm283, %v1233
    %v1235 = vld [vmem:[#allocation6] sm:$0xff]
    %1236 = vst.msk [vmem:[#allocation17] sm:$0xff] %vm283, %v1235
    %v1237 = vld [vmem:[#allocation4] sm:$0xff]
    %v1238 = vld [vmem:[#allocation4 + $0x8] sm:$0xff]
    %v1239 = vld [vmem:[#allocation4 + $0x10] sm:$0xff]
    %v1240 = vld [vmem:[#allocation4 + $0x18] sm:$0xff]
    %v1241 = vld [vmem:[#allocation4 + $0x20] sm:$0xff]
    %v1242 = vld [vmem:[#allocation4 + $0x28] sm:$0xff]
    %v1243 = vld [vmem:[#allocation4 + $0x30] sm:$0xff]
    %v1244 = vld [vmem:[#allocation4 + $0x38] sm:$0xff]
    %v1245 = vld [vmem:[#allocation13] sm:$0xff]
    %v1246 = vld [vmem:[#allocation13 + $0x8] sm:$0xff]
    %v1247 = vld [vmem:[#allocation13 + $0x10] sm:$0xff]
    %v1248 = vld [vmem:[#allocation13 + $0x18] sm:$0xff]
    %v1249 = vld [vmem:[%s8] sm:$0x1]
    %v1251 = vlaneseq
    %v1252 = vshrl.u32 %v1251, 7
    %v1253 = vsub.s32 0, %v1252
    %v1254 = vrot.slane %v1249, %v1253
    %v1257 = vsel %vm283, %v1237, 0
    %v1260 = vsel %vm283, %v1238, 0
    %v1263 = vsel %vm283, %v1239, 0
    %v1266 = vsel %vm283, %v1240, 0
    %v1269 = vsel %vm283, %v1241, 0
    %v1272 = vsel %vm283, %v1242, 0
    %v1275 = vsel %vm283, %v1243, 0
    %v1278 = vsel %vm283, %v1244, 0
    %1280 = vmatprep.subr.mxu0 0.0
    %1281 = vmatpush1.msra.mxu0 %v1245
    %1282 = vmatprep.subr.mxu0 0.0
    %1283 = vmatpush1.msra.mxu0 %v1246
    %1284 = vmatprep.subr.mxu0 0.0
    %1285 = vmatpush1.msra.mxu0 %v1247
    %1286 = vmatprep.subr.mxu0 0.0
    %1287 = vmatpush1.msra.mxu0 %v1248
    %1288 = vmatprep.subr.mxu0 0.0
    %1289 = vmatpush1.msra.mxu0 0.0
    %1290 = vmatprep.subr.mxu0 0.0
    %1291 = vmatpush1.msra.mxu0 0.0
    %1292 = vmatprep.subr.mxu0 0.0
    %1293 = vmatpush1.msra.mxu0 0.0
    %1294 = vmatprep.subr.mxu0 0.0
    %1295 = vmatpush1.msra.mxu0 0.0
    %1296 = vmatprep.subr.mxu0 0.0
    %1297 = vmatpush1.msra.mxu0 0.0
    %1298 = vmatprep.subr.mxu0 0.0
    %1299 = vmatpush1.msra.mxu0 0.0
    %1300 = vmatprep.subr.mxu0 0.0
    %1301 = vmatpush1.msra.mxu0 0.0
    %1302 = vmatprep.subr.mxu0 0.0
    %1303 = vmatpush1.msra.mxu0 0.0
    %1304 = vmatprep.subr.mxu0 0.0
    %1305 = vmatpush1.msra.mxu0 0.0
    %1306 = vmatprep.subr.mxu0 0.0
    %1307 = vmatpush1.msra.mxu0 0.0
    %1308 = vmatprep.subr.mxu0 0.0
    %1309 = vmatpush1.msra.mxu0 0.0
    %1310 = vmatprep.subr.mxu0 0.0
    %1311 = vmatpush1.msra.mxu0 0.0
    %1312 = vmatprep.subr.mxu0 0.0
    %1313 = vmatpush1.msra.mxu0 0.0
    %1314 = vmatprep.subr.mxu0 0.0
    %1315 = vmatpush1.msra.mxu0 0.0
    %1316 = vmatprep.subr.mxu0 0.0
    %1317 = vmatpush1.msra.mxu0 0.0
    %1318 = vmatprep.subr.mxu0 0.0
    %1319 = vmatpush1.msra.mxu0 0.0
    %1320 = vmatprep.subr.mxu0 0.0
    %1321 = vmatpush1.msra.mxu0 0.0
    %1322 = vmatprep.subr.mxu0 0.0
    %1323 = vmatpush1.msra.mxu0 0.0
    %1324 = vmatprep.subr.mxu0 0.0
    %1325 = vmatpush1.msra.mxu0 0.0
    %1326 = vmatprep.subr.mxu0 0.0
    %1327 = vmatpush1.msra.mxu0 0.0
    %1328 = vmatprep.subr.mxu0 0.0
    %1329 = vmatpush1.msra.mxu0 0.0
    %1330 = vmatprep.subr.mxu0 0.0
    %1331 = vmatpush1.msra.mxu0 0.0
    %1332 = vmatprep.subr.mxu0 0.0
    %1333 = vmatpush1.msra.mxu0 0.0
    %1334 = vmatprep.subr.mxu0 0.0
    %1335 = vmatpush1.msra.mxu0 0.0
    %1336 = vmatprep.subr.mxu0 0.0
    %1337 = vmatpush1.msra.mxu0 0.0
    %1338 = vmatprep.subr.mxu0 0.0
    %1339 = vmatpush1.msra.mxu0 0.0
    %1340 = vmatprep.subr.mxu0 0.0
    %1341 = vmatpush1.msra.mxu0 0.0
    %1342 = vmatprep.subr.mxu0 0.0
    %1343 = vmatpush1.msra.mxu0 0.0
    %1344 = vmatprep.mubr.f32.mxu0 0.0
    %1345 = vmatmul.mubr.f32.gmra.mrb[0].mxu0 %v1257
    %v1346 = vpop.f32.mrb[0].mxu0
    %v1347 = vadd.f32 %v1254, %v1346
    %v1348 = vpop.f32.mrb[0].mxu0
    %1349 = vmatprep.mubr.f32.mxu0 0.0
    %1350 = vmatmul.mubr.f32.gmra.mrb[0].mxu0 %v1260
    %v1351 = vpop.f32.mrb[0].mxu0
    %v1352 = vadd.f32 %v1254, %v1351
    %v1353 = vpop.f32.mrb[0].mxu0
    %1354 = vmatprep.mubr.f32.mxu0 0.0
    %1355 = vmatmul.mubr.f32.gmra.mrb[0].mxu0 %v1263
    %v1356 = vpop.f32.mrb[0].mxu0
    %v1357 = vadd.f32 %v1254, %v1356
    %v1358 = vpop.f32.mrb[0].mxu0
    %1359 = vmatprep.mubr.f32.mxu0 0.0
    %1360 = vmatmul.mubr.f32.gmra.mrb[0].mxu0 %v1266
    %v1361 = vpop.f32.mrb[0].mxu0
    %v1362 = vadd.f32 %v1254, %v1361
    %v1363 = vpop.f32.mrb[0].mxu0
    %1364 = vmatprep.mubr.f32.mxu0 0.0
    %1365 = vmatmul.mubr.f32.gmra.mrb[0].mxu0 %v1269
    %v1366 = vpop.f32.mrb[0].mxu0
    %v1367 = vadd.f32 %v1254, %v1366
    %v1368 = vpop.f32.mrb[0].mxu0
    %1369 = vmatprep.mubr.f32.mxu0 0.0
    %1370 = vmatmul.mubr.f32.gmra.mrb[0].mxu0 %v1272
    %v1371 = vpop.f32.mrb[0].mxu0
    %v1372 = vadd.f32 %v1254, %v1371
    %v1373 = vpop.f32.mrb[0].mxu0
    %1374 = vmatprep.mubr.f32.mxu0 0.0
    %1375 = vmatmul.mubr.f32.gmra.mrb[0].mxu0 %v1275
    %v1376 = vpop.f32.mrb[0].mxu0
    %v1377 = vadd.f32 %v1254, %v1376
    %v1378 = vpop.f32.mrb[0].mxu0
    %1379 = vmatprep.mubr.f32.mxu0 0.0
    %1380 = vmatmul.mubr.f32.gmra.mrb[0].mxu0 %v1278
    %v1381 = vpop.f32.mrb[0].mxu0
    %v1382 = vadd.f32 %v1254, %v1381
    %v1383 = vpop.f32.mrb[0].mxu0
    %1384 = vdwg.mxu0
    %1385 = vst [vmem:[#allocation3] sm:$0xff] %v1347
    %1386 = vst [vmem:[#allocation3 + $0x8] sm:$0xff] %v1352
    %1387 = vst [vmem:[#allocation3 + $0x10] sm:$0xff] %v1357
    %1388 = vst [vmem:[#allocation3 + $0x18] sm:$0xff] %v1362
    %1389 = vst [vmem:[#allocation3 + $0x20] sm:$0xff] %v1367
    %1390 = vst [vmem:[#allocation3 + $0x28] sm:$0xff] %v1372
    %1391 = vst [vmem:[#allocation3 + $0x30] sm:$0xff] %v1377
    %1392 = vst [vmem:[#allocation3 + $0x38] sm:$0xff] %v1382
    %s1393 = scalar_lea.vmem [#allocation7], 8
    %v1394 = vld [vmem:[%s1393] sm:$0xff]
    %1395 = vst.msk [vmem:[#allocation5] sm:$0xff] %vm283, %v1394
    %s1396 = scalar_lea.vmem [#allocation10], 8
    %v1397 = vld [vmem:[%s1396] sm:$0xff]
    %1398 = vst.msk [vmem:[#allocation6] sm:$0xff] %vm283, %v1397
    %v1399 = vld [vmem:[#allocation15] sm:$0xff]
    %v1400 = vld [vmem:[#allocation15 + $0x8] sm:$0xff]
    %v1401 = vld [vmem:[#allocation15 + $0x10] sm:$0xff]
    %v1402 = vld [vmem:[#allocation15 + $0x18] sm:$0xff]
    %v1403 = vld [vmem:[#allocation5] sm:$0xff]
    %v1404 = vld [vmem:[#allocation6] sm:$0xff]
    %v1405 = vld [vmem:[#allocation3] sm:$0xff]
    %v1407 = vsel %vm283, %v1403, 0
    %1409 = vmatprep.subr.mxu0 0.0
    %1410 = vmatpush1.msra.mxu0 %v1399
    %1411 = vmatprep.subr.mxu0 0.0
    %1412 = vmatpush1.msra.mxu0 %v1400
    %1413 = vmatprep.subr.mxu0 0.0
    %1414 = vmatpush1.msra.mxu0 %v1401
    %1415 = vmatprep.subr.mxu0 0.0
    %1416 = vmatpush1.msra.mxu0 %v1402
    %1417 = vmatprep.subr.mxu0 0.0
    %1418 = vmatpush1.msra.mxu0 0.0
    %1419 = vmatprep.subr.mxu0 0.0
    %1420 = vmatpush1.msra.mxu0 0.0
    %1421 = vmatprep.subr.mxu0 0.0
    %1422 = vmatpush1.msra.mxu0 0.0
    %1423 = vmatprep.subr.mxu0 0.0
    %1424 = vmatpush1.msra.mxu0 0.0
    %1425 = vmatprep.subr.mxu0 0.0
    %1426 = vmatpush1.msra.mxu0 0.0
    %1427 = vmatprep.subr.mxu0 0.0
    %1428 = vmatpush1.msra.mxu0 0.0
    %1429 = vmatprep.subr.mxu0 0.0
    %1430 = vmatpush1.msra.mxu0 0.0
    %1431 = vmatprep.subr.mxu0 0.0
    %1432 = vmatpush1.msra.mxu0 0.0
    %1433 = vmatprep.subr.mxu0 0.0
    %1434 = vmatpush1.msra.mxu0 0.0
    %1435 = vmatprep.subr.mxu0 0.0
    %1436 = vmatpush1.msra.mxu0 0.0
    %1437 = vmatprep.subr.mxu0 0.0
    %1438 = vmatpush1.msra.mxu0 0.0
    %1439 = vmatprep.subr.mxu0 0.0
    %1440 = vmatpush1.msra.mxu0 0.0
    %1441 = vmatprep.subr.mxu0 0.0
    %1442 = vmatpush1.msra.mxu0 0.0
    %1443 = vmatprep.subr.mxu0 0.0
    %1444 = vmatpush1.msra.mxu0 0.0
    %1445 = vmatprep.subr.mxu0 0.0
    %1446 = vmatpush1.msra.mxu0 0.0
    %1447 = vmatprep.subr.mxu0 0.0
    %1448 = vmatpush1.msra.mxu0 0.0
    %1449 = vmatprep.subr.mxu0 0.0
    %1450 = vmatpush1.msra.mxu0 0.0
    %1451 = vmatprep.subr.mxu0 0.0
    %1452 = vmatpush1.msra.mxu0 0.0
    %1453 = vmatprep.subr.mxu0 0.0
    %1454 = vmatpush1.msra.mxu0 0.0
    %1455 = vmatprep.subr.mxu0 0.0
    %1456 = vmatpush1.msra.mxu0 0.0
    %1457 = vmatprep.subr.mxu0 0.0
    %1458 = vmatpush1.msra.mxu0 0.0
    %1459 = vmatprep.subr.mxu0 0.0
    %1460 = vmatpush1.msra.mxu0 0.0
    %1461 = vmatprep.subr.mxu0 0.0
    %1462 = vmatpush1.msra.mxu0 0.0
    %1463 = vmatprep.subr.mxu0 0.0
    %1464 = vmatpush1.msra.mxu0 0.0
    %1465 = vmatprep.subr.mxu0 0.0
    %1466 = vmatpush1.msra.mxu0 0.0
    %1467 = vmatprep.subr.mxu0 0.0
    %1468 = vmatpush1.msra.mxu0 0.0
    %1469 = vmatprep.subr.mxu0 0.0
    %1470 = vmatpush1.msra.mxu0 0.0
    %1471 = vmatprep.subr.mxu0 0.0
    %1472 = vmatpush1.msra.mxu0 0.0
    %1473 = vmatprep.mubr.f32.mxu0 0.0
    %1474 = vmatmul.mubr.f32.gmra.mrb[0].mxu0 %v1407
    %v1475 = vpop.f32.mrb[0].mxu0
    %v1476 = vadd.f32 0.0, %v1475
    %v1477 = vpop.f32.mrb[0].mxu0
    %1478 = vdwg.mxu0
    %v1479 = vadd.f32 %v1405, %v1476
    %v1480 = vxor.u32 %v1479, 2147483648
    %v1481 = vmul.f32 %v1480, 1.442695
    %v1482 = vpow.pop %v1481
    %v1483 = vadd.f32 %v1482, 1.0
    %v1484 = vrcp.pop %v1483
    %v1485 = vmul.f32 1.0, %v1484
    %v1486 = vtanh.pop %v1479
    %1488 = vrot.lane.b32.xlu0 %v1404, 32
    %v1489 = vpop.permute.xlu0 %1488
    %v1491 = vmul.f32 %v1485, %v1489
    %1493 = vrot.lane.b32.xlu0 %v1486, 64
    %v1494 = vpop.permute.xlu0 %1493
    %v1496 = vmul.f32 %v1485, %v1494
    %1498 = vrot.lane.b32.xlu0 %v1496, 32
    %v1499 = vpop.permute.xlu0 %1498
    %v1501 = vadd.f32 %v1491, %v1499
    %v1502 = vtanh.pop %v1501
    %1504 = vrot.lane.b32.xlu0 %v1502, 64
    %v1505 = vpop.permute.xlu0 %1504
    %v1507 = vmul.f32 %v1485, %v1505
    %1509 = vrot.lane.b32.xlu0 %v1507, 32
    %v1510 = vpop.permute.xlu0 %1509
    %1512 = vst.msk [vmem:[#allocation5] sm:$0xff] %vm283, %v1510
    %1514 = vrot.lane.b32.xlu0 %v1501, 96
    %v1515 = vpop.permute.xlu0 %1514
    %1517 = vst.msk [vmem:[#allocation6] sm:$0xff] %vm283, %v1515
    %v1518 = vld [vmem:[#allocation5] sm:$0xff]
    %v1519 = vld [vmem:[#allocation6] sm:$0xff]
    %v1520 = vld [vmem:[%s409] sm:$0xff]
    %v1522 = vsel %vm283, %v1518, 0
    %1524 = vmatprep.subr.mxu0 0.0
    %1525 = vmatpush1.msra.mxu0 %v1399
    %1526 = vmatprep.subr.mxu0 0.0
    %1527 = vmatpush1.msra.mxu0 %v1400
    %1528 = vmatprep.subr.mxu0 0.0
    %1529 = vmatpush1.msra.mxu0 %v1401
    %1530 = vmatprep.subr.mxu0 0.0
    %1531 = vmatpush1.msra.mxu0 %v1402
    %1532 = vmatprep.subr.mxu0 0.0
    %1533 = vmatpush1.msra.mxu0 0.0
    %1534 = vmatprep.subr.mxu0 0.0
    %1535 = vmatpush1.msra.mxu0 0.0
    %1536 = vmatprep.subr.mxu0 0.0
    %1537 = vmatpush1.msra.mxu0 0.0
    %1538 = vmatprep.subr.mxu0 0.0
    %1539 = vmatpush1.msra.mxu0 0.0
    %1540 = vmatprep.subr.mxu0 0.0
    %1541 = vmatpush1.msra.mxu0 0.0
    %1542 = vmatprep.subr.mxu0 0.0
    %1543 = vmatpush1.msra.mxu0 0.0
    %1544 = vmatprep.subr.mxu0 0.0
    %1545 = vmatpush1.msra.mxu0 0.0
    %1546 = vmatprep.subr.mxu0 0.0
    %1547 = vmatpush1.msra.mxu0 0.0
    %1548 = vmatprep.subr.mxu0 0.0
    %1549 = vmatpush1.msra.mxu0 0.0
    %1550 = vmatprep.subr.mxu0 0.0
    %1551 = vmatpush1.msra.mxu0 0.0
    %1552 = vmatprep.subr.mxu0 0.0
    %1553 = vmatpush1.msra.mxu0 0.0
    %1554 = vmatprep.subr.mxu0 0.0
    %1555 = vmatpush1.msra.mxu0 0.0
    %1556 = vmatprep.subr.mxu0 0.0
    %1557 = vmatpush1.msra.mxu0 0.0
    %1558 = vmatprep.subr.mxu0 0.0
    %1559 = vmatpush1.msra.mxu0 0.0
    %1560 = vmatprep.subr.mxu0 0.0
    %1561 = vmatpush1.msra.mxu0 0.0
    %1562 = vmatprep.subr.mxu0 0.0
    %1563 = vmatpush1.msra.mxu0 0.0
    %1564 = vmatprep.subr.mxu0 0.0
    %1565 = vmatpush1.msra.mxu0 0.0
    %1566 = vmatprep.subr.mxu0 0.0
    %1567 = vmatpush1.msra.mxu0 0.0
    %1568 = vmatprep.subr.mxu0 0.0
    %1569 = vmatpush1.msra.mxu0 0.0
    %1570 = vmatprep.subr.mxu0 0.0
    %1571 = vmatpush1.msra.mxu0 0.0
    %1572 = vmatprep.subr.mxu0 0.0
    %1573 = vmatpush1.msra.mxu0 0.0
    %1574 = vmatprep.subr.mxu0 0.0
    %1575 = vmatpush1.msra.mxu0 0.0
    %1576 = vmatprep.subr.mxu0 0.0
    %1577 = vmatpush1.msra.mxu0 0.0
    %1578 = vmatprep.subr.mxu0 0.0
    %1579 = vmatpush1.msra.mxu0 0.0
    %1580 = vmatprep.subr.mxu0 0.0
    %1581 = vmatpush1.msra.mxu0 0.0
    %1582 = vmatprep.subr.mxu0 0.0
    %1583 = vmatpush1.msra.mxu0 0.0
    %1584 = vmatprep.subr.mxu0 0.0
    %1585 = vmatpush1.msra.mxu0 0.0
    %1586 = vmatprep.subr.mxu0 0.0
    %1587 = vmatpush1.msra.mxu0 0.0
    %1588 = vmatprep.mubr.f32.mxu0 0.0
    %1589 = vmatmul.mubr.f32.gmra.mrb[0].mxu0 %v1522
    %v1590 = vpop.f32.mrb[0].mxu0
    %v1591 = vadd.f32 0.0, %v1590
    %v1592 = vpop.f32.mrb[0].mxu0
    %1593 = vdwg.mxu0
    %v1594 = vadd.f32 %v1520, %v1591
    %v1595 = vxor.u32 %v1594, 2147483648
    %v1596 = vmul.f32 %v1595, 1.442695
    %v1597 = vpow.pop %v1596
    %v1598 = vadd.f32 %v1597, 1.0
    %v1599 = vrcp.pop %v1598
    %v1600 = vmul.f32 1.0, %v1599
    %v1601 = vtanh.pop %v1594
    %1603 = vrot.lane.b32.xlu0 %v1519, 32
    %v1604 = vpop.permute.xlu0 %1603
    %v1606 = vmul.f32 %v1600, %v1604
    %1608 = vrot.lane.b32.xlu0 %v1601, 64
    %v1609 = vpop.permute.xlu0 %1608
    %v1611 = vmul.f32 %v1600, %v1609
    %1613 = vrot.lane.b32.xlu0 %v1611, 32
    %v1614 = vpop.permute.xlu0 %1613
    %v1616 = vadd.f32 %v1606, %v1614
    %v1617 = vtanh.pop %v1616
    %1619 = vrot.lane.b32.xlu0 %v1617, 64
    %v1620 = vpop.permute.xlu0 %1619
    %v1622 = vmul.f32 %v1600, %v1620
    %1624 = vrot.lane.b32.xlu0 %v1622, 32
    %v1625 = vpop.permute.xlu0 %1624
    %1627 = vst.msk [vmem:[#allocation5] sm:$0xff] %vm283, %v1625
    %1629 = vrot.lane.b32.xlu0 %v1616, 96
    %v1630 = vpop.permute.xlu0 %1629
    %1632 = vst.msk [vmem:[#allocation6] sm:$0xff] %vm283, %v1630
    %v1633 = vld [vmem:[#allocation5] sm:$0xff]
    %v1634 = vld [vmem:[#allocation6] sm:$0xff]
    %v1635 = vld [vmem:[%s527] sm:$0xff]
    %v1637 = vsel %vm283, %v1633, 0
    %1639 = vmatprep.subr.mxu0 0.0
    %1640 = vmatpush1.msra.mxu0 %v1399
    %1641 = vmatprep.subr.mxu0 0.0
    %1642 = vmatpush1.msra.mxu0 %v1400
    %1643 = vmatprep.subr.mxu0 0.0
    %1644 = vmatpush1.msra.mxu0 %v1401
    %1645 = vmatprep.subr.mxu0 0.0
    %1646 = vmatpush1.msra.mxu0 %v1402
    %1647 = vmatprep.subr.mxu0 0.0
    %1648 = vmatpush1.msra.mxu0 0.0
    %1649 = vmatprep.subr.mxu0 0.0
    %1650 = vmatpush1.msra.mxu0 0.0
    %1651 = vmatprep.subr.mxu0 0.0
    %1652 = vmatpush1.msra.mxu0 0.0
    %1653 = vmatprep.subr.mxu0 0.0
    %1654 = vmatpush1.msra.mxu0 0.0
    %1655 = vmatprep.subr.mxu0 0.0
    %1656 = vmatpush1.msra.mxu0 0.0
    %1657 = vmatprep.subr.mxu0 0.0
    %1658 = vmatpush1.msra.mxu0 0.0
    %1659 = vmatprep.subr.mxu0 0.0
    %1660 = vmatpush1.msra.mxu0 0.0
    %1661 = vmatprep.subr.mxu0 0.0
    %1662 = vmatpush1.msra.mxu0 0.0
    %1663 = vmatprep.subr.mxu0 0.0
    %1664 = vmatpush1.msra.mxu0 0.0
    %1665 = vmatprep.subr.mxu0 0.0
    %1666 = vmatpush1.msra.mxu0 0.0
    %1667 = vmatprep.subr.mxu0 0.0
    %1668 = vmatpush1.msra.mxu0 0.0
    %1669 = vmatprep.subr.mxu0 0.0
    %1670 = vmatpush1.msra.mxu0 0.0
    %1671 = vmatprep.subr.mxu0 0.0
    %1672 = vmatpush1.msra.mxu0 0.0
    %1673 = vmatprep.subr.mxu0 0.0
    %1674 = vmatpush1.msra.mxu0 0.0
    %1675 = vmatprep.subr.mxu0 0.0
    %1676 = vmatpush1.msra.mxu0 0.0
    %1677 = vmatprep.subr.mxu0 0.0
    %1678 = vmatpush1.msra.mxu0 0.0
    %1679 = vmatprep.subr.mxu0 0.0
    %1680 = vmatpush1.msra.mxu0 0.0
    %1681 = vmatprep.subr.mxu0 0.0
    %1682 = vmatpush1.msra.mxu0 0.0
    %1683 = vmatprep.subr.mxu0 0.0
    %1684 = vmatpush1.msra.mxu0 0.0
    %1685 = vmatprep.subr.mxu0 0.0
    %1686 = vmatpush1.msra.mxu0 0.0
    %1687 = vmatprep.subr.mxu0 0.0
    %1688 = vmatpush1.msra.mxu0 0.0
    %1689 = vmatprep.subr.mxu0 0.0
    %1690 = vmatpush1.msra.mxu0 0.0
    %1691 = vmatprep.subr.mxu0 0.0
    %1692 = vmatpush1.msra.mxu0 0.0
    %1693 = vmatprep.subr.mxu0 0.0
    %1694 = vmatpush1.msra.mxu0 0.0
    %1695 = vmatprep.subr.mxu0 0.0
    %1696 = vmatpush1.msra.mxu0 0.0
    %1697 = vmatprep.subr.mxu0 0.0
    %1698 = vmatpush1.msra.mxu0 0.0
    %1699 = vmatprep.subr.mxu0 0.0
    %1700 = vmatpush1.msra.mxu0 0.0
    %1701 = vmatprep.subr.mxu0 0.0
    %1702 = vmatpush1.msra.mxu0 0.0
    %1703 = vmatprep.mubr.f32.mxu0 0.0
    %1704 = vmatmul.mubr.f32.gmra.mrb[0].mxu0 %v1637
    %v1705 = vpop.f32.mrb[0].mxu0
    %v1706 = vadd.f32 0.0, %v1705
    %v1707 = vpop.f32.mrb[0].mxu0
    %1708 = vdwg.mxu0
    %v1709 = vadd.f32 %v1635, %v1706
    %v1710 = vxor.u32 %v1709, 2147483648
    %v1711 = vmul.f32 %v1710, 1.442695
    %v1712 = vpow.pop %v1711
    %v1713 = vadd.f32 %v1712, 1.0
    %v1714 = vrcp.pop %v1713
    %v1715 = vmul.f32 1.0, %v1714
    %v1716 = vtanh.pop %v1709
    %1718 = vrot.lane.b32.xlu0 %v1634, 32
    %v1719 = vpop.permute.xlu0 %1718
    %v1721 = vmul.f32 %v1715, %v1719
    %1723 = vrot.lane.b32.xlu0 %v1716, 64
    %v1724 = vpop.permute.xlu0 %1723
    %v1726 = vmul.f32 %v1715, %v1724
    %1728 = vrot.lane.b32.xlu0 %v1726, 32
    %v1729 = vpop.permute.xlu0 %1728
    %v1731 = vadd.f32 %v1721, %v1729
    %v1732 = vtanh.pop %v1731
    %1734 = vrot.lane.b32.xlu0 %v1732, 64
    %v1735 = vpop.permute.xlu0 %1734
    %v1737 = vmul.f32 %v1715, %v1735
    %1739 = vrot.lane.b32.xlu0 %v1737, 32
    %v1740 = vpop.permute.xlu0 %1739
    %1742 = vst.msk [vmem:[#allocation5] sm:$0xff] %vm283, %v1740
    %1744 = vrot.lane.b32.xlu0 %v1731, 96
    %v1745 = vpop.permute.xlu0 %1744
    %1747 = vst.msk [vmem:[#allocation6] sm:$0xff] %vm283, %v1745
    %v1748 = vld [vmem:[#allocation5] sm:$0xff]
    %v1749 = vld [vmem:[#allocation6] sm:$0xff]
    %v1750 = vld [vmem:[%s645] sm:$0xff]
    %v1752 = vsel %vm283, %v1748, 0
    %1754 = vmatprep.subr.mxu0 0.0
    %1755 = vmatpush1.msra.mxu0 %v1399
    %1756 = vmatprep.subr.mxu0 0.0
    %1757 = vmatpush1.msra.mxu0 %v1400
    %1758 = vmatprep.subr.mxu0 0.0
    %1759 = vmatpush1.msra.mxu0 %v1401
    %1760 = vmatprep.subr.mxu0 0.0
    %1761 = vmatpush1.msra.mxu0 %v1402
    %1762 = vmatprep.subr.mxu0 0.0
    %1763 = vmatpush1.msra.mxu0 0.0
    %1764 = vmatprep.subr.mxu0 0.0
    %1765 = vmatpush1.msra.mxu0 0.0
    %1766 = vmatprep.subr.mxu0 0.0
    %1767 = vmatpush1.msra.mxu0 0.0
    %1768 = vmatprep.subr.mxu0 0.0
    %1769 = vmatpush1.msra.mxu0 0.0
    %1770 = vmatprep.subr.mxu0 0.0
    %1771 = vmatpush1.msra.mxu0 0.0
    %1772 = vmatprep.subr.mxu0 0.0
    %1773 = vmatpush1.msra.mxu0 0.0
    %1774 = vmatprep.subr.mxu0 0.0
    %1775 = vmatpush1.msra.mxu0 0.0
    %1776 = vmatprep.subr.mxu0 0.0
    %1777 = vmatpush1.msra.mxu0 0.0
    %1778 = vmatprep.subr.mxu0 0.0
    %1779 = vmatpush1.msra.mxu0 0.0
    %1780 = vmatprep.subr.mxu0 0.0
    %1781 = vmatpush1.msra.mxu0 0.0
    %1782 = vmatprep.subr.mxu0 0.0
    %1783 = vmatpush1.msra.mxu0 0.0
    %1784 = vmatprep.subr.mxu0 0.0
    %1785 = vmatpush1.msra.mxu0 0.0
    %1786 = vmatprep.subr.mxu0 0.0
    %1787 = vmatpush1.msra.mxu0 0.0
    %1788 = vmatprep.subr.mxu0 0.0
    %1789 = vmatpush1.msra.mxu0 0.0
    %1790 = vmatprep.subr.mxu0 0.0
    %1791 = vmatpush1.msra.mxu0 0.0
    %1792 = vmatprep.subr.mxu0 0.0
    %1793 = vmatpush1.msra.mxu0 0.0
    %1794 = vmatprep.subr.mxu0 0.0
    %1795 = vmatpush1.msra.mxu0 0.0
    %1796 = vmatprep.subr.mxu0 0.0
    %1797 = vmatpush1.msra.mxu0 0.0
    %1798 = vmatprep.subr.mxu0 0.0
    %1799 = vmatpush1.msra.mxu0 0.0
    %1800 = vmatprep.subr.mxu0 0.0
    %1801 = vmatpush1.msra.mxu0 0.0
    %1802 = vmatprep.subr.mxu0 0.0
    %1803 = vmatpush1.msra.mxu0 0.0
    %1804 = vmatprep.subr.mxu0 0.0
    %1805 = vmatpush1.msra.mxu0 0.0
    %1806 = vmatprep.subr.mxu0 0.0
    %1807 = vmatpush1.msra.mxu0 0.0
    %1808 = vmatprep.subr.mxu0 0.0
    %1809 = vmatpush1.msra.mxu0 0.0
    %1810 = vmatprep.subr.mxu0 0.0
    %1811 = vmatpush1.msra.mxu0 0.0
    %1812 = vmatprep.subr.mxu0 0.0
    %1813 = vmatpush1.msra.mxu0 0.0
    %1814 = vmatprep.subr.mxu0 0.0
    %1815 = vmatpush1.msra.mxu0 0.0
    %1816 = vmatprep.subr.mxu0 0.0
    %1817 = vmatpush1.msra.mxu0 0.0
    %1818 = vmatprep.mubr.f32.mxu0 0.0
    %1819 = vmatmul.mubr.f32.gmra.mrb[0].mxu0 %v1752
    %v1820 = vpop.f32.mrb[0].mxu0
    %v1821 = vadd.f32 0.0, %v1820
    %v1822 = vpop.f32.mrb[0].mxu0
    %1823 = vdwg.mxu0
    %v1824 = vadd.f32 %v1750, %v1821
    %v1825 = vxor.u32 %v1824, 2147483648
    %v1826 = vmul.f32 %v1825, 1.442695
    %v1827 = vpow.pop %v1826
    %v1828 = vadd.f32 %v1827, 1.0
    %v1829 = vrcp.pop %v1828
    %v1830 = vmul.f32 1.0, %v1829
    %v1831 = vtanh.pop %v1824
    %1833 = vrot.lane.b32.xlu0 %v1749, 32
    %v1834 = vpop.permute.xlu0 %1833
    %v1836 = vmul.f32 %v1830, %v1834
    %1838 = vrot.lane.b32.xlu0 %v1831, 64
    %v1839 = vpop.permute.xlu0 %1838
    %v1841 = vmul.f32 %v1830, %v1839
    %1843 = vrot.lane.b32.xlu0 %v1841, 32
    %v1844 = vpop.permute.xlu0 %1843
    %v1846 = vadd.f32 %v1836, %v1844
    %v1847 = vtanh.pop %v1846
    %1849 = vrot.lane.b32.xlu0 %v1847, 64
    %v1850 = vpop.permute.xlu0 %1849
    %v1852 = vmul.f32 %v1830, %v1850
    %1854 = vrot.lane.b32.xlu0 %v1852, 32
    %v1855 = vpop.permute.xlu0 %1854
    %1857 = vst.msk [vmem:[#allocation5] sm:$0xff] %vm283, %v1855
    %1859 = vrot.lane.b32.xlu0 %v1846, 96
    %v1860 = vpop.permute.xlu0 %1859
    %1862 = vst.msk [vmem:[#allocation6] sm:$0xff] %vm283, %v1860
    %v1863 = vld [vmem:[#allocation5] sm:$0xff]
    %v1864 = vld [vmem:[#allocation6] sm:$0xff]
    %v1865 = vld [vmem:[%s763] sm:$0xff]
    %v1867 = vsel %vm283, %v1863, 0
    %1869 = vmatprep.subr.mxu0 0.0
    %1870 = vmatpush1.msra.mxu0 %v1399
    %1871 = vmatprep.subr.mxu0 0.0
    %1872 = vmatpush1.msra.mxu0 %v1400
    %1873 = vmatprep.subr.mxu0 0.0
    %1874 = vmatpush1.msra.mxu0 %v1401
    %1875 = vmatprep.subr.mxu0 0.0
    %1876 = vmatpush1.msra.mxu0 %v1402
    %1877 = vmatprep.subr.mxu0 0.0
    %1878 = vmatpush1.msra.mxu0 0.0
    %1879 = vmatprep.subr.mxu0 0.0
    %1880 = vmatpush1.msra.mxu0 0.0
    %1881 = vmatprep.subr.mxu0 0.0
    %1882 = vmatpush1.msra.mxu0 0.0
    %1883 = vmatprep.subr.mxu0 0.0
    %1884 = vmatpush1.msra.mxu0 0.0
    %1885 = vmatprep.subr.mxu0 0.0
    %1886 = vmatpush1.msra.mxu0 0.0
    %1887 = vmatprep.subr.mxu0 0.0
    %1888 = vmatpush1.msra.mxu0 0.0
    %1889 = vmatprep.subr.mxu0 0.0
    %1890 = vmatpush1.msra.mxu0 0.0
    %1891 = vmatprep.subr.mxu0 0.0
    %1892 = vmatpush1.msra.mxu0 0.0
    %1893 = vmatprep.subr.mxu0 0.0
    %1894 = vmatpush1.msra.mxu0 0.0
    %1895 = vmatprep.subr.mxu0 0.0
    %1896 = vmatpush1.msra.mxu0 0.0
    %1897 = vmatprep.subr.mxu0 0.0
    %1898 = vmatpush1.msra.mxu0 0.0
    %1899 = vmatprep.subr.mxu0 0.0
    %1900 = vmatpush1.msra.mxu0 0.0
    %1901 = vmatprep.subr.mxu0 0.0
    %1902 = vmatpush1.msra.mxu0 0.0
    %1903 = vmatprep.subr.mxu0 0.0
    %1904 = vmatpush1.msra.mxu0 0.0
    %1905 = vmatprep.subr.mxu0 0.0
    %1906 = vmatpush1.msra.mxu0 0.0
    %1907 = vmatprep.subr.mxu0 0.0
    %1908 = vmatpush1.msra.mxu0 0.0
    %1909 = vmatprep.subr.mxu0 0.0
    %1910 = vmatpush1.msra.mxu0 0.0
    %1911 = vmatprep.subr.mxu0 0.0
    %1912 = vmatpush1.msra.mxu0 0.0
    %1913 = vmatprep.subr.mxu0 0.0
    %1914 = vmatpush1.msra.mxu0 0.0
    %1915 = vmatprep.subr.mxu0 0.0
    %1916 = vmatpush1.msra.mxu0 0.0
    %1917 = vmatprep.subr.mxu0 0.0
    %1918 = vmatpush1.msra.mxu0 0.0
    %1919 = vmatprep.subr.mxu0 0.0
    %1920 = vmatpush1.msra.mxu0 0.0
    %1921 = vmatprep.subr.mxu0 0.0
    %1922 = vmatpush1.msra.mxu0 0.0
    %1923 = vmatprep.subr.mxu0 0.0
    %1924 = vmatpush1.msra.mxu0 0.0
    %1925 = vmatprep.subr.mxu0 0.0
    %1926 = vmatpush1.msra.mxu0 0.0
    %1927 = vmatprep.subr.mxu0 0.0
    %1928 = vmatpush1.msra.mxu0 0.0
    %1929 = vmatprep.subr.mxu0 0.0
    %1930 = vmatpush1.msra.mxu0 0.0
    %1931 = vmatprep.subr.mxu0 0.0
    %1932 = vmatpush1.msra.mxu0 0.0
    %1933 = vmatprep.mubr.f32.mxu0 0.0
    %1934 = vmatmul.mubr.f32.gmra.mrb[0].mxu0 %v1867
    %v1935 = vpop.f32.mrb[0].mxu0
    %v1936 = vadd.f32 0.0, %v1935
    %v1937 = vpop.f32.mrb[0].mxu0
    %1938 = vdwg.mxu0
    %v1939 = vadd.f32 %v1865, %v1936
    %v1940 = vxor.u32 %v1939, 2147483648
    %v1941 = vmul.f32 %v1940, 1.442695
    %v1942 = vpow.pop %v1941
    %v1943 = vadd.f32 %v1942, 1.0
    %v1944 = vrcp.pop %v1943
    %v1945 = vmul.f32 1.0, %v1944
    %v1946 = vtanh.pop %v1939
    %1948 = vrot.lane.b32.xlu0 %v1864, 32
    %v1949 = vpop.permute.xlu0 %1948
    %v1951 = vmul.f32 %v1945, %v1949
    %1953 = vrot.lane.b32.xlu0 %v1946, 64
    %v1954 = vpop.permute.xlu0 %1953
    %v1956 = vmul.f32 %v1945, %v1954
    %1958 = vrot.lane.b32.xlu0 %v1956, 32
    %v1959 = vpop.permute.xlu0 %1958
    %v1961 = vadd.f32 %v1951, %v1959
    %v1962 = vtanh.pop %v1961
    %1964 = vrot.lane.b32.xlu0 %v1962, 64
    %v1965 = vpop.permute.xlu0 %1964
    %v1967 = vmul.f32 %v1945, %v1965
    %1969 = vrot.lane.b32.xlu0 %v1967, 32
    %v1970 = vpop.permute.xlu0 %1969
    %1972 = vst.msk [vmem:[#allocation5] sm:$0xff] %vm283, %v1970
    %1974 = vrot.lane.b32.xlu0 %v1961, 96
    %v1975 = vpop.permute.xlu0 %1974
    %1977 = vst.msk [vmem:[#allocation6] sm:$0xff] %vm283, %v1975
    %v1978 = vld [vmem:[#allocation5] sm:$0xff]
    %v1979 = vld [vmem:[#allocation6] sm:$0xff]
    %v1980 = vld [vmem:[%s881] sm:$0xff]
    %v1982 = vsel %vm283, %v1978, 0
    %1984 = vmatprep.subr.mxu0 0.0
    %1985 = vmatpush1.msra.mxu0 %v1399
    %1986 = vmatprep.subr.mxu0 0.0
    %1987 = vmatpush1.msra.mxu0 %v1400
    %1988 = vmatprep.subr.mxu0 0.0
    %1989 = vmatpush1.msra.mxu0 %v1401
    %1990 = vmatprep.subr.mxu0 0.0
    %1991 = vmatpush1.msra.mxu0 %v1402
    %1992 = vmatprep.subr.mxu0 0.0
    %1993 = vmatpush1.msra.mxu0 0.0
    %1994 = vmatprep.subr.mxu0 0.0
    %1995 = vmatpush1.msra.mxu0 0.0
    %1996 = vmatprep.subr.mxu0 0.0
    %1997 = vmatpush1.msra.mxu0 0.0
    %1998 = vmatprep.subr.mxu0 0.0
    %1999 = vmatpush1.msra.mxu0 0.0
    %2000 = vmatprep.subr.mxu0 0.0
    %2001 = vmatpush1.msra.mxu0 0.0
    %2002 = vmatprep.subr.mxu0 0.0
    %2003 = vmatpush1.msra.mxu0 0.0
    %2004 = vmatprep.subr.mxu0 0.0
    %2005 = vmatpush1.msra.mxu0 0.0
    %2006 = vmatprep.subr.mxu0 0.0
    %2007 = vmatpush1.msra.mxu0 0.0
    %2008 = vmatprep.subr.mxu0 0.0
    %2009 = vmatpush1.msra.mxu0 0.0
    %2010 = vmatprep.subr.mxu0 0.0
    %2011 = vmatpush1.msra.mxu0 0.0
    %2012 = vmatprep.subr.mxu0 0.0
    %2013 = vmatpush1.msra.mxu0 0.0
    %2014 = vmatprep.subr.mxu0 0.0
    %2015 = vmatpush1.msra.mxu0 0.0
    %2016 = vmatprep.subr.mxu0 0.0
    %2017 = vmatpush1.msra.mxu0 0.0
    %2018 = vmatprep.subr.mxu0 0.0
    %2019 = vmatpush1.msra.mxu0 0.0
    %2020 = vmatprep.subr.mxu0 0.0
    %2021 = vmatpush1.msra.mxu0 0.0
    %2022 = vmatprep.subr.mxu0 0.0
    %2023 = vmatpush1.msra.mxu0 0.0
    %2024 = vmatprep.subr.mxu0 0.0
    %2025 = vmatpush1.msra.mxu0 0.0
    %2026 = vmatprep.subr.mxu0 0.0
    %2027 = vmatpush1.msra.mxu0 0.0
    %2028 = vmatprep.subr.mxu0 0.0
    %2029 = vmatpush1.msra.mxu0 0.0
    %2030 = vmatprep.subr.mxu0 0.0
    %2031 = vmatpush1.msra.mxu0 0.0
    %2032 = vmatprep.subr.mxu0 0.0
    %2033 = vmatpush1.msra.mxu0 0.0
    %2034 = vmatprep.subr.mxu0 0.0
    %2035 = vmatpush1.msra.mxu0 0.0
    %2036 = vmatprep.subr.mxu0 0.0
    %2037 = vmatpush1.msra.mxu0 0.0
    %2038 = vmatprep.subr.mxu0 0.0
    %2039 = vmatpush1.msra.mxu0 0.0
    %2040 = vmatprep.subr.mxu0 0.0
    %2041 = vmatpush1.msra.mxu0 0.0
    %2042 = vmatprep.subr.mxu0 0.0
    %2043 = vmatpush1.msra.mxu0 0.0
    %2044 = vmatprep.subr.mxu0 0.0
    %2045 = vmatpush1.msra.mxu0 0.0
    %2046 = vmatprep.subr.mxu0 0.0
    %2047 = vmatpush1.msra.mxu0 0.0
    %2048 = vmatprep.mubr.f32.mxu0 0.0
    %2049 = vmatmul.mubr.f32.gmra.mrb[0].mxu0 %v1982
    %v2050 = vpop.f32.mrb[0].mxu0
    %v2051 = vadd.f32 0.0, %v2050
    %v2052 = vpop.f32.mrb[0].mxu0
    %2053 = vdwg.mxu0
    %v2054 = vadd.f32 %v1980, %v2051
    %v2055 = vxor.u32 %v2054, 2147483648
    %v2056 = vmul.f32 %v2055, 1.442695
    %v2057 = vpow.pop %v2056
    %v2058 = vadd.f32 %v2057, 1.0
    %v2059 = vrcp.pop %v2058
    %v2060 = vmul.f32 1.0, %v2059
    %v2061 = vtanh.pop %v2054
    %2063 = vrot.lane.b32.xlu0 %v1979, 32
    %v2064 = vpop.permute.xlu0 %2063
    %v2066 = vmul.f32 %v2060, %v2064
    %2068 = vrot.lane.b32.xlu0 %v2061, 64
    %v2069 = vpop.permute.xlu0 %2068
    %v2071 = vmul.f32 %v2060, %v2069
    %2073 = vrot.lane.b32.xlu0 %v2071, 32
    %v2074 = vpop.permute.xlu0 %2073
    %v2076 = vadd.f32 %v2066, %v2074
    %v2077 = vtanh.pop %v2076
    %2079 = vrot.lane.b32.xlu0 %v2077, 64
    %v2080 = vpop.permute.xlu0 %2079
    %v2082 = vmul.f32 %v2060, %v2080
    %2084 = vrot.lane.b32.xlu0 %v2082, 32
    %v2085 = vpop.permute.xlu0 %2084
    %2087 = vst.msk [vmem:[#allocation5] sm:$0xff] %vm283, %v2085
    %2089 = vrot.lane.b32.xlu0 %v2076, 96
    %v2090 = vpop.permute.xlu0 %2089
    %2092 = vst.msk [vmem:[#allocation6] sm:$0xff] %vm283, %v2090
    %v2093 = vld [vmem:[#allocation5] sm:$0xff]
    %v2094 = vld [vmem:[#allocation6] sm:$0xff]
    %v2095 = vld [vmem:[%s999] sm:$0xff]
    %v2097 = vsel %vm283, %v2093, 0
    %2099 = vmatprep.subr.mxu0 0.0
    %2100 = vmatpush1.msra.mxu0 %v1399
    %2101 = vmatprep.subr.mxu0 0.0
    %2102 = vmatpush1.msra.mxu0 %v1400
    %2103 = vmatprep.subr.mxu0 0.0
    %2104 = vmatpush1.msra.mxu0 %v1401
    %2105 = vmatprep.subr.mxu0 0.0
    %2106 = vmatpush1.msra.mxu0 %v1402
    %2107 = vmatprep.subr.mxu0 0.0
    %2108 = vmatpush1.msra.mxu0 0.0
    %2109 = vmatprep.subr.mxu0 0.0
    %2110 = vmatpush1.msra.mxu0 0.0
    %2111 = vmatprep.subr.mxu0 0.0
    %2112 = vmatpush1.msra.mxu0 0.0
    %2113 = vmatprep.subr.mxu0 0.0
    %2114 = vmatpush1.msra.mxu0 0.0
    %2115 = vmatprep.subr.mxu0 0.0
    %2116 = vmatpush1.msra.mxu0 0.0
    %2117 = vmatprep.subr.mxu0 0.0
    %2118 = vmatpush1.msra.mxu0 0.0
    %2119 = vmatprep.subr.mxu0 0.0
    %2120 = vmatpush1.msra.mxu0 0.0
    %2121 = vmatprep.subr.mxu0 0.0
    %2122 = vmatpush1.msra.mxu0 0.0
    %2123 = vmatprep.subr.mxu0 0.0
    %2124 = vmatpush1.msra.mxu0 0.0
    %2125 = vmatprep.subr.mxu0 0.0
    %2126 = vmatpush1.msra.mxu0 0.0
    %2127 = vmatprep.subr.mxu0 0.0
    %2128 = vmatpush1.msra.mxu0 0.0
    %2129 = vmatprep.subr.mxu0 0.0
    %2130 = vmatpush1.msra.mxu0 0.0
    %2131 = vmatprep.subr.mxu0 0.0
    %2132 = vmatpush1.msra.mxu0 0.0
    %2133 = vmatprep.subr.mxu0 0.0
    %2134 = vmatpush1.msra.mxu0 0.0
    %2135 = vmatprep.subr.mxu0 0.0
    %2136 = vmatpush1.msra.mxu0 0.0
    %2137 = vmatprep.subr.mxu0 0.0
    %2138 = vmatpush1.msra.mxu0 0.0
    %2139 = vmatprep.subr.mxu0 0.0
    %2140 = vmatpush1.msra.mxu0 0.0
    %2141 = vmatprep.subr.mxu0 0.0
    %2142 = vmatpush1.msra.mxu0 0.0
    %2143 = vmatprep.subr.mxu0 0.0
    %2144 = vmatpush1.msra.mxu0 0.0
    %2145 = vmatprep.subr.mxu0 0.0
    %2146 = vmatpush1.msra.mxu0 0.0
    %2147 = vmatprep.subr.mxu0 0.0
    %2148 = vmatpush1.msra.mxu0 0.0
    %2149 = vmatprep.subr.mxu0 0.0
    %2150 = vmatpush1.msra.mxu0 0.0
    %2151 = vmatprep.subr.mxu0 0.0
    %2152 = vmatpush1.msra.mxu0 0.0
    %2153 = vmatprep.subr.mxu0 0.0
    %2154 = vmatpush1.msra.mxu0 0.0
    %2155 = vmatprep.subr.mxu0 0.0
    %2156 = vmatpush1.msra.mxu0 0.0
    %2157 = vmatprep.subr.mxu0 0.0
    %2158 = vmatpush1.msra.mxu0 0.0
    %2159 = vmatprep.subr.mxu0 0.0
    %2160 = vmatpush1.msra.mxu0 0.0
    %2161 = vmatprep.subr.mxu0 0.0
    %2162 = vmatpush1.msra.mxu0 0.0
    %2163 = vmatprep.mubr.f32.mxu0 0.0
    %2164 = vmatmul.mubr.f32.gmra.mrb[0].mxu0 %v2097
    %v2165 = vpop.f32.mrb[0].mxu0
    %v2166 = vadd.f32 0.0, %v2165
    %v2167 = vpop.f32.mrb[0].mxu0
    %2168 = vdwg.mxu0
    %v2169 = vadd.f32 %v2095, %v2166
    %v2170 = vxor.u32 %v2169, 2147483648
    %v2171 = vmul.f32 %v2170, 1.442695
    %v2172 = vpow.pop %v2171
    %v2173 = vadd.f32 %v2172, 1.0
    %v2174 = vrcp.pop %v2173
    %v2175 = vmul.f32 1.0, %v2174
    %v2176 = vtanh.pop %v2169
    %2178 = vrot.lane.b32.xlu0 %v2094, 32
    %v2179 = vpop.permute.xlu0 %2178
    %v2181 = vmul.f32 %v2175, %v2179
    %2183 = vrot.lane.b32.xlu0 %v2176, 64
    %v2184 = vpop.permute.xlu0 %2183
    %v2186 = vmul.f32 %v2175, %v2184
    %2188 = vrot.lane.b32.xlu0 %v2186, 32
    %v2189 = vpop.permute.xlu0 %2188
    %v2191 = vadd.f32 %v2181, %v2189
    %v2192 = vtanh.pop %v2191
    %2194 = vrot.lane.b32.xlu0 %v2192, 64
    %v2195 = vpop.permute.xlu0 %2194
    %v2197 = vmul.f32 %v2175, %v2195
    %2199 = vrot.lane.b32.xlu0 %v2197, 32
    %v2200 = vpop.permute.xlu0 %2199
    %2202 = vst.msk [vmem:[#allocation5] sm:$0xff] %vm283, %v2200
    %2204 = vrot.lane.b32.xlu0 %v2191, 96
    %v2205 = vpop.permute.xlu0 %2204
    %2207 = vst.msk [vmem:[#allocation6] sm:$0xff] %vm283, %v2205
    %v2208 = vld [vmem:[#allocation5] sm:$0xff]
    %v2209 = vld [vmem:[#allocation6] sm:$0xff]
    %v2210 = vld [vmem:[%s1117] sm:$0xff]
    %v2212 = vsel %vm283, %v2208, 0
    %2214 = vmatprep.subr.mxu0 0.0
    %2215 = vmatpush1.msra.mxu0 %v1399
    %2216 = vmatprep.subr.mxu0 0.0
    %2217 = vmatpush1.msra.mxu0 %v1400
    %2218 = vmatprep.subr.mxu0 0.0
    %2219 = vmatpush1.msra.mxu0 %v1401
    %2220 = vmatprep.subr.mxu0 0.0
    %2221 = vmatpush1.msra.mxu0 %v1402
    %2222 = vmatprep.subr.mxu0 0.0
    %2223 = vmatpush1.msra.mxu0 0.0
    %2224 = vmatprep.subr.mxu0 0.0
    %2225 = vmatpush1.msra.mxu0 0.0
    %2226 = vmatprep.subr.mxu0 0.0
    %2227 = vmatpush1.msra.mxu0 0.0
    %2228 = vmatprep.subr.mxu0 0.0
    %2229 = vmatpush1.msra.mxu0 0.0
    %2230 = vmatprep.subr.mxu0 0.0
    %2231 = vmatpush1.msra.mxu0 0.0
    %2232 = vmatprep.subr.mxu0 0.0
    %2233 = vmatpush1.msra.mxu0 0.0
    %2234 = vmatprep.subr.mxu0 0.0
    %2235 = vmatpush1.msra.mxu0 0.0
    %2236 = vmatprep.subr.mxu0 0.0
    %2237 = vmatpush1.msra.mxu0 0.0
    %2238 = vmatprep.subr.mxu0 0.0
    %2239 = vmatpush1.msra.mxu0 0.0
    %2240 = vmatprep.subr.mxu0 0.0
    %2241 = vmatpush1.msra.mxu0 0.0
    %2242 = vmatprep.subr.mxu0 0.0
    %2243 = vmatpush1.msra.mxu0 0.0
    %2244 = vmatprep.subr.mxu0 0.0
    %2245 = vmatpush1.msra.mxu0 0.0
    %2246 = vmatprep.subr.mxu0 0.0
    %2247 = vmatpush1.msra.mxu0 0.0
    %2248 = vmatprep.subr.mxu0 0.0
    %2249 = vmatpush1.msra.mxu0 0.0
    %2250 = vmatprep.subr.mxu0 0.0
    %2251 = vmatpush1.msra.mxu0 0.0
    %2252 = vmatprep.subr.mxu0 0.0
    %2253 = vmatpush1.msra.mxu0 0.0
    %2254 = vmatprep.subr.mxu0 0.0
    %2255 = vmatpush1.msra.mxu0 0.0
    %2256 = vmatprep.subr.mxu0 0.0
    %2257 = vmatpush1.msra.mxu0 0.0
    %2258 = vmatprep.subr.mxu0 0.0
    %2259 = vmatpush1.msra.mxu0 0.0
    %2260 = vmatprep.subr.mxu0 0.0
    %2261 = vmatpush1.msra.mxu0 0.0
    %2262 = vmatprep.subr.mxu0 0.0
    %2263 = vmatpush1.msra.mxu0 0.0
    %2264 = vmatprep.subr.mxu0 0.0
    %2265 = vmatpush1.msra.mxu0 0.0
    %2266 = vmatprep.subr.mxu0 0.0
    %2267 = vmatpush1.msra.mxu0 0.0
    %2268 = vmatprep.subr.mxu0 0.0
    %2269 = vmatpush1.msra.mxu0 0.0
    %2270 = vmatprep.subr.mxu0 0.0
    %2271 = vmatpush1.msra.mxu0 0.0
    %2272 = vmatprep.subr.mxu0 0.0
    %2273 = vmatpush1.msra.mxu0 0.0
    %2274 = vmatprep.subr.mxu0 0.0
    %2275 = vmatpush1.msra.mxu0 0.0
    %2276 = vmatprep.subr.mxu0 0.0
    %2277 = vmatpush1.msra.mxu0 0.0
    %2278 = vmatprep.mubr.f32.mxu0 0.0
    %2279 = vmatmul.mubr.f32.gmra.mrb[0].mxu0 %v2212
    %v2280 = vpop.f32.mrb[0].mxu0
    %v2281 = vadd.f32 0.0, %v2280
    %v2282 = vpop.f32.mrb[0].mxu0
    %2283 = vdwg.mxu0
    %v2284 = vadd.f32 %v2210, %v2281
    %v2285 = vxor.u32 %v2284, 2147483648
    %v2286 = vmul.f32 %v2285, 1.442695
    %v2287 = vpow.pop %v2286
    %v2288 = vadd.f32 %v2287, 1.0
    %v2289 = vrcp.pop %v2288
    %v2290 = vmul.f32 1.0, %v2289
    %v2291 = vtanh.pop %v2284
    %2293 = vrot.lane.b32.xlu0 %v2209, 32
    %v2294 = vpop.permute.xlu0 %2293
    %v2296 = vmul.f32 %v2290, %v2294
    %2298 = vrot.lane.b32.xlu0 %v2291, 64
    %v2299 = vpop.permute.xlu0 %2298
    %v2301 = vmul.f32 %v2290, %v2299
    %2303 = vrot.lane.b32.xlu0 %v2301, 32
    %v2304 = vpop.permute.xlu0 %2303
    %v2306 = vadd.f32 %v2296, %v2304
    %v2307 = vtanh.pop %v2306
    %2309 = vrot.lane.b32.xlu0 %v2307, 64
    %v2310 = vpop.permute.xlu0 %2309
    %v2312 = vmul.f32 %v2290, %v2310
    %2314 = vrot.lane.b32.xlu0 %v2312, 32
    %v2315 = vpop.permute.xlu0 %2314
    %2317 = vst.msk [vmem:[#allocation5] sm:$0xff] %vm283, %v2315
    %2319 = vrot.lane.b32.xlu0 %v2306, 96
    %v2320 = vpop.permute.xlu0 %2319
    %2322 = vst.msk [vmem:[#allocation6] sm:$0xff] %vm283, %v2320
    %v2323 = vld [vmem:[#allocation5] sm:$0xff]
    %s2324 = scalar_lea.vmem [#allocation16], 8
    %2325 = vst.msk [vmem:[%s2324] sm:$0xff] %vm283, %v2323
    %v2326 = vld [vmem:[#allocation6] sm:$0xff]
    %s2327 = scalar_lea.vmem [#allocation17], 8
    %2328 = vst.msk [vmem:[%s2327] sm:$0xff] %vm283, %v2326
    // Predicated region
    $region58: #{tpu_custom_call.1} parent=1 // pred_check
      _
    $region59: #{tpu_custom_call.1} parent=1 // pred_check_branch
      %2330 = sbr.rel (0) target = $region61
    $region60: #{tpu_custom_call.1} parent=1 // pred_region
      %s2332 = ssub.s32 256, 256
      %2333 = vsyncadd [#allocation9], %s2332
      %s2334 = sshll.u32 [#allocation16], 4
      %s2335 = int_to_ptr.vmem [resolvable:$true] %s2334
      %2340 = dma.vmem_to_hbm [thread:$0]  %s2335, 256, %s9, [#allocation9], 128, 128, 8
    $region61: #{tpu_custom_call.1} parent=1 // pred_fallthru
      _
    // Predicated region
    $region62: #{tpu_custom_call.1} parent=1 // pred_check
      _
    $region63: #{tpu_custom_call.1} parent=1 // pred_check_branch
      %2342 = sbr.rel (0) target = $region65
    $region64: #{tpu_custom_call.1} parent=1 // pred_region
      %s2344 = ssub.s32 256, 256
      %2345 = vsyncadd [#allocation18], %s2344
      %s2346 = sshll.u32 [#allocation17], 4
      %s2347 = int_to_ptr.vmem [resolvable:$true] %s2346
      %2352 = dma.vmem_to_hbm [thread:$0]  %s2347, 256, %s10, [#allocation18], 128, 128, 8
    $region65: #{tpu_custom_call.1} parent=1 // pred_fallthru
      _
    // Predicated region
    $region66: #{tpu_custom_call.1} parent=1 // pred_check
      _
    $region67: #{tpu_custom_call.1} parent=1 // pred_check_branch
      %2354 = sbr.rel (0) target = $region69
    $region68: #{tpu_custom_call.1} parent=1 // pred_region
      %2355 = dma.done [#allocation9], 256
    $region69: #{tpu_custom_call.1} parent=1 // pred_fallthru
      _
    // Predicated region
    $region70: #{tpu_custom_call.1} parent=1 // pred_check
      _
    $region71: #{tpu_custom_call.1} parent=1 // pred_check_branch
      %2357 = sbr.rel (0) target = $region73
    $region72: #{tpu_custom_call.1} parent=1 // pred_region
      %2358 = dma.done [#allocation18], 256
    $region73: #{tpu_custom_call.1} parent=1 // pred_fallthru
      _
    %2359 = vsyncpa [#allocation8], 1
    %2360 = vsyncpa [#allocation11], 1
    %2361 = vsyncpa [#allocation14], 1
    %2362 = vsyncpa [#allocation9], 1
    %2363 = vsyncpa [#allocation18], 1

</llo_original>
